<compile_context>
chip_gen: v7x
topology: tpu7x:2x2x1
jax: 0.10.0
libtpu: 0.0.40
codegen_flags: <defaults>
</compile_context>

<pallas_src>
import functools
import math

import jax
import jax.numpy as jnp
import numpy as np
from jax.experimental import pallas as pl
from jax.experimental.pallas import tpu as pltpu


# Neighbour offsets / weights of the original (non-separable) PyTorch formulation,
# used by the NumPy reference below.
_KU = (-0.25, -0.5, -0.25, 0.0, 0.0, 0.25, 0.5, 0.25)
_KV = (-0.25, 0.0, 0.25, -0.5, 0.5, -0.25, 0.0, 0.25)
_OFFS = ((-1, -1), (-1, 0), (-1, 1), (0, -1), (0, 1), (1, -1), (1, 0), (1, 1))


def _structure_tensor_kernel(s0_ref, f_ref, xpad_ref, out_ref,
                             sm_ref, dv_ref, su_ref, sv_ref, *,
                             P, H, W, scale_luminance):
    """One grid step = one batch image.

    s0_ref, f_ref : SMEM scalar-prefetch (N,) -- integer / fractional part of sigma.
    xpad_ref      : VMEM (3, H+2P, W+2P) edge-padded planar RGB image.
    out_ref       : VMEM (3, H, W) structure-tensor planes (uu, vv, uv).
    sm_ref,dv_ref : VMEM (H, W+2P) scratch -- smooth_y / deriv_y at padded width.
    su_ref,sv_ref : VMEM (H, W)    scratch -- per-channel s_u / s_v accumulators.
    """
    b = pl.program_id(0)
    s0 = s0_ref[b]                        # int32 in [0, P-1]
    f = f_ref[b]                          # float32 in [0, 1)
    one = jnp.float32(1.0)
    zero = jnp.float32(0.0)

    # Scalar bilinear tap weights (scalar-core work, free vs. the VALU bottleneck).
    w_out = jnp.float32(0.25) * f         # smooth weight at +-(s0+1)
    w_in = jnp.float32(0.25) * (one - f)  # smooth weight at +-s0
    d_out = f                             # |deriv| weight at +-(s0+1)
    d_in = one - f                        # |deriv| weight at +-s0

    # Row starts of the 5 active vertical taps inside the padded image
    # (padded row P corresponds to output row 0).  Always within [0, 2P].
    r_m1 = P - s0 - 1
    r_m0 = P - s0
    r_p0 = P + s0
    r_p1 = P + s0 + 1

    # Total smooth weight of the static center tap.  When s0 == 0 the +-s0 taps land
    # on the center: the vertical pass sums the coincident slabs explicitly, the
    # horizontal pass folds them into the center weight (deriv contributions cancel).
    ws_center = jnp.float32(0.5) + jnp.where(s0 == 0,
                                             jnp.float32(0.5) * (one - f), zero)

    for c in range(3):                    # unrolled planar channel loop
        # ---- vertical pass: 5 dynamic-sublane slices over the padded width ----
        x_m1 = xpad_ref[c, pl.ds(r_m1, H), :]
        x_m0 = xpad_ref[c, pl.ds(r_m0, H), :]
        x_c0 = xpad_ref[c, P:P + H, :]
        x_p0 = xpad_ref[c, pl.ds(r_p0, H), :]
        x_p1 = xpad_ref[c, pl.ds(r_p1, H), :]
        sm_ref[...] = (w_out * (x_m1 + x_p1) + w_in * (x_m0 + x_p0)
                       + jnp.float32(0.5) * x_c0)
        dv_ref[...] = d_out * (x_p1 - x_m1) + d_in * (x_p0 - x_m0)

        # x100 luminance scale (vec3_const(100,1,1)) folded into scalar weights.
        ch_scale = jnp.float32(100.0 if (scale_luminance and c == 0) else 1.0)

        # ---- horizontal pass: center tap + pl.when-gated active taps ----
        su_ref[...] = jnp.zeros_like(su_ref)               # deriv weight at 0 is 0
        sv_ref[...] = (ch_scale * ws_center) * dv_ref[:, P:P + W]

        for d in range(-P, P + 1):                          # static offsets; ~5 run
            if d == 0:
                continue
            ws_d = (jnp.where(d == -s0 - 1, w_out, zero)
                    + jnp.where(d == -s0, w_in, zero)
                    + jnp.where(d == s0, w_in, zero)
                    + jnp.where(d == s0 + 1, w_out, zero))
            wd_d = (jnp.where(d == s0, d_in, zero)
                    + jnp.where(d == s0 + 1, d_out, zero)
                    - jnp.where(d == -s0, d_in, zero)
                    - jnp.where(d == -s0 - 1, d_out, zero))
            active = jnp.logical_or(ws_d != zero, wd_d != zero)

            @pl.when(active)
            def _():
                sm_d = sm_ref[:, P + d:P + d + W]           # static lane-offset reads
                dv_d = dv_ref[:, P + d:P + d + W]
                su_ref[...] += (ch_scale * wd_d) * sm_d
                sv_ref[...] += (ch_scale * ws_d) * dv_d

        # ---- accumulate the structure tensor directly into the output block ----
        su = su_ref[...]
        sv = sv_ref[...]
        if c == 0:
            out_ref[0, :, :] = su * su
            out_ref[1, :, :] = sv * sv
            out_ref[2, :, :] = su * sv
        else:
            out_ref[0, :, :] += su * su
            out_ref[1, :, :] += sv * sv
            out_ref[2, :, :] += su * sv


def structure_tensor_effect(x, sigma, scale_luminance=True, max_sigma=None):
    """Pallas implementation of StructureTensorEffect.forward.

    x         : (N, C, H, W) float array, C in {3, 4} (alpha dropped).
    sigma     : scalar or (N,) per-image blur radius (pixels).
    max_sigma : optional static upper bound on sigma.  Pass it to avoid the
                device->host sync used to derive the pad size (and to allow jitting).
    Returns (N, 3, H, W) float32 = (dot(s_u,s_u), dot(s_v,s_v), dot(s_u,s_v)).
    """
    x = jnp.asarray(x, jnp.float32)
    N, C, H, W = x.shape
    rgb = x[:, :3]                                          # drop alpha (glue)

    sig = jnp.broadcast_to(jnp.asarray(sigma, jnp.float32).reshape(-1), (N,))
    if max_sigma is None:
        # Host-side bound (syncs if sigma is a device array); pass max_sigma to avoid.
        max_sigma = float(np.max(np.asarray(sigma)))
    P = int(math.floor(float(max_sigma))) + 1

    # OOB guard: VMEM reads are unchecked, so clamp the integer shift to the pad size.
    s0 = jnp.clip(jnp.floor(sig).astype(jnp.int32), 0, P - 1)
    frac = (sig - jnp.floor(sig)).astype(jnp.float32)

    # Clamp-to-edge spatial padding; stays planar NCHW (no transposes anywhere).
    xpad = jnp.pad(rgb, ((0, 0), (0, 0), (P, P), (P, P)), mode="edge")
    Hp, Wp = H + 2 * P, W + 2 * P

    kernel = functools.partial(
        _structure_tensor_kernel, P=P, H=H, W=W,
        scale_luminance=bool(scale_luminance))

    # Raise the VMEM cap above the 64 MiB default only when the blocks need it
    # (v5e/v6e have 128 MiB physical VMEM; v7x needs row tiling instead -- see TODO).
    block_bytes = 4 * (2 * 3 * Hp * Wp + 2 * 3 * H * W)     # double-buffered in/out
    scratch_bytes = 4 * (2 * H * Wp + 2 * H * W)
    vmem_limit = max(64 * 1024 * 1024, int(1.25 * (block_bytes + scratch_bytes)))

    return pl.pallas_call(
        kernel,
        out_shape=jax.ShapeDtypeStruct((N, 3, H, W), jnp.float32),
        grid_spec=pltpu.PrefetchScalarGridSpec(
            num_scalar_prefetch=2,
            grid=(N,),
            in_specs=[pl.BlockSpec((None, 3, Hp, Wp),
                                   lambda n, s0_r, f_r: (n, 0, 0, 0))],
            out_specs=pl.BlockSpec((None, 3, H, W),
                                   lambda n, s0_r, f_r: (n, 0, 0, 0)),
            scratch_shapes=[pltpu.VMEM((H, Wp), jnp.float32),   # smooth_y
                            pltpu.VMEM((H, Wp), jnp.float32),   # deriv_y
                            pltpu.VMEM((H, W), jnp.float32),    # s_u
                            pltpu.VMEM((H, W), jnp.float32)]),  # s_v
        compiler_params=pltpu.CompilerParams(
            dimension_semantics=("parallel",),
            vmem_limit_bytes=vmem_limit),
    )(s0, frac, xpad)


def structure_tensor_reference(x, sigma, scale_luminance=True):
    """Pure NumPy reference (non-separable, clamp-to-edge bilinear), NCHW."""
    x = np.asarray(x, np.float32)
    N, C, H, W = x.shape
    rgb = x[:, :3]
    sig = np.broadcast_to(np.asarray(sigma, np.float32).reshape(-1), (N,))

    ys = np.arange(H, dtype=np.float32)[:, None]
    xs = np.arange(W, dtype=np.float32)[None, :]

    def sample(n, ox, oy):
        yy = np.broadcast_to(ys + oy * sig[n], (H, W))
        xx = np.broadcast_to(xs + ox * sig[n], (H, W))
        y0 = np.floor(yy).astype(np.int64)
        x0 = np.floor(xx).astype(np.int64)
        fy = (yy - y0).astype(np.float32)
        fx = (xx - x0).astype(np.float32)

        def g(yi, xi):
            yi = np.clip(yi, 0, H - 1)
            xi = np.clip(xi, 0, W - 1)
            return rgb[n][:, yi, xi]

        return ((1 - fy) * (1 - fx)) * g(y0, x0) + ((1 - fy) * fx) * g(y0, x0 + 1) \
             + (fy * (1 - fx)) * g(y0 + 1, x0) + (fy * fx) * g(y0 + 1, x0 + 1)

    out = np.zeros((N, 3, H, W), np.float32)
    for n in range(N):
        su = np.zeros((3, H, W), np.float32)
        sv = np.zeros((3, H, W), np.float32)
        for k in range(8):
            ox, oy = _OFFS[k]
            s = sample(n, ox, oy)
            su += _KU[k] * s
            sv += _KV[k] * s
        if scale_luminance:
            lum = np.array([100.0, 1.0, 1.0], np.float32)[:, None, None]
            su = su * lum
            sv = sv * lum
        out[n, 0] = (su * su).sum(0)
        out[n, 1] = (sv * sv).sum(0)
        out[n, 2] = (su * sv).sum(0)
    return out


if __name__ == "__main__":
    key = jax.random.PRNGKey(0)
    k1, _ = jax.random.split(key)
    N, C, H, W = 2, 4, 16, 16                 # RGBA input, alpha is dropped
    x = jax.random.uniform(k1, (N, C, H, W), dtype=jnp.float32)

    # Two sigma sets: generic fractional sigmas, plus the s0 == 0 and integer-sigma
    # edge cases (exercise the coincident-tap and zero-weight-tap paths).
    for sigma in (jnp.array([1.7, 2.3], dtype=jnp.float32),
                  jnp.array([0.6, 3.0], dtype=jnp.float32)):
        out = structure_tensor_effect(x, sigma, scale_luminance=True)
        out = jax.block_until_ready(out)
        ref = structure_tensor_reference(np.asarray(x), np.asarray(sigma),
                                         scale_luminance=True)
        np.testing.assert_allclose(np.asarray(out), ref, rtol=1e-3, atol=1e-3)
        assert out.shape == (N, 3, H, W)

    print("KERNEL_OK")
</pallas_src>

<mosaic_0001>
module attributes {stable_mosaic.version = 11 : i64} {
  func.func @_structure_tensor_kernel(%arg0: i32, %arg1: memref<2xi32, #tpu.memory_space<smem>>, %arg2: memref<2xf32, #tpu.memory_space<smem>>, %arg3: memref<1x3x22x22xf32, #tpu.memory_space<vmem>>, %arg4: memref<1x3x16x16xf32, #tpu.memory_space<vmem>>, %arg5: memref<16x22xf32, #tpu.memory_space<vmem>>, %arg6: memref<16x22xf32, #tpu.memory_space<vmem>>, %arg7: memref<16x16xf32, #tpu.memory_space<vmem>>, %arg8: memref<16x16xf32, #tpu.memory_space<vmem>>) attributes {dimension_semantics = [#tpu.dimension_semantics<parallel>], iteration_bounds = array<i64: 2>, scalar_prefetch = 2 : i64, scratch_operands = 4 : i64, tpu.core_type = #tpu.core_type<tc>, window_params = [{transform_indices = @transform_0, window_bounds = array<i64: 1, 3, 22, 22>}, {transform_indices = @transform_1, window_bounds = array<i64: 1, 3, 16, 16>}]} {
    %0 = arith.index_cast %arg0 : i32 to index
    %1 = memref.load %arg1[%0] : memref<2xi32, #tpu.memory_space<smem>>
    %2 = arith.index_cast %arg0 : i32 to index
    %3 = memref.load %arg2[%2] : memref<2xf32, #tpu.memory_space<smem>>
    %cst = arith.constant 2.500000e-01 : f32
    %4 = arith.mulf %cst, %3 : f32
    %cst_0 = arith.constant 1.000000e+00 : f32
    %5 = arith.subf %cst_0, %3 : f32
    %cst_1 = arith.constant 2.500000e-01 : f32
    %6 = arith.mulf %cst_1, %5 : f32
    %cst_2 = arith.constant 1.000000e+00 : f32
    %7 = arith.subf %cst_2, %3 : f32
    %c3_i32 = arith.constant 3 : i32
    %8 = arith.subi %c3_i32, %1 : i32
    %c1_i32 = arith.constant 1 : i32
    %9 = arith.subi %8, %c1_i32 : i32
    %c3_i32_3 = arith.constant 3 : i32
    %10 = arith.subi %c3_i32_3, %1 : i32
    %c3_i32_4 = arith.constant 3 : i32
    %11 = arith.addi %c3_i32_4, %1 : i32
    %c3_i32_5 = arith.constant 3 : i32
    %12 = arith.addi %c3_i32_5, %1 : i32
    %c1_i32_6 = arith.constant 1 : i32
    %13 = arith.addi %12, %c1_i32_6 : i32
    %c0_i32 = arith.constant 0 : i32
    %14 = arith.cmpi eq, %1, %c0_i32 : i32
    %cst_7 = arith.constant 1.000000e+00 : f32
    %15 = arith.subf %cst_7, %3 : f32
    %cst_8 = arith.constant 5.000000e-01 : f32
    %16 = arith.mulf %cst_8, %15 : f32
    %cst_9 = arith.constant 0.000000e+00 : f32
    %17 = arith.select %14, %16, %cst_9 : f32
    %cst_10 = arith.constant 5.000000e-01 : f32
    %18 = arith.addf %cst_10, %17 : f32
    %c0 = arith.constant 0 : index
    %c0_11 = arith.constant 0 : index
    %19 = arith.index_cast %9 : i32 to index
    %c0_12 = arith.constant 0 : index
    %20 = vector.load %arg3[%c0, %c0_11, %19, %c0_12] : memref<1x3x22x22xf32, #tpu.memory_space<vmem>>, vector<1x1x16x22xf32>
    %21 = vector.shape_cast %20 : vector<1x1x16x22xf32> to vector<16x22xf32>
    %c0_13 = arith.constant 0 : index
    %c0_14 = arith.constant 0 : index
    %22 = arith.index_cast %10 : i32 to index
    %c0_15 = arith.constant 0 : index
    %23 = vector.load %arg3[%c0_13, %c0_14, %22, %c0_15] : memref<1x3x22x22xf32, #tpu.memory_space<vmem>>, vector<1x1x16x22xf32>
    %24 = vector.shape_cast %23 : vector<1x1x16x22xf32> to vector<16x22xf32>
    %c0_16 = arith.constant 0 : index
    %c0_17 = arith.constant 0 : index
    %c3 = arith.constant 3 : index
    %c0_18 = arith.constant 0 : index
    %25 = vector.load %arg3[%c0_16, %c0_17, %c3, %c0_18] : memref<1x3x22x22xf32, #tpu.memory_space<vmem>>, vector<1x1x16x22xf32>
    %26 = vector.shape_cast %25 : vector<1x1x16x22xf32> to vector<16x22xf32>
    %c0_19 = arith.constant 0 : index
    %c0_20 = arith.constant 0 : index
    %27 = arith.index_cast %11 : i32 to index
    %c0_21 = arith.constant 0 : index
    %28 = vector.load %arg3[%c0_19, %c0_20, %27, %c0_21] : memref<1x3x22x22xf32, #tpu.memory_space<vmem>>, vector<1x1x16x22xf32>
    %29 = vector.shape_cast %28 : vector<1x1x16x22xf32> to vector<16x22xf32>
    %c0_22 = arith.constant 0 : index
    %c0_23 = arith.constant 0 : index
    %30 = arith.index_cast %13 : i32 to index
    %c0_24 = arith.constant 0 : index
    %31 = vector.load %arg3[%c0_22, %c0_23, %30, %c0_24] : memref<1x3x22x22xf32, #tpu.memory_space<vmem>>, vector<1x1x16x22xf32>
    %32 = vector.shape_cast %31 : vector<1x1x16x22xf32> to vector<16x22xf32>
    %33 = arith.addf %21, %32 : vector<16x22xf32>
    %34 = vector.broadcast %4 : f32 to vector<16x22xf32>
    %35 = arith.mulf %34, %33 : vector<16x22xf32>
    %36 = arith.addf %24, %29 : vector<16x22xf32>
    %37 = vector.broadcast %6 : f32 to vector<16x22xf32>
    %38 = arith.mulf %37, %36 : vector<16x22xf32>
    %39 = arith.addf %35, %38 : vector<16x22xf32>
    %cst_25 = arith.constant 5.000000e-01 : f32
    %40 = vector.broadcast %cst_25 : f32 to vector<16x22xf32>
    %41 = arith.mulf %40, %26 : vector<16x22xf32>
    %42 = arith.addf %39, %41 : vector<16x22xf32>
    %c0_26 = arith.constant 0 : index
    %c0_27 = arith.constant 0 : index
    %43 = vector.load %arg5[%c0_26, %c0_27] : memref<16x22xf32, #tpu.memory_space<vmem>>, vector<16x22xf32>
    tpu.vector_store %arg5[%c0_26, %c0_27], %42 {strides = array<i32>} : memref<16x22xf32, #tpu.memory_space<vmem>>, vector<16x22xf32>,
    %44 = arith.subf %32, %21 : vector<16x22xf32>
    %45 = vector.broadcast %3 : f32 to vector<16x22xf32>
    %46 = arith.mulf %45, %44 : vector<16x22xf32>
    %47 = arith.subf %29, %24 : vector<16x22xf32>
    %48 = vector.broadcast %7 : f32 to vector<16x22xf32>
    %49 = arith.mulf %48, %47 : vector<16x22xf32>
    %50 = arith.addf %46, %49 : vector<16x22xf32>
    %c0_28 = arith.constant 0 : index
    %c0_29 = arith.constant 0 : index
    %51 = vector.load %arg6[%c0_28, %c0_29] : memref<16x22xf32, #tpu.memory_space<vmem>>, vector<16x22xf32>
    tpu.vector_store %arg6[%c0_28, %c0_29], %50 {strides = array<i32>} : memref<16x22xf32, #tpu.memory_space<vmem>>, vector<16x22xf32>,
    %cst_30 = arith.constant 0.000000e+00 : f32
    %52 = vector.broadcast %cst_30 : f32 to vector<16x16xf32>
    %c0_31 = arith.constant 0 : index
    %c0_32 = arith.constant 0 : index
    %53 = vector.load %arg7[%c0_31, %c0_32] : memref<16x16xf32, #tpu.memory_space<vmem>>, vector<16x16xf32>
    tpu.vector_store %arg7[%c0_31, %c0_32], %52 {strides = array<i32>} : memref<16x16xf32, #tpu.memory_space<vmem>>, vector<16x16xf32>,
    %cst_33 = arith.constant 1.000000e+02 : f32
    %54 = arith.mulf %cst_33, %18 : f32
    %c0_34 = arith.constant 0 : index
    %c3_35 = arith.constant 3 : index
    %55 = vector.load %arg6[%c0_34, %c3_35] : memref<16x22xf32, #tpu.memory_space<vmem>>, vector<16x16xf32>
    %56 = vector.broadcast %54 : f32 to vector<16x16xf32>
    %57 = arith.mulf %56, %55 : vector<16x16xf32>
    %c0_36 = arith.constant 0 : index
    %c0_37 = arith.constant 0 : index
    %58 = vector.load %arg8[%c0_36, %c0_37] : memref<16x16xf32, #tpu.memory_space<vmem>>, vector<16x16xf32>
    tpu.vector_store %arg8[%c0_36, %c0_37], %57 {strides = array<i32>} : memref<16x16xf32, #tpu.memory_space<vmem>>, vector<16x16xf32>,
    %c0_i32_38 = arith.constant 0 : i32
    %59 = arith.subi %c0_i32_38, %1 : i32
    %c1_i32_39 = arith.constant 1 : i32
    %60 = arith.subi %59, %c1_i32_39 : i32
    %c-3_i32 = arith.constant -3 : i32
    %61 = arith.cmpi eq, %60, %c-3_i32 : i32
    %cst_40 = arith.constant 0.000000e+00 : f32
    %62 = arith.select %61, %4, %cst_40 : f32
    %c0_i32_41 = arith.constant 0 : i32
    %63 = arith.subi %c0_i32_41, %1 : i32
    %c-3_i32_42 = arith.constant -3 : i32
    %64 = arith.cmpi eq, %63, %c-3_i32_42 : i32
    %cst_43 = arith.constant 0.000000e+00 : f32
    %65 = arith.select %64, %6, %cst_43 : f32
    %66 = arith.addf %62, %65 : f32
    %c-3_i32_44 = arith.constant -3 : i32
    %67 = arith.cmpi eq, %1, %c-3_i32_44 : i32
    %cst_45 = arith.constant 0.000000e+00 : f32
    %68 = arith.select %67, %6, %cst_45 : f32
    %69 = arith.addf %66, %68 : f32
    %c1_i32_46 = arith.constant 1 : i32
    %70 = arith.addi %1, %c1_i32_46 : i32
    %c-3_i32_47 = arith.constant -3 : i32
    %71 = arith.cmpi eq, %70, %c-3_i32_47 : i32
    %cst_48 = arith.constant 0.000000e+00 : f32
    %72 = arith.select %71, %4, %cst_48 : f32
    %73 = arith.addf %69, %72 : f32
    %c-3_i32_49 = arith.constant -3 : i32
    %74 = arith.cmpi eq, %1, %c-3_i32_49 : i32
    %cst_50 = arith.constant 0.000000e+00 : f32
    %75 = arith.select %74, %7, %cst_50 : f32
    %c1_i32_51 = arith.constant 1 : i32
    %76 = arith.addi %1, %c1_i32_51 : i32
    %c-3_i32_52 = arith.constant -3 : i32
    %77 = arith.cmpi eq, %76, %c-3_i32_52 : i32
    %cst_53 = arith.constant 0.000000e+00 : f32
    %78 = arith.select %77, %3, %cst_53 : f32
    %79 = arith.addf %75, %78 : f32
    %c0_i32_54 = arith.constant 0 : i32
    %80 = arith.subi %c0_i32_54, %1 : i32
    %c-3_i32_55 = arith.constant -3 : i32
    %81 = arith.cmpi eq, %80, %c-3_i32_55 : i32
    %cst_56 = arith.constant 0.000000e+00 : f32
    %82 = arith.select %81, %7, %cst_56 : f32
    %83 = arith.subf %79, %82 : f32
    %c0_i32_57 = arith.constant 0 : i32
    %84 = arith.subi %c0_i32_57, %1 : i32
    %c1_i32_58 = arith.constant 1 : i32
    %85 = arith.subi %84, %c1_i32_58 : i32
    %c-3_i32_59 = arith.constant -3 : i32
    %86 = arith.cmpi eq, %85, %c-3_i32_59 : i32
    %cst_60 = arith.constant 0.000000e+00 : f32
    %87 = arith.select %86, %3, %cst_60 : f32
    %88 = arith.subf %83, %87 : f32
    %cst_61 = arith.constant 0.000000e+00 : f32
    %89 = arith.cmpf one, %73, %cst_61 : f32
    %cst_62 = arith.constant 0.000000e+00 : f32
    %90 = arith.cmpf one, %88, %cst_62 : f32
    %91 = arith.ori %89, %90 : i1
    %92 = arith.extui %91 : i1 to i32
    %cst_63 = arith.constant 1.000000e+02 : f32
    %c0_i32_64 = arith.constant 0 : i32
    %93 = arith.cmpi ne, %92, %c0_i32_64 : i32
    scf.if %93 {
      %c0_666 = arith.constant 0 : index
      %c0_667 = arith.constant 0 : index
      %829 = vector.load %arg5[%c0_666, %c0_667] : memref<16x22xf32, #tpu.memory_space<vmem>>, vector<16x16xf32>
      %c0_668 = arith.constant 0 : index
      %c0_669 = arith.constant 0 : index
      %830 = vector.load %arg6[%c0_668, %c0_669] : memref<16x22xf32, #tpu.memory_space<vmem>>, vector<16x16xf32>
      %c0_670 = arith.constant 0 : index
      %c0_671 = arith.constant 0 : index
      %831 = vector.load %arg7[%c0_670, %c0_671] : memref<16x16xf32, #tpu.memory_space<vmem>>, vector<16x16xf32>
      %832 = arith.mulf %cst_63, %88 : f32
      %833 = vector.broadcast %832 : f32 to vector<16x16xf32>
      %834 = arith.mulf %833, %829 : vector<16x16xf32>
      %835 = arith.addf %831, %834 : vector<16x16xf32>
      %c0_672 = arith.constant 0 : index
      %c0_673 = arith.constant 0 : index
      %836 = vector.load %arg7[%c0_672, %c0_673] : memref<16x16xf32, #tpu.memory_space<vmem>>, vector<16x16xf32>
      tpu.vector_store %arg7[%c0_672, %c0_673], %835 {strides = array<i32>} : memref<16x16xf32, #tpu.memory_space<vmem>>, vector<16x16xf32>,
      %c0_674 = arith.constant 0 : index
      %c0_675 = arith.constant 0 : index
      %837 = vector.load %arg8[%c0_674, %c0_675] : memref<16x16xf32, #tpu.memory_space<vmem>>, vector<16x16xf32>
      %838 = arith.mulf %cst_63, %73 : f32
      %839 = vector.broadcast %838 : f32 to vector<16x16xf32>
      %840 = arith.mulf %839, %830 : vector<16x16xf32>
      %841 = arith.addf %837, %840 : vector<16x16xf32>
      %c0_676 = arith.constant 0 : index
      %c0_677 = arith.constant 0 : index
      %842 = vector.load %arg8[%c0_676, %c0_677] : memref<16x16xf32, #tpu.memory_space<vmem>>, vector<16x16xf32>
      tpu.vector_store %arg8[%c0_676, %c0_677], %841 {strides = array<i32>} : memref<16x16xf32, #tpu.memory_space<vmem>>, vector<16x16xf32>,
    } else {
    }
    %c0_i32_65 = arith.constant 0 : i32
    %94 = arith.subi %c0_i32_65, %1 : i32
    %c1_i32_66 = arith.constant 1 : i32
    %95 = arith.subi %94, %c1_i32_66 : i32
    %c-2_i32 = arith.constant -2 : i32
    %96 = arith.cmpi eq, %95, %c-2_i32 : i32
    %cst_67 = arith.constant 0.000000e+00 : f32
    %97 = arith.select %96, %4, %cst_67 : f32
    %c0_i32_68 = arith.constant 0 : i32
    %98 = arith.subi %c0_i32_68, %1 : i32
    %c-2_i32_69 = arith.constant -2 : i32
    %99 = arith.cmpi eq, %98, %c-2_i32_69 : i32
    %cst_70 = arith.constant 0.000000e+00 : f32
    %100 = arith.select %99, %6, %cst_70 : f32
    %101 = arith.addf %97, %100 : f32
    %c-2_i32_71 = arith.constant -2 : i32
    %102 = arith.cmpi eq, %1, %c-2_i32_71 : i32
    %cst_72 = arith.constant 0.000000e+00 : f32
    %103 = arith.select %102, %6, %cst_72 : f32
    %104 = arith.addf %101, %103 : f32
    %c1_i32_73 = arith.constant 1 : i32
    %105 = arith.addi %1, %c1_i32_73 : i32
    %c-2_i32_74 = arith.constant -2 : i32
    %106 = arith.cmpi eq, %105, %c-2_i32_74 : i32
    %cst_75 = arith.constant 0.000000e+00 : f32
    %107 = arith.select %106, %4, %cst_75 : f32
    %108 = arith.addf %104, %107 : f32
    %c-2_i32_76 = arith.constant -2 : i32
    %109 = arith.cmpi eq, %1, %c-2_i32_76 : i32
    %cst_77 = arith.constant 0.000000e+00 : f32
    %110 = arith.select %109, %7, %cst_77 : f32
    %c1_i32_78 = arith.constant 1 : i32
    %111 = arith.addi %1, %c1_i32_78 : i32
    %c-2_i32_79 = arith.constant -2 : i32
    %112 = arith.cmpi eq, %111, %c-2_i32_79 : i32
    %cst_80 = arith.constant 0.000000e+00 : f32
    %113 = arith.select %112, %3, %cst_80 : f32
    %114 = arith.addf %110, %113 : f32
    %c0_i32_81 = arith.constant 0 : i32
    %115 = arith.subi %c0_i32_81, %1 : i32
    %c-2_i32_82 = arith.constant -2 : i32
    %116 = arith.cmpi eq, %115, %c-2_i32_82 : i32
    %cst_83 = arith.constant 0.000000e+00 : f32
    %117 = arith.select %116, %7, %cst_83 : f32
    %118 = arith.subf %114, %117 : f32
    %c0_i32_84 = arith.constant 0 : i32
    %119 = arith.subi %c0_i32_84, %1 : i32
    %c1_i32_85 = arith.constant 1 : i32
    %120 = arith.subi %119, %c1_i32_85 : i32
    %c-2_i32_86 = arith.constant -2 : i32
    %121 = arith.cmpi eq, %120, %c-2_i32_86 : i32
    %cst_87 = arith.constant 0.000000e+00 : f32
    %122 = arith.select %121, %3, %cst_87 : f32
    %123 = arith.subf %118, %122 : f32
    %cst_88 = arith.constant 0.000000e+00 : f32
    %124 = arith.cmpf one, %108, %cst_88 : f32
    %cst_89 = arith.constant 0.000000e+00 : f32
    %125 = arith.cmpf one, %123, %cst_89 : f32
    %126 = arith.ori %124, %125 : i1
    %127 = arith.extui %126 : i1 to i32
    %cst_90 = arith.constant 1.000000e+02 : f32
    %c0_i32_91 = arith.constant 0 : i32
    %128 = arith.cmpi ne, %127, %c0_i32_91 : i32
    scf.if %128 {
      %c0_666 = arith.constant 0 : index
      %c1_667 = arith.constant 1 : index
      %829 = vector.load %arg5[%c0_666, %c1_667] : memref<16x22xf32, #tpu.memory_space<vmem>>, vector<16x16xf32>
      %c0_668 = arith.constant 0 : index
      %c1_669 = arith.constant 1 : index
      %830 = vector.load %arg6[%c0_668, %c1_669] : memref<16x22xf32, #tpu.memory_space<vmem>>, vector<16x16xf32>
      %c0_670 = arith.constant 0 : index
      %c0_671 = arith.constant 0 : index
      %831 = vector.load %arg7[%c0_670, %c0_671] : memref<16x16xf32, #tpu.memory_space<vmem>>, vector<16x16xf32>
      %832 = arith.mulf %cst_90, %123 : f32
      %833 = vector.broadcast %832 : f32 to vector<16x16xf32>
      %834 = arith.mulf %833, %829 : vector<16x16xf32>
      %835 = arith.addf %831, %834 : vector<16x16xf32>
      %c0_672 = arith.constant 0 : index
      %c0_673 = arith.constant 0 : index
      %836 = vector.load %arg7[%c0_672, %c0_673] : memref<16x16xf32, #tpu.memory_space<vmem>>, vector<16x16xf32>
      tpu.vector_store %arg7[%c0_672, %c0_673], %835 {strides = array<i32>} : memref<16x16xf32, #tpu.memory_space<vmem>>, vector<16x16xf32>,
      %c0_674 = arith.constant 0 : index
      %c0_675 = arith.constant 0 : index
      %837 = vector.load %arg8[%c0_674, %c0_675] : memref<16x16xf32, #tpu.memory_space<vmem>>, vector<16x16xf32>
      %838 = arith.mulf %cst_90, %108 : f32
      %839 = vector.broadcast %838 : f32 to vector<16x16xf32>
      %840 = arith.mulf %839, %830 : vector<16x16xf32>
      %841 = arith.addf %837, %840 : vector<16x16xf32>
      %c0_676 = arith.constant 0 : index
      %c0_677 = arith.constant 0 : index
      %842 = vector.load %arg8[%c0_676, %c0_677] : memref<16x16xf32, #tpu.memory_space<vmem>>, vector<16x16xf32>
      tpu.vector_store %arg8[%c0_676, %c0_677], %841 {strides = array<i32>} : memref<16x16xf32, #tpu.memory_space<vmem>>, vector<16x16xf32>,
    } else {
    }
    %c0_i32_92 = arith.constant 0 : i32
    %129 = arith.subi %c0_i32_92, %1 : i32
    %c1_i32_93 = arith.constant 1 : i32
    %130 = arith.subi %129, %c1_i32_93 : i32
    %c-1_i32 = arith.constant -1 : i32
    %131 = arith.cmpi eq, %130, %c-1_i32 : i32
    %cst_94 = arith.constant 0.000000e+00 : f32
    %132 = arith.select %131, %4, %cst_94 : f32
    %c0_i32_95 = arith.constant 0 : i32
    %133 = arith.subi %c0_i32_95, %1 : i32
    %c-1_i32_96 = arith.constant -1 : i32
    %134 = arith.cmpi eq, %133, %c-1_i32_96 : i32
    %cst_97 = arith.constant 0.000000e+00 : f32
    %135 = arith.select %134, %6, %cst_97 : f32
    %136 = arith.addf %132, %135 : f32
    %c-1_i32_98 = arith.constant -1 : i32
    %137 = arith.cmpi eq, %1, %c-1_i32_98 : i32
    %cst_99 = arith.constant 0.000000e+00 : f32
    %138 = arith.select %137, %6, %cst_99 : f32
    %139 = arith.addf %136, %138 : f32
    %c1_i32_100 = arith.constant 1 : i32
    %140 = arith.addi %1, %c1_i32_100 : i32
    %c-1_i32_101 = arith.constant -1 : i32
    %141 = arith.cmpi eq, %140, %c-1_i32_101 : i32
    %cst_102 = arith.constant 0.000000e+00 : f32
    %142 = arith.select %141, %4, %cst_102 : f32
    %143 = arith.addf %139, %142 : f32
    %c-1_i32_103 = arith.constant -1 : i32
    %144 = arith.cmpi eq, %1, %c-1_i32_103 : i32
    %cst_104 = arith.constant 0.000000e+00 : f32
    %145 = arith.select %144, %7, %cst_104 : f32
    %c1_i32_105 = arith.constant 1 : i32
    %146 = arith.addi %1, %c1_i32_105 : i32
    %c-1_i32_106 = arith.constant -1 : i32
    %147 = arith.cmpi eq, %146, %c-1_i32_106 : i32
    %cst_107 = arith.constant 0.000000e+00 : f32
    %148 = arith.select %147, %3, %cst_107 : f32
    %149 = arith.addf %145, %148 : f32
    %c0_i32_108 = arith.constant 0 : i32
    %150 = arith.subi %c0_i32_108, %1 : i32
    %c-1_i32_109 = arith.constant -1 : i32
    %151 = arith.cmpi eq, %150, %c-1_i32_109 : i32
    %cst_110 = arith.constant 0.000000e+00 : f32
    %152 = arith.select %151, %7, %cst_110 : f32
    %153 = arith.subf %149, %152 : f32
    %c0_i32_111 = arith.constant 0 : i32
    %154 = arith.subi %c0_i32_111, %1 : i32
    %c1_i32_112 = arith.constant 1 : i32
    %155 = arith.subi %154, %c1_i32_112 : i32
    %c-1_i32_113 = arith.constant -1 : i32
    %156 = arith.cmpi eq, %155, %c-1_i32_113 : i32
    %cst_114 = arith.constant 0.000000e+00 : f32
    %157 = arith.select %156, %3, %cst_114 : f32
    %158 = arith.subf %153, %157 : f32
    %cst_115 = arith.constant 0.000000e+00 : f32
    %159 = arith.cmpf one, %143, %cst_115 : f32
    %cst_116 = arith.constant 0.000000e+00 : f32
    %160 = arith.cmpf one, %158, %cst_116 : f32
    %161 = arith.ori %159, %160 : i1
    %162 = arith.extui %161 : i1 to i32
    %cst_117 = arith.constant 1.000000e+02 : f32
    %c0_i32_118 = arith.constant 0 : i32
    %163 = arith.cmpi ne, %162, %c0_i32_118 : i32
    scf.if %163 {
      %c0_666 = arith.constant 0 : index
      %c2_667 = arith.constant 2 : index
      %829 = vector.load %arg5[%c0_666, %c2_667] : memref<16x22xf32, #tpu.memory_space<vmem>>, vector<16x16xf32>
      %c0_668 = arith.constant 0 : index
      %c2_669 = arith.constant 2 : index
      %830 = vector.load %arg6[%c0_668, %c2_669] : memref<16x22xf32, #tpu.memory_space<vmem>>, vector<16x16xf32>
      %c0_670 = arith.constant 0 : index
      %c0_671 = arith.constant 0 : index
      %831 = vector.load %arg7[%c0_670, %c0_671] : memref<16x16xf32, #tpu.memory_space<vmem>>, vector<16x16xf32>
      %832 = arith.mulf %cst_117, %158 : f32
      %833 = vector.broadcast %832 : f32 to vector<16x16xf32>
      %834 = arith.mulf %833, %829 : vector<16x16xf32>
      %835 = arith.addf %831, %834 : vector<16x16xf32>
      %c0_672 = arith.constant 0 : index
      %c0_673 = arith.constant 0 : index
      %836 = vector.load %arg7[%c0_672, %c0_673] : memref<16x16xf32, #tpu.memory_space<vmem>>, vector<16x16xf32>
      tpu.vector_store %arg7[%c0_672, %c0_673], %835 {strides = array<i32>} : memref<16x16xf32, #tpu.memory_space<vmem>>, vector<16x16xf32>,
      %c0_674 = arith.constant 0 : index
      %c0_675 = arith.constant 0 : index
      %837 = vector.load %arg8[%c0_674, %c0_675] : memref<16x16xf32, #tpu.memory_space<vmem>>, vector<16x16xf32>
      %838 = arith.mulf %cst_117, %143 : f32
      %839 = vector.broadcast %838 : f32 to vector<16x16xf32>
      %840 = arith.mulf %839, %830 : vector<16x16xf32>
      %841 = arith.addf %837, %840 : vector<16x16xf32>
      %c0_676 = arith.constant 0 : index
      %c0_677 = arith.constant 0 : index
      %842 = vector.load %arg8[%c0_676, %c0_677] : memref<16x16xf32, #tpu.memory_space<vmem>>, vector<16x16xf32>
      tpu.vector_store %arg8[%c0_676, %c0_677], %841 {strides = array<i32>} : memref<16x16xf32, #tpu.memory_space<vmem>>, vector<16x16xf32>,
    } else {
    }
    %c0_i32_119 = arith.constant 0 : i32
    %164 = arith.subi %c0_i32_119, %1 : i32
    %c1_i32_120 = arith.constant 1 : i32
    %165 = arith.subi %164, %c1_i32_120 : i32
    %c1_i32_121 = arith.constant 1 : i32
    %166 = arith.cmpi eq, %165, %c1_i32_121 : i32
    %cst_122 = arith.constant 0.000000e+00 : f32
    %167 = arith.select %166, %4, %cst_122 : f32
    %c0_i32_123 = arith.constant 0 : i32
    %168 = arith.subi %c0_i32_123, %1 : i32
    %c1_i32_124 = arith.constant 1 : i32
    %169 = arith.cmpi eq, %168, %c1_i32_124 : i32
    %cst_125 = arith.constant 0.000000e+00 : f32
    %170 = arith.select %169, %6, %cst_125 : f32
    %171 = arith.addf %167, %170 : f32
    %c1_i32_126 = arith.constant 1 : i32
    %172 = arith.cmpi eq, %1, %c1_i32_126 : i32
    %cst_127 = arith.constant 0.000000e+00 : f32
    %173 = arith.select %172, %6, %cst_127 : f32
    %174 = arith.addf %171, %173 : f32
    %c1_i32_128 = arith.constant 1 : i32
    %175 = arith.addi %1, %c1_i32_128 : i32
    %c1_i32_129 = arith.constant 1 : i32
    %176 = arith.cmpi eq, %175, %c1_i32_129 : i32
    %cst_130 = arith.constant 0.000000e+00 : f32
    %177 = arith.select %176, %4, %cst_130 : f32
    %178 = arith.addf %174, %177 : f32
    %c1_i32_131 = arith.constant 1 : i32
    %179 = arith.cmpi eq, %1, %c1_i32_131 : i32
    %cst_132 = arith.constant 0.000000e+00 : f32
    %180 = arith.select %179, %7, %cst_132 : f32
    %c1_i32_133 = arith.constant 1 : i32
    %181 = arith.addi %1, %c1_i32_133 : i32
    %c1_i32_134 = arith.constant 1 : i32
    %182 = arith.cmpi eq, %181, %c1_i32_134 : i32
    %cst_135 = arith.constant 0.000000e+00 : f32
    %183 = arith.select %182, %3, %cst_135 : f32
    %184 = arith.addf %180, %183 : f32
    %c0_i32_136 = arith.constant 0 : i32
    %185 = arith.subi %c0_i32_136, %1 : i32
    %c1_i32_137 = arith.constant 1 : i32
    %186 = arith.cmpi eq, %185, %c1_i32_137 : i32
    %cst_138 = arith.constant 0.000000e+00 : f32
    %187 = arith.select %186, %7, %cst_138 : f32
    %188 = arith.subf %184, %187 : f32
    %c0_i32_139 = arith.constant 0 : i32
    %189 = arith.subi %c0_i32_139, %1 : i32
    %c1_i32_140 = arith.constant 1 : i32
    %190 = arith.subi %189, %c1_i32_140 : i32
    %c1_i32_141 = arith.constant 1 : i32
    %191 = arith.cmpi eq, %190, %c1_i32_141 : i32
    %cst_142 = arith.constant 0.000000e+00 : f32
    %192 = arith.select %191, %3, %cst_142 : f32
    %193 = arith.subf %188, %192 : f32
    %cst_143 = arith.constant 0.000000e+00 : f32
    %194 = arith.cmpf one, %178, %cst_143 : f32
    %cst_144 = arith.constant 0.000000e+00 : f32
    %195 = arith.cmpf one, %193, %cst_144 : f32
    %196 = arith.ori %194, %195 : i1
    %197 = arith.extui %196 : i1 to i32
    %cst_145 = arith.constant 1.000000e+02 : f32
    %c0_i32_146 = arith.constant 0 : i32
    %198 = arith.cmpi ne, %197, %c0_i32_146 : i32
    scf.if %198 {
      %c0_666 = arith.constant 0 : index
      %c4 = arith.constant 4 : index
      %829 = vector.load %arg5[%c0_666, %c4] : memref<16x22xf32, #tpu.memory_space<vmem>>, vector<16x16xf32>
      %c0_667 = arith.constant 0 : index
      %c4_668 = arith.constant 4 : index
      %830 = vector.load %arg6[%c0_667, %c4_668] : memref<16x22xf32, #tpu.memory_space<vmem>>, vector<16x16xf32>
      %c0_669 = arith.constant 0 : index
      %c0_670 = arith.constant 0 : index
      %831 = vector.load %arg7[%c0_669, %c0_670] : memref<16x16xf32, #tpu.memory_space<vmem>>, vector<16x16xf32>
      %832 = arith.mulf %cst_145, %193 : f32
      %833 = vector.broadcast %832 : f32 to vector<16x16xf32>
      %834 = arith.mulf %833, %829 : vector<16x16xf32>
      %835 = arith.addf %831, %834 : vector<16x16xf32>
      %c0_671 = arith.constant 0 : index
      %c0_672 = arith.constant 0 : index
      %836 = vector.load %arg7[%c0_671, %c0_672] : memref<16x16xf32, #tpu.memory_space<vmem>>, vector<16x16xf32>
      tpu.vector_store %arg7[%c0_671, %c0_672], %835 {strides = array<i32>} : memref<16x16xf32, #tpu.memory_space<vmem>>, vector<16x16xf32>,
      %c0_673 = arith.constant 0 : index
      %c0_674 = arith.constant 0 : index
      %837 = vector.load %arg8[%c0_673, %c0_674] : memref<16x16xf32, #tpu.memory_space<vmem>>, vector<16x16xf32>
      %838 = arith.mulf %cst_145, %178 : f32
      %839 = vector.broadcast %838 : f32 to vector<16x16xf32>
      %840 = arith.mulf %839, %830 : vector<16x16xf32>
      %841 = arith.addf %837, %840 : vector<16x16xf32>
      %c0_675 = arith.constant 0 : index
      %c0_676 = arith.constant 0 : index
      %842 = vector.load %arg8[%c0_675, %c0_676] : memref<16x16xf32, #tpu.memory_space<vmem>>, vector<16x16xf32>
      tpu.vector_store %arg8[%c0_675, %c0_676], %841 {strides = array<i32>} : memref<16x16xf32, #tpu.memory_space<vmem>>, vector<16x16xf32>,
    } else {
    }
    %c0_i32_147 = arith.constant 0 : i32
    %199 = arith.subi %c0_i32_147, %1 : i32
    %c1_i32_148 = arith.constant 1 : i32
    %200 = arith.subi %199, %c1_i32_148 : i32
    %c2_i32 = arith.constant 2 : i32
    %201 = arith.cmpi eq, %200, %c2_i32 : i32
    %cst_149 = arith.constant 0.000000e+00 : f32
    %202 = arith.select %201, %4, %cst_149 : f32
    %c0_i32_150 = arith.constant 0 : i32
    %203 = arith.subi %c0_i32_150, %1 : i32
    %c2_i32_151 = arith.constant 2 : i32
    %204 = arith.cmpi eq, %203, %c2_i32_151 : i32
    %cst_152 = arith.constant 0.000000e+00 : f32
    %205 = arith.select %204, %6, %cst_152 : f32
    %206 = arith.addf %202, %205 : f32
    %c2_i32_153 = arith.constant 2 : i32
    %207 = arith.cmpi eq, %1, %c2_i32_153 : i32
    %cst_154 = arith.constant 0.000000e+00 : f32
    %208 = arith.select %207, %6, %cst_154 : f32
    %209 = arith.addf %206, %208 : f32
    %c1_i32_155 = arith.constant 1 : i32
    %210 = arith.addi %1, %c1_i32_155 : i32
    %c2_i32_156 = arith.constant 2 : i32
    %211 = arith.cmpi eq, %210, %c2_i32_156 : i32
    %cst_157 = arith.constant 0.000000e+00 : f32
    %212 = arith.select %211, %4, %cst_157 : f32
    %213 = arith.addf %209, %212 : f32
    %c2_i32_158 = arith.constant 2 : i32
    %214 = arith.cmpi eq, %1, %c2_i32_158 : i32
    %cst_159 = arith.constant 0.000000e+00 : f32
    %215 = arith.select %214, %7, %cst_159 : f32
    %c1_i32_160 = arith.constant 1 : i32
    %216 = arith.addi %1, %c1_i32_160 : i32
    %c2_i32_161 = arith.constant 2 : i32
    %217 = arith.cmpi eq, %216, %c2_i32_161 : i32
    %cst_162 = arith.constant 0.000000e+00 : f32
    %218 = arith.select %217, %3, %cst_162 : f32
    %219 = arith.addf %215, %218 : f32
    %c0_i32_163 = arith.constant 0 : i32
    %220 = arith.subi %c0_i32_163, %1 : i32
    %c2_i32_164 = arith.constant 2 : i32
    %221 = arith.cmpi eq, %220, %c2_i32_164 : i32
    %cst_165 = arith.constant 0.000000e+00 : f32
    %222 = arith.select %221, %7, %cst_165 : f32
    %223 = arith.subf %219, %222 : f32
    %c0_i32_166 = arith.constant 0 : i32
    %224 = arith.subi %c0_i32_166, %1 : i32
    %c1_i32_167 = arith.constant 1 : i32
    %225 = arith.subi %224, %c1_i32_167 : i32
    %c2_i32_168 = arith.constant 2 : i32
    %226 = arith.cmpi eq, %225, %c2_i32_168 : i32
    %cst_169 = arith.constant 0.000000e+00 : f32
    %227 = arith.select %226, %3, %cst_169 : f32
    %228 = arith.subf %223, %227 : f32
    %cst_170 = arith.constant 0.000000e+00 : f32
    %229 = arith.cmpf one, %213, %cst_170 : f32
    %cst_171 = arith.constant 0.000000e+00 : f32
    %230 = arith.cmpf one, %228, %cst_171 : f32
    %231 = arith.ori %229, %230 : i1
    %232 = arith.extui %231 : i1 to i32
    %cst_172 = arith.constant 1.000000e+02 : f32
    %c0_i32_173 = arith.constant 0 : i32
    %233 = arith.cmpi ne, %232, %c0_i32_173 : i32
    scf.if %233 {
      %c0_666 = arith.constant 0 : index
      %c5 = arith.constant 5 : index
      %829 = vector.load %arg5[%c0_666, %c5] : memref<16x22xf32, #tpu.memory_space<vmem>>, vector<16x16xf32>
      %c0_667 = arith.constant 0 : index
      %c5_668 = arith.constant 5 : index
      %830 = vector.load %arg6[%c0_667, %c5_668] : memref<16x22xf32, #tpu.memory_space<vmem>>, vector<16x16xf32>
      %c0_669 = arith.constant 0 : index
      %c0_670 = arith.constant 0 : index
      %831 = vector.load %arg7[%c0_669, %c0_670] : memref<16x16xf32, #tpu.memory_space<vmem>>, vector<16x16xf32>
      %832 = arith.mulf %cst_172, %228 : f32
      %833 = vector.broadcast %832 : f32 to vector<16x16xf32>
      %834 = arith.mulf %833, %829 : vector<16x16xf32>
      %835 = arith.addf %831, %834 : vector<16x16xf32>
      %c0_671 = arith.constant 0 : index
      %c0_672 = arith.constant 0 : index
      %836 = vector.load %arg7[%c0_671, %c0_672] : memref<16x16xf32, #tpu.memory_space<vmem>>, vector<16x16xf32>
      tpu.vector_store %arg7[%c0_671, %c0_672], %835 {strides = array<i32>} : memref<16x16xf32, #tpu.memory_space<vmem>>, vector<16x16xf32>,
      %c0_673 = arith.constant 0 : index
      %c0_674 = arith.constant 0 : index
      %837 = vector.load %arg8[%c0_673, %c0_674] : memref<16x16xf32, #tpu.memory_space<vmem>>, vector<16x16xf32>
      %838 = arith.mulf %cst_172, %213 : f32
      %839 = vector.broadcast %838 : f32 to vector<16x16xf32>
      %840 = arith.mulf %839, %830 : vector<16x16xf32>
      %841 = arith.addf %837, %840 : vector<16x16xf32>
      %c0_675 = arith.constant 0 : index
      %c0_676 = arith.constant 0 : index
      %842 = vector.load %arg8[%c0_675, %c0_676] : memref<16x16xf32, #tpu.memory_space<vmem>>, vector<16x16xf32>
      tpu.vector_store %arg8[%c0_675, %c0_676], %841 {strides = array<i32>} : memref<16x16xf32, #tpu.memory_space<vmem>>, vector<16x16xf32>,
    } else {
    }
    %c0_i32_174 = arith.constant 0 : i32
    %234 = arith.subi %c0_i32_174, %1 : i32
    %c1_i32_175 = arith.constant 1 : i32
    %235 = arith.subi %234, %c1_i32_175 : i32
    %c3_i32_176 = arith.constant 3 : i32
    %236 = arith.cmpi eq, %235, %c3_i32_176 : i32
    %cst_177 = arith.constant 0.000000e+00 : f32
    %237 = arith.select %236, %4, %cst_177 : f32
    %c0_i32_178 = arith.constant 0 : i32
    %238 = arith.subi %c0_i32_178, %1 : i32
    %c3_i32_179 = arith.constant 3 : i32
    %239 = arith.cmpi eq, %238, %c3_i32_179 : i32
    %cst_180 = arith.constant 0.000000e+00 : f32
    %240 = arith.select %239, %6, %cst_180 : f32
    %241 = arith.addf %237, %240 : f32
    %c3_i32_181 = arith.constant 3 : i32
    %242 = arith.cmpi eq, %1, %c3_i32_181 : i32
    %cst_182 = arith.constant 0.000000e+00 : f32
    %243 = arith.select %242, %6, %cst_182 : f32
    %244 = arith.addf %241, %243 : f32
    %c1_i32_183 = arith.constant 1 : i32
    %245 = arith.addi %1, %c1_i32_183 : i32
    %c3_i32_184 = arith.constant 3 : i32
    %246 = arith.cmpi eq, %245, %c3_i32_184 : i32
    %cst_185 = arith.constant 0.000000e+00 : f32
    %247 = arith.select %246, %4, %cst_185 : f32
    %248 = arith.addf %244, %247 : f32
    %c3_i32_186 = arith.constant 3 : i32
    %249 = arith.cmpi eq, %1, %c3_i32_186 : i32
    %cst_187 = arith.constant 0.000000e+00 : f32
    %250 = arith.select %249, %7, %cst_187 : f32
    %c1_i32_188 = arith.constant 1 : i32
    %251 = arith.addi %1, %c1_i32_188 : i32
    %c3_i32_189 = arith.constant 3 : i32
    %252 = arith.cmpi eq, %251, %c3_i32_189 : i32
    %cst_190 = arith.constant 0.000000e+00 : f32
    %253 = arith.select %252, %3, %cst_190 : f32
    %254 = arith.addf %250, %253 : f32
    %c0_i32_191 = arith.constant 0 : i32
    %255 = arith.subi %c0_i32_191, %1 : i32
    %c3_i32_192 = arith.constant 3 : i32
    %256 = arith.cmpi eq, %255, %c3_i32_192 : i32
    %cst_193 = arith.constant 0.000000e+00 : f32
    %257 = arith.select %256, %7, %cst_193 : f32
    %258 = arith.subf %254, %257 : f32
    %c0_i32_194 = arith.constant 0 : i32
    %259 = arith.subi %c0_i32_194, %1 : i32
    %c1_i32_195 = arith.constant 1 : i32
    %260 = arith.subi %259, %c1_i32_195 : i32
    %c3_i32_196 = arith.constant 3 : i32
    %261 = arith.cmpi eq, %260, %c3_i32_196 : i32
    %cst_197 = arith.constant 0.000000e+00 : f32
    %262 = arith.select %261, %3, %cst_197 : f32
    %263 = arith.subf %258, %262 : f32
    %cst_198 = arith.constant 0.000000e+00 : f32
    %264 = arith.cmpf one, %248, %cst_198 : f32
    %cst_199 = arith.constant 0.000000e+00 : f32
    %265 = arith.cmpf one, %263, %cst_199 : f32
    %266 = arith.ori %264, %265 : i1
    %267 = arith.extui %266 : i1 to i32
    %cst_200 = arith.constant 1.000000e+02 : f32
    %c0_i32_201 = arith.constant 0 : i32
    %268 = arith.cmpi ne, %267, %c0_i32_201 : i32
    scf.if %268 {
      %c0_666 = arith.constant 0 : index
      %c6 = arith.constant 6 : index
      %829 = vector.load %arg5[%c0_666, %c6] : memref<16x22xf32, #tpu.memory_space<vmem>>, vector<16x16xf32>
      %c0_667 = arith.constant 0 : index
      %c6_668 = arith.constant 6 : index
      %830 = vector.load %arg6[%c0_667, %c6_668] : memref<16x22xf32, #tpu.memory_space<vmem>>, vector<16x16xf32>
      %c0_669 = arith.constant 0 : index
      %c0_670 = arith.constant 0 : index
      %831 = vector.load %arg7[%c0_669, %c0_670] : memref<16x16xf32, #tpu.memory_space<vmem>>, vector<16x16xf32>
      %832 = arith.mulf %cst_200, %263 : f32
      %833 = vector.broadcast %832 : f32 to vector<16x16xf32>
      %834 = arith.mulf %833, %829 : vector<16x16xf32>
      %835 = arith.addf %831, %834 : vector<16x16xf32>
      %c0_671 = arith.constant 0 : index
      %c0_672 = arith.constant 0 : index
      %836 = vector.load %arg7[%c0_671, %c0_672] : memref<16x16xf32, #tpu.memory_space<vmem>>, vector<16x16xf32>
      tpu.vector_store %arg7[%c0_671, %c0_672], %835 {strides = array<i32>} : memref<16x16xf32, #tpu.memory_space<vmem>>, vector<16x16xf32>,
      %c0_673 = arith.constant 0 : index
      %c0_674 = arith.constant 0 : index
      %837 = vector.load %arg8[%c0_673, %c0_674] : memref<16x16xf32, #tpu.memory_space<vmem>>, vector<16x16xf32>
      %838 = arith.mulf %cst_200, %248 : f32
      %839 = vector.broadcast %838 : f32 to vector<16x16xf32>
      %840 = arith.mulf %839, %830 : vector<16x16xf32>
      %841 = arith.addf %837, %840 : vector<16x16xf32>
      %c0_675 = arith.constant 0 : index
      %c0_676 = arith.constant 0 : index
      %842 = vector.load %arg8[%c0_675, %c0_676] : memref<16x16xf32, #tpu.memory_space<vmem>>, vector<16x16xf32>
      tpu.vector_store %arg8[%c0_675, %c0_676], %841 {strides = array<i32>} : memref<16x16xf32, #tpu.memory_space<vmem>>, vector<16x16xf32>,
    } else {
    }
    %c0_202 = arith.constant 0 : index
    %c0_203 = arith.constant 0 : index
    %269 = vector.load %arg7[%c0_202, %c0_203] : memref<16x16xf32, #tpu.memory_space<vmem>>, vector<16x16xf32>
    %c0_204 = arith.constant 0 : index
    %c0_205 = arith.constant 0 : index
    %270 = vector.load %arg8[%c0_204, %c0_205] : memref<16x16xf32, #tpu.memory_space<vmem>>, vector<16x16xf32>
    %271 = arith.mulf %269, %269 : vector<16x16xf32>
    %c0_206 = arith.constant 0 : index
    %c0_207 = arith.constant 0 : index
    %c0_208 = arith.constant 0 : index
    %c0_209 = arith.constant 0 : index
    %272 = vector.load %arg4[%c0_206, %c0_207, %c0_208, %c0_209] : memref<1x3x16x16xf32, #tpu.memory_space<vmem>>, vector<1x1x16x16xf32>
    %273 = vector.shape_cast %272 : vector<1x1x16x16xf32> to vector<16x16xf32>
    %274 = vector.shape_cast %271 : vector<16x16xf32> to vector<1x1x16x16xf32>
    tpu.vector_store %arg4[%c0_206, %c0_207, %c0_208, %c0_209], %274 {strides = array<i32>} : memref<1x3x16x16xf32, #tpu.memory_space<vmem>>, vector<1x1x16x16xf32>,
    %275 = arith.mulf %270, %270 : vector<16x16xf32>
    %c0_210 = arith.constant 0 : index
    %c1 = arith.constant 1 : index
    %c0_211 = arith.constant 0 : index
    %c0_212 = arith.constant 0 : index
    %276 = vector.load %arg4[%c0_210, %c1, %c0_211, %c0_212] : memref<1x3x16x16xf32, #tpu.memory_space<vmem>>, vector<1x1x16x16xf32>
    %277 = vector.shape_cast %276 : vector<1x1x16x16xf32> to vector<16x16xf32>
    %278 = vector.shape_cast %275 : vector<16x16xf32> to vector<1x1x16x16xf32>
    tpu.vector_store %arg4[%c0_210, %c1, %c0_211, %c0_212], %278 {strides = array<i32>} : memref<1x3x16x16xf32, #tpu.memory_space<vmem>>, vector<1x1x16x16xf32>,
    %279 = arith.mulf %269, %270 : vector<16x16xf32>
    %c0_213 = arith.constant 0 : index
    %c2 = arith.constant 2 : index
    %c0_214 = arith.constant 0 : index
    %c0_215 = arith.constant 0 : index
    %280 = vector.load %arg4[%c0_213, %c2, %c0_214, %c0_215] : memref<1x3x16x16xf32, #tpu.memory_space<vmem>>, vector<1x1x16x16xf32>
    %281 = vector.shape_cast %280 : vector<1x1x16x16xf32> to vector<16x16xf32>
    %282 = vector.shape_cast %279 : vector<16x16xf32> to vector<1x1x16x16xf32>
    tpu.vector_store %arg4[%c0_213, %c2, %c0_214, %c0_215], %282 {strides = array<i32>} : memref<1x3x16x16xf32, #tpu.memory_space<vmem>>, vector<1x1x16x16xf32>,
    %c0_216 = arith.constant 0 : index
    %c1_217 = arith.constant 1 : index
    %283 = arith.index_cast %9 : i32 to index
    %c0_218 = arith.constant 0 : index
    %284 = vector.load %arg3[%c0_216, %c1_217, %283, %c0_218] : memref<1x3x22x22xf32, #tpu.memory_space<vmem>>, vector<1x1x16x22xf32>
    %285 = vector.shape_cast %284 : vector<1x1x16x22xf32> to vector<16x22xf32>
    %c0_219 = arith.constant 0 : index
    %c1_220 = arith.constant 1 : index
    %286 = arith.index_cast %10 : i32 to index
    %c0_221 = arith.constant 0 : index
    %287 = vector.load %arg3[%c0_219, %c1_220, %286, %c0_221] : memref<1x3x22x22xf32, #tpu.memory_space<vmem>>, vector<1x1x16x22xf32>
    %288 = vector.shape_cast %287 : vector<1x1x16x22xf32> to vector<16x22xf32>
    %c0_222 = arith.constant 0 : index
    %c1_223 = arith.constant 1 : index
    %c3_224 = arith.constant 3 : index
    %c0_225 = arith.constant 0 : index
    %289 = vector.load %arg3[%c0_222, %c1_223, %c3_224, %c0_225] : memref<1x3x22x22xf32, #tpu.memory_space<vmem>>, vector<1x1x16x22xf32>
    %290 = vector.shape_cast %289 : vector<1x1x16x22xf32> to vector<16x22xf32>
    %c0_226 = arith.constant 0 : index
    %c1_227 = arith.constant 1 : index
    %291 = arith.index_cast %11 : i32 to index
    %c0_228 = arith.constant 0 : index
    %292 = vector.load %arg3[%c0_226, %c1_227, %291, %c0_228] : memref<1x3x22x22xf32, #tpu.memory_space<vmem>>, vector<1x1x16x22xf32>
    %293 = vector.shape_cast %292 : vector<1x1x16x22xf32> to vector<16x22xf32>
    %c0_229 = arith.constant 0 : index
    %c1_230 = arith.constant 1 : index
    %294 = arith.index_cast %13 : i32 to index
    %c0_231 = arith.constant 0 : index
    %295 = vector.load %arg3[%c0_229, %c1_230, %294, %c0_231] : memref<1x3x22x22xf32, #tpu.memory_space<vmem>>, vector<1x1x16x22xf32>
    %296 = vector.shape_cast %295 : vector<1x1x16x22xf32> to vector<16x22xf32>
    %297 = arith.addf %285, %296 : vector<16x22xf32>
    %298 = vector.broadcast %4 : f32 to vector<16x22xf32>
    %299 = arith.mulf %298, %297 : vector<16x22xf32>
    %300 = arith.addf %288, %293 : vector<16x22xf32>
    %301 = vector.broadcast %6 : f32 to vector<16x22xf32>
    %302 = arith.mulf %301, %300 : vector<16x22xf32>
    %303 = arith.addf %299, %302 : vector<16x22xf32>
    %cst_232 = arith.constant 5.000000e-01 : f32
    %304 = vector.broadcast %cst_232 : f32 to vector<16x22xf32>
    %305 = arith.mulf %304, %290 : vector<16x22xf32>
    %306 = arith.addf %303, %305 : vector<16x22xf32>
    %c0_233 = arith.constant 0 : index
    %c0_234 = arith.constant 0 : index
    %307 = vector.load %arg5[%c0_233, %c0_234] : memref<16x22xf32, #tpu.memory_space<vmem>>, vector<16x22xf32>
    tpu.vector_store %arg5[%c0_233, %c0_234], %306 {strides = array<i32>} : memref<16x22xf32, #tpu.memory_space<vmem>>, vector<16x22xf32>,
    %308 = arith.subf %296, %285 : vector<16x22xf32>
    %309 = vector.broadcast %3 : f32 to vector<16x22xf32>
    %310 = arith.mulf %309, %308 : vector<16x22xf32>
    %311 = arith.subf %293, %288 : vector<16x22xf32>
    %312 = vector.broadcast %7 : f32 to vector<16x22xf32>
    %313 = arith.mulf %312, %311 : vector<16x22xf32>
    %314 = arith.addf %310, %313 : vector<16x22xf32>
    %c0_235 = arith.constant 0 : index
    %c0_236 = arith.constant 0 : index
    %315 = vector.load %arg6[%c0_235, %c0_236] : memref<16x22xf32, #tpu.memory_space<vmem>>, vector<16x22xf32>
    tpu.vector_store %arg6[%c0_235, %c0_236], %314 {strides = array<i32>} : memref<16x22xf32, #tpu.memory_space<vmem>>, vector<16x22xf32>,
    %cst_237 = arith.constant 0.000000e+00 : f32
    %316 = vector.broadcast %cst_237 : f32 to vector<16x16xf32>
    %c0_238 = arith.constant 0 : index
    %c0_239 = arith.constant 0 : index
    %317 = vector.load %arg7[%c0_238, %c0_239] : memref<16x16xf32, #tpu.memory_space<vmem>>, vector<16x16xf32>
    tpu.vector_store %arg7[%c0_238, %c0_239], %316 {strides = array<i32>} : memref<16x16xf32, #tpu.memory_space<vmem>>, vector<16x16xf32>,
    %cst_240 = arith.constant 1.000000e+00 : f32
    %318 = arith.mulf %cst_240, %18 : f32
    %c0_241 = arith.constant 0 : index
    %c3_242 = arith.constant 3 : index
    %319 = vector.load %arg6[%c0_241, %c3_242] : memref<16x22xf32, #tpu.memory_space<vmem>>, vector<16x16xf32>
    %320 = vector.broadcast %318 : f32 to vector<16x16xf32>
    %321 = arith.mulf %320, %319 : vector<16x16xf32>
    %c0_243 = arith.constant 0 : index
    %c0_244 = arith.constant 0 : index
    %322 = vector.load %arg8[%c0_243, %c0_244] : memref<16x16xf32, #tpu.memory_space<vmem>>, vector<16x16xf32>
    tpu.vector_store %arg8[%c0_243, %c0_244], %321 {strides = array<i32>} : memref<16x16xf32, #tpu.memory_space<vmem>>, vector<16x16xf32>,
    %c0_i32_245 = arith.constant 0 : i32
    %323 = arith.subi %c0_i32_245, %1 : i32
    %c1_i32_246 = arith.constant 1 : i32
    %324 = arith.subi %323, %c1_i32_246 : i32
    %c-3_i32_247 = arith.constant -3 : i32
    %325 = arith.cmpi eq, %324, %c-3_i32_247 : i32
    %cst_248 = arith.constant 0.000000e+00 : f32
    %326 = arith.select %325, %4, %cst_248 : f32
    %c0_i32_249 = arith.constant 0 : i32
    %327 = arith.subi %c0_i32_249, %1 : i32
    %c-3_i32_250 = arith.constant -3 : i32
    %328 = arith.cmpi eq, %327, %c-3_i32_250 : i32
    %cst_251 = arith.constant 0.000000e+00 : f32
    %329 = arith.select %328, %6, %cst_251 : f32
    %330 = arith.addf %326, %329 : f32
    %c-3_i32_252 = arith.constant -3 : i32
    %331 = arith.cmpi eq, %1, %c-3_i32_252 : i32
    %cst_253 = arith.constant 0.000000e+00 : f32
    %332 = arith.select %331, %6, %cst_253 : f32
    %333 = arith.addf %330, %332 : f32
    %c1_i32_254 = arith.constant 1 : i32
    %334 = arith.addi %1, %c1_i32_254 : i32
    %c-3_i32_255 = arith.constant -3 : i32
    %335 = arith.cmpi eq, %334, %c-3_i32_255 : i32
    %cst_256 = arith.constant 0.000000e+00 : f32
    %336 = arith.select %335, %4, %cst_256 : f32
    %337 = arith.addf %333, %336 : f32
    %c-3_i32_257 = arith.constant -3 : i32
    %338 = arith.cmpi eq, %1, %c-3_i32_257 : i32
    %cst_258 = arith.constant 0.000000e+00 : f32
    %339 = arith.select %338, %7, %cst_258 : f32
    %c1_i32_259 = arith.constant 1 : i32
    %340 = arith.addi %1, %c1_i32_259 : i32
    %c-3_i32_260 = arith.constant -3 : i32
    %341 = arith.cmpi eq, %340, %c-3_i32_260 : i32
    %cst_261 = arith.constant 0.000000e+00 : f32
    %342 = arith.select %341, %3, %cst_261 : f32
    %343 = arith.addf %339, %342 : f32
    %c0_i32_262 = arith.constant 0 : i32
    %344 = arith.subi %c0_i32_262, %1 : i32
    %c-3_i32_263 = arith.constant -3 : i32
    %345 = arith.cmpi eq, %344, %c-3_i32_263 : i32
    %cst_264 = arith.constant 0.000000e+00 : f32
    %346 = arith.select %345, %7, %cst_264 : f32
    %347 = arith.subf %343, %346 : f32
    %c0_i32_265 = arith.constant 0 : i32
    %348 = arith.subi %c0_i32_265, %1 : i32
    %c1_i32_266 = arith.constant 1 : i32
    %349 = arith.subi %348, %c1_i32_266 : i32
    %c-3_i32_267 = arith.constant -3 : i32
    %350 = arith.cmpi eq, %349, %c-3_i32_267 : i32
    %cst_268 = arith.constant 0.000000e+00 : f32
    %351 = arith.select %350, %3, %cst_268 : f32
    %352 = arith.subf %347, %351 : f32
    %cst_269 = arith.constant 0.000000e+00 : f32
    %353 = arith.cmpf one, %337, %cst_269 : f32
    %cst_270 = arith.constant 0.000000e+00 : f32
    %354 = arith.cmpf one, %352, %cst_270 : f32
    %355 = arith.ori %353, %354 : i1
    %356 = arith.extui %355 : i1 to i32
    %cst_271 = arith.constant 1.000000e+00 : f32
    %c0_i32_272 = arith.constant 0 : i32
    %357 = arith.cmpi ne, %356, %c0_i32_272 : i32
    scf.if %357 {
      %c0_666 = arith.constant 0 : index
      %c0_667 = arith.constant 0 : index
      %829 = vector.load %arg5[%c0_666, %c0_667] : memref<16x22xf32, #tpu.memory_space<vmem>>, vector<16x16xf32>
      %c0_668 = arith.constant 0 : index
      %c0_669 = arith.constant 0 : index
      %830 = vector.load %arg6[%c0_668, %c0_669] : memref<16x22xf32, #tpu.memory_space<vmem>>, vector<16x16xf32>
      %c0_670 = arith.constant 0 : index
      %c0_671 = arith.constant 0 : index
      %831 = vector.load %arg7[%c0_670, %c0_671] : memref<16x16xf32, #tpu.memory_space<vmem>>, vector<16x16xf32>
      %832 = arith.mulf %cst_271, %352 : f32
      %833 = vector.broadcast %832 : f32 to vector<16x16xf32>
      %834 = arith.mulf %833, %829 : vector<16x16xf32>
      %835 = arith.addf %831, %834 : vector<16x16xf32>
      %c0_672 = arith.constant 0 : index
      %c0_673 = arith.constant 0 : index
      %836 = vector.load %arg7[%c0_672, %c0_673] : memref<16x16xf32, #tpu.memory_space<vmem>>, vector<16x16xf32>
      tpu.vector_store %arg7[%c0_672, %c0_673], %835 {strides = array<i32>} : memref<16x16xf32, #tpu.memory_space<vmem>>, vector<16x16xf32>,
      %c0_674 = arith.constant 0 : index
      %c0_675 = arith.constant 0 : index
      %837 = vector.load %arg8[%c0_674, %c0_675] : memref<16x16xf32, #tpu.memory_space<vmem>>, vector<16x16xf32>
      %838 = arith.mulf %cst_271, %337 : f32
      %839 = vector.broadcast %838 : f32 to vector<16x16xf32>
      %840 = arith.mulf %839, %830 : vector<16x16xf32>
      %841 = arith.addf %837, %840 : vector<16x16xf32>
      %c0_676 = arith.constant 0 : index
      %c0_677 = arith.constant 0 : index
      %842 = vector.load %arg8[%c0_676, %c0_677] : memref<16x16xf32, #tpu.memory_space<vmem>>, vector<16x16xf32>
      tpu.vector_store %arg8[%c0_676, %c0_677], %841 {strides = array<i32>} : memref<16x16xf32, #tpu.memory_space<vmem>>, vector<16x16xf32>,
    } else {
    }
    %c0_i32_273 = arith.constant 0 : i32
    %358 = arith.subi %c0_i32_273, %1 : i32
    %c1_i32_274 = arith.constant 1 : i32
    %359 = arith.subi %358, %c1_i32_274 : i32
    %c-2_i32_275 = arith.constant -2 : i32
    %360 = arith.cmpi eq, %359, %c-2_i32_275 : i32
    %cst_276 = arith.constant 0.000000e+00 : f32
    %361 = arith.select %360, %4, %cst_276 : f32
    %c0_i32_277 = arith.constant 0 : i32
    %362 = arith.subi %c0_i32_277, %1 : i32
    %c-2_i32_278 = arith.constant -2 : i32
    %363 = arith.cmpi eq, %362, %c-2_i32_278 : i32
    %cst_279 = arith.constant 0.000000e+00 : f32
    %364 = arith.select %363, %6, %cst_279 : f32
    %365 = arith.addf %361, %364 : f32
    %c-2_i32_280 = arith.constant -2 : i32
    %366 = arith.cmpi eq, %1, %c-2_i32_280 : i32
    %cst_281 = arith.constant 0.000000e+00 : f32
    %367 = arith.select %366, %6, %cst_281 : f32
    %368 = arith.addf %365, %367 : f32
    %c1_i32_282 = arith.constant 1 : i32
    %369 = arith.addi %1, %c1_i32_282 : i32
    %c-2_i32_283 = arith.constant -2 : i32
    %370 = arith.cmpi eq, %369, %c-2_i32_283 : i32
    %cst_284 = arith.constant 0.000000e+00 : f32
    %371 = arith.select %370, %4, %cst_284 : f32
    %372 = arith.addf %368, %371 : f32
    %c-2_i32_285 = arith.constant -2 : i32
    %373 = arith.cmpi eq, %1, %c-2_i32_285 : i32
    %cst_286 = arith.constant 0.000000e+00 : f32
    %374 = arith.select %373, %7, %cst_286 : f32
    %c1_i32_287 = arith.constant 1 : i32
    %375 = arith.addi %1, %c1_i32_287 : i32
    %c-2_i32_288 = arith.constant -2 : i32
    %376 = arith.cmpi eq, %375, %c-2_i32_288 : i32
    %cst_289 = arith.constant 0.000000e+00 : f32
    %377 = arith.select %376, %3, %cst_289 : f32
    %378 = arith.addf %374, %377 : f32
    %c0_i32_290 = arith.constant 0 : i32
    %379 = arith.subi %c0_i32_290, %1 : i32
    %c-2_i32_291 = arith.constant -2 : i32
    %380 = arith.cmpi eq, %379, %c-2_i32_291 : i32
    %cst_292 = arith.constant 0.000000e+00 : f32
    %381 = arith.select %380, %7, %cst_292 : f32
    %382 = arith.subf %378, %381 : f32
    %c0_i32_293 = arith.constant 0 : i32
    %383 = arith.subi %c0_i32_293, %1 : i32
    %c1_i32_294 = arith.constant 1 : i32
    %384 = arith.subi %383, %c1_i32_294 : i32
    %c-2_i32_295 = arith.constant -2 : i32
    %385 = arith.cmpi eq, %384, %c-2_i32_295 : i32
    %cst_296 = arith.constant 0.000000e+00 : f32
    %386 = arith.select %385, %3, %cst_296 : f32
    %387 = arith.subf %382, %386 : f32
    %cst_297 = arith.constant 0.000000e+00 : f32
    %388 = arith.cmpf one, %372, %cst_297 : f32
    %cst_298 = arith.constant 0.000000e+00 : f32
    %389 = arith.cmpf one, %387, %cst_298 : f32
    %390 = arith.ori %388, %389 : i1
    %391 = arith.extui %390 : i1 to i32
    %cst_299 = arith.constant 1.000000e+00 : f32
    %c0_i32_300 = arith.constant 0 : i32
    %392 = arith.cmpi ne, %391, %c0_i32_300 : i32
    scf.if %392 {
      %c0_666 = arith.constant 0 : index
      %c1_667 = arith.constant 1 : index
      %829 = vector.load %arg5[%c0_666, %c1_667] : memref<16x22xf32, #tpu.memory_space<vmem>>, vector<16x16xf32>
      %c0_668 = arith.constant 0 : index
      %c1_669 = arith.constant 1 : index
      %830 = vector.load %arg6[%c0_668, %c1_669] : memref<16x22xf32, #tpu.memory_space<vmem>>, vector<16x16xf32>
      %c0_670 = arith.constant 0 : index
      %c0_671 = arith.constant 0 : index
      %831 = vector.load %arg7[%c0_670, %c0_671] : memref<16x16xf32, #tpu.memory_space<vmem>>, vector<16x16xf32>
      %832 = arith.mulf %cst_299, %387 : f32
      %833 = vector.broadcast %832 : f32 to vector<16x16xf32>
      %834 = arith.mulf %833, %829 : vector<16x16xf32>
      %835 = arith.addf %831, %834 : vector<16x16xf32>
      %c0_672 = arith.constant 0 : index
      %c0_673 = arith.constant 0 : index
      %836 = vector.load %arg7[%c0_672, %c0_673] : memref<16x16xf32, #tpu.memory_space<vmem>>, vector<16x16xf32>
      tpu.vector_store %arg7[%c0_672, %c0_673], %835 {strides = array<i32>} : memref<16x16xf32, #tpu.memory_space<vmem>>, vector<16x16xf32>,
      %c0_674 = arith.constant 0 : index
      %c0_675 = arith.constant 0 : index
      %837 = vector.load %arg8[%c0_674, %c0_675] : memref<16x16xf32, #tpu.memory_space<vmem>>, vector<16x16xf32>
      %838 = arith.mulf %cst_299, %372 : f32
      %839 = vector.broadcast %838 : f32 to vector<16x16xf32>
      %840 = arith.mulf %839, %830 : vector<16x16xf32>
      %841 = arith.addf %837, %840 : vector<16x16xf32>
      %c0_676 = arith.constant 0 : index
      %c0_677 = arith.constant 0 : index
      %842 = vector.load %arg8[%c0_676, %c0_677] : memref<16x16xf32, #tpu.memory_space<vmem>>, vector<16x16xf32>
      tpu.vector_store %arg8[%c0_676, %c0_677], %841 {strides = array<i32>} : memref<16x16xf32, #tpu.memory_space<vmem>>, vector<16x16xf32>,
    } else {
    }
    %c0_i32_301 = arith.constant 0 : i32
    %393 = arith.subi %c0_i32_301, %1 : i32
    %c1_i32_302 = arith.constant 1 : i32
    %394 = arith.subi %393, %c1_i32_302 : i32
    %c-1_i32_303 = arith.constant -1 : i32
    %395 = arith.cmpi eq, %394, %c-1_i32_303 : i32
    %cst_304 = arith.constant 0.000000e+00 : f32
    %396 = arith.select %395, %4, %cst_304 : f32
    %c0_i32_305 = arith.constant 0 : i32
    %397 = arith.subi %c0_i32_305, %1 : i32
    %c-1_i32_306 = arith.constant -1 : i32
    %398 = arith.cmpi eq, %397, %c-1_i32_306 : i32
    %cst_307 = arith.constant 0.000000e+00 : f32
    %399 = arith.select %398, %6, %cst_307 : f32
    %400 = arith.addf %396, %399 : f32
    %c-1_i32_308 = arith.constant -1 : i32
    %401 = arith.cmpi eq, %1, %c-1_i32_308 : i32
    %cst_309 = arith.constant 0.000000e+00 : f32
    %402 = arith.select %401, %6, %cst_309 : f32
    %403 = arith.addf %400, %402 : f32
    %c1_i32_310 = arith.constant 1 : i32
    %404 = arith.addi %1, %c1_i32_310 : i32
    %c-1_i32_311 = arith.constant -1 : i32
    %405 = arith.cmpi eq, %404, %c-1_i32_311 : i32
    %cst_312 = arith.constant 0.000000e+00 : f32
    %406 = arith.select %405, %4, %cst_312 : f32
    %407 = arith.addf %403, %406 : f32
    %c-1_i32_313 = arith.constant -1 : i32
    %408 = arith.cmpi eq, %1, %c-1_i32_313 : i32
    %cst_314 = arith.constant 0.000000e+00 : f32
    %409 = arith.select %408, %7, %cst_314 : f32
    %c1_i32_315 = arith.constant 1 : i32
    %410 = arith.addi %1, %c1_i32_315 : i32
    %c-1_i32_316 = arith.constant -1 : i32
    %411 = arith.cmpi eq, %410, %c-1_i32_316 : i32
    %cst_317 = arith.constant 0.000000e+00 : f32
    %412 = arith.select %411, %3, %cst_317 : f32
    %413 = arith.addf %409, %412 : f32
    %c0_i32_318 = arith.constant 0 : i32
    %414 = arith.subi %c0_i32_318, %1 : i32
    %c-1_i32_319 = arith.constant -1 : i32
    %415 = arith.cmpi eq, %414, %c-1_i32_319 : i32
    %cst_320 = arith.constant 0.000000e+00 : f32
    %416 = arith.select %415, %7, %cst_320 : f32
    %417 = arith.subf %413, %416 : f32
    %c0_i32_321 = arith.constant 0 : i32
    %418 = arith.subi %c0_i32_321, %1 : i32
    %c1_i32_322 = arith.constant 1 : i32
    %419 = arith.subi %418, %c1_i32_322 : i32
    %c-1_i32_323 = arith.constant -1 : i32
    %420 = arith.cmpi eq, %419, %c-1_i32_323 : i32
    %cst_324 = arith.constant 0.000000e+00 : f32
    %421 = arith.select %420, %3, %cst_324 : f32
    %422 = arith.subf %417, %421 : f32
    %cst_325 = arith.constant 0.000000e+00 : f32
    %423 = arith.cmpf one, %407, %cst_325 : f32
    %cst_326 = arith.constant 0.000000e+00 : f32
    %424 = arith.cmpf one, %422, %cst_326 : f32
    %425 = arith.ori %423, %424 : i1
    %426 = arith.extui %425 : i1 to i32
    %cst_327 = arith.constant 1.000000e+00 : f32
    %c0_i32_328 = arith.constant 0 : i32
    %427 = arith.cmpi ne, %426, %c0_i32_328 : i32
    scf.if %427 {
      %c0_666 = arith.constant 0 : index
      %c2_667 = arith.constant 2 : index
      %829 = vector.load %arg5[%c0_666, %c2_667] : memref<16x22xf32, #tpu.memory_space<vmem>>, vector<16x16xf32>
      %c0_668 = arith.constant 0 : index
      %c2_669 = arith.constant 2 : index
      %830 = vector.load %arg6[%c0_668, %c2_669] : memref<16x22xf32, #tpu.memory_space<vmem>>, vector<16x16xf32>
      %c0_670 = arith.constant 0 : index
      %c0_671 = arith.constant 0 : index
      %831 = vector.load %arg7[%c0_670, %c0_671] : memref<16x16xf32, #tpu.memory_space<vmem>>, vector<16x16xf32>
      %832 = arith.mulf %cst_327, %422 : f32
      %833 = vector.broadcast %832 : f32 to vector<16x16xf32>
      %834 = arith.mulf %833, %829 : vector<16x16xf32>
      %835 = arith.addf %831, %834 : vector<16x16xf32>
      %c0_672 = arith.constant 0 : index
      %c0_673 = arith.constant 0 : index
      %836 = vector.load %arg7[%c0_672, %c0_673] : memref<16x16xf32, #tpu.memory_space<vmem>>, vector<16x16xf32>
      tpu.vector_store %arg7[%c0_672, %c0_673], %835 {strides = array<i32>} : memref<16x16xf32, #tpu.memory_space<vmem>>, vector<16x16xf32>,
      %c0_674 = arith.constant 0 : index
      %c0_675 = arith.constant 0 : index
      %837 = vector.load %arg8[%c0_674, %c0_675] : memref<16x16xf32, #tpu.memory_space<vmem>>, vector<16x16xf32>
      %838 = arith.mulf %cst_327, %407 : f32
      %839 = vector.broadcast %838 : f32 to vector<16x16xf32>
      %840 = arith.mulf %839, %830 : vector<16x16xf32>
      %841 = arith.addf %837, %840 : vector<16x16xf32>
      %c0_676 = arith.constant 0 : index
      %c0_677 = arith.constant 0 : index
      %842 = vector.load %arg8[%c0_676, %c0_677] : memref<16x16xf32, #tpu.memory_space<vmem>>, vector<16x16xf32>
      tpu.vector_store %arg8[%c0_676, %c0_677], %841 {strides = array<i32>} : memref<16x16xf32, #tpu.memory_space<vmem>>, vector<16x16xf32>,
    } else {
    }
    %c0_i32_329 = arith.constant 0 : i32
    %428 = arith.subi %c0_i32_329, %1 : i32
    %c1_i32_330 = arith.constant 1 : i32
    %429 = arith.subi %428, %c1_i32_330 : i32
    %c1_i32_331 = arith.constant 1 : i32
    %430 = arith.cmpi eq, %429, %c1_i32_331 : i32
    %cst_332 = arith.constant 0.000000e+00 : f32
    %431 = arith.select %430, %4, %cst_332 : f32
    %c0_i32_333 = arith.constant 0 : i32
    %432 = arith.subi %c0_i32_333, %1 : i32
    %c1_i32_334 = arith.constant 1 : i32
    %433 = arith.cmpi eq, %432, %c1_i32_334 : i32
    %cst_335 = arith.constant 0.000000e+00 : f32
    %434 = arith.select %433, %6, %cst_335 : f32
    %435 = arith.addf %431, %434 : f32
    %c1_i32_336 = arith.constant 1 : i32
    %436 = arith.cmpi eq, %1, %c1_i32_336 : i32
    %cst_337 = arith.constant 0.000000e+00 : f32
    %437 = arith.select %436, %6, %cst_337 : f32
    %438 = arith.addf %435, %437 : f32
    %c1_i32_338 = arith.constant 1 : i32
    %439 = arith.addi %1, %c1_i32_338 : i32
    %c1_i32_339 = arith.constant 1 : i32
    %440 = arith.cmpi eq, %439, %c1_i32_339 : i32
    %cst_340 = arith.constant 0.000000e+00 : f32
    %441 = arith.select %440, %4, %cst_340 : f32
    %442 = arith.addf %438, %441 : f32
    %c1_i32_341 = arith.constant 1 : i32
    %443 = arith.cmpi eq, %1, %c1_i32_341 : i32
    %cst_342 = arith.constant 0.000000e+00 : f32
    %444 = arith.select %443, %7, %cst_342 : f32
    %c1_i32_343 = arith.constant 1 : i32
    %445 = arith.addi %1, %c1_i32_343 : i32
    %c1_i32_344 = arith.constant 1 : i32
    %446 = arith.cmpi eq, %445, %c1_i32_344 : i32
    %cst_345 = arith.constant 0.000000e+00 : f32
    %447 = arith.select %446, %3, %cst_345 : f32
    %448 = arith.addf %444, %447 : f32
    %c0_i32_346 = arith.constant 0 : i32
    %449 = arith.subi %c0_i32_346, %1 : i32
    %c1_i32_347 = arith.constant 1 : i32
    %450 = arith.cmpi eq, %449, %c1_i32_347 : i32
    %cst_348 = arith.constant 0.000000e+00 : f32
    %451 = arith.select %450, %7, %cst_348 : f32
    %452 = arith.subf %448, %451 : f32
    %c0_i32_349 = arith.constant 0 : i32
    %453 = arith.subi %c0_i32_349, %1 : i32
    %c1_i32_350 = arith.constant 1 : i32
    %454 = arith.subi %453, %c1_i32_350 : i32
    %c1_i32_351 = arith.constant 1 : i32
    %455 = arith.cmpi eq, %454, %c1_i32_351 : i32
    %cst_352 = arith.constant 0.000000e+00 : f32
    %456 = arith.select %455, %3, %cst_352 : f32
    %457 = arith.subf %452, %456 : f32
    %cst_353 = arith.constant 0.000000e+00 : f32
    %458 = arith.cmpf one, %442, %cst_353 : f32
    %cst_354 = arith.constant 0.000000e+00 : f32
    %459 = arith.cmpf one, %457, %cst_354 : f32
    %460 = arith.ori %458, %459 : i1
    %461 = arith.extui %460 : i1 to i32
    %cst_355 = arith.constant 1.000000e+00 : f32
    %c0_i32_356 = arith.constant 0 : i32
    %462 = arith.cmpi ne, %461, %c0_i32_356 : i32
    scf.if %462 {
      %c0_666 = arith.constant 0 : index
      %c4 = arith.constant 4 : index
      %829 = vector.load %arg5[%c0_666, %c4] : memref<16x22xf32, #tpu.memory_space<vmem>>, vector<16x16xf32>
      %c0_667 = arith.constant 0 : index
      %c4_668 = arith.constant 4 : index
      %830 = vector.load %arg6[%c0_667, %c4_668] : memref<16x22xf32, #tpu.memory_space<vmem>>, vector<16x16xf32>
      %c0_669 = arith.constant 0 : index
      %c0_670 = arith.constant 0 : index
      %831 = vector.load %arg7[%c0_669, %c0_670] : memref<16x16xf32, #tpu.memory_space<vmem>>, vector<16x16xf32>
      %832 = arith.mulf %cst_355, %457 : f32
      %833 = vector.broadcast %832 : f32 to vector<16x16xf32>
      %834 = arith.mulf %833, %829 : vector<16x16xf32>
      %835 = arith.addf %831, %834 : vector<16x16xf32>
      %c0_671 = arith.constant 0 : index
      %c0_672 = arith.constant 0 : index
      %836 = vector.load %arg7[%c0_671, %c0_672] : memref<16x16xf32, #tpu.memory_space<vmem>>, vector<16x16xf32>
      tpu.vector_store %arg7[%c0_671, %c0_672], %835 {strides = array<i32>} : memref<16x16xf32, #tpu.memory_space<vmem>>, vector<16x16xf32>,
      %c0_673 = arith.constant 0 : index
      %c0_674 = arith.constant 0 : index
      %837 = vector.load %arg8[%c0_673, %c0_674] : memref<16x16xf32, #tpu.memory_space<vmem>>, vector<16x16xf32>
      %838 = arith.mulf %cst_355, %442 : f32
      %839 = vector.broadcast %838 : f32 to vector<16x16xf32>
      %840 = arith.mulf %839, %830 : vector<16x16xf32>
      %841 = arith.addf %837, %840 : vector<16x16xf32>
      %c0_675 = arith.constant 0 : index
      %c0_676 = arith.constant 0 : index
      %842 = vector.load %arg8[%c0_675, %c0_676] : memref<16x16xf32, #tpu.memory_space<vmem>>, vector<16x16xf32>
      tpu.vector_store %arg8[%c0_675, %c0_676], %841 {strides = array<i32>} : memref<16x16xf32, #tpu.memory_space<vmem>>, vector<16x16xf32>,
    } else {
    }
    %c0_i32_357 = arith.constant 0 : i32
    %463 = arith.subi %c0_i32_357, %1 : i32
    %c1_i32_358 = arith.constant 1 : i32
    %464 = arith.subi %463, %c1_i32_358 : i32
    %c2_i32_359 = arith.constant 2 : i32
    %465 = arith.cmpi eq, %464, %c2_i32_359 : i32
    %cst_360 = arith.constant 0.000000e+00 : f32
    %466 = arith.select %465, %4, %cst_360 : f32
    %c0_i32_361 = arith.constant 0 : i32
    %467 = arith.subi %c0_i32_361, %1 : i32
    %c2_i32_362 = arith.constant 2 : i32
    %468 = arith.cmpi eq, %467, %c2_i32_362 : i32
    %cst_363 = arith.constant 0.000000e+00 : f32
    %469 = arith.select %468, %6, %cst_363 : f32
    %470 = arith.addf %466, %469 : f32
    %c2_i32_364 = arith.constant 2 : i32
    %471 = arith.cmpi eq, %1, %c2_i32_364 : i32
    %cst_365 = arith.constant 0.000000e+00 : f32
    %472 = arith.select %471, %6, %cst_365 : f32
    %473 = arith.addf %470, %472 : f32
    %c1_i32_366 = arith.constant 1 : i32
    %474 = arith.addi %1, %c1_i32_366 : i32
    %c2_i32_367 = arith.constant 2 : i32
    %475 = arith.cmpi eq, %474, %c2_i32_367 : i32
    %cst_368 = arith.constant 0.000000e+00 : f32
    %476 = arith.select %475, %4, %cst_368 : f32
    %477 = arith.addf %473, %476 : f32
    %c2_i32_369 = arith.constant 2 : i32
    %478 = arith.cmpi eq, %1, %c2_i32_369 : i32
    %cst_370 = arith.constant 0.000000e+00 : f32
    %479 = arith.select %478, %7, %cst_370 : f32
    %c1_i32_371 = arith.constant 1 : i32
    %480 = arith.addi %1, %c1_i32_371 : i32
    %c2_i32_372 = arith.constant 2 : i32
    %481 = arith.cmpi eq, %480, %c2_i32_372 : i32
    %cst_373 = arith.constant 0.000000e+00 : f32
    %482 = arith.select %481, %3, %cst_373 : f32
    %483 = arith.addf %479, %482 : f32
    %c0_i32_374 = arith.constant 0 : i32
    %484 = arith.subi %c0_i32_374, %1 : i32
    %c2_i32_375 = arith.constant 2 : i32
    %485 = arith.cmpi eq, %484, %c2_i32_375 : i32
    %cst_376 = arith.constant 0.000000e+00 : f32
    %486 = arith.select %485, %7, %cst_376 : f32
    %487 = arith.subf %483, %486 : f32
    %c0_i32_377 = arith.constant 0 : i32
    %488 = arith.subi %c0_i32_377, %1 : i32
    %c1_i32_378 = arith.constant 1 : i32
    %489 = arith.subi %488, %c1_i32_378 : i32
    %c2_i32_379 = arith.constant 2 : i32
    %490 = arith.cmpi eq, %489, %c2_i32_379 : i32
    %cst_380 = arith.constant 0.000000e+00 : f32
    %491 = arith.select %490, %3, %cst_380 : f32
    %492 = arith.subf %487, %491 : f32
    %cst_381 = arith.constant 0.000000e+00 : f32
    %493 = arith.cmpf one, %477, %cst_381 : f32
    %cst_382 = arith.constant 0.000000e+00 : f32
    %494 = arith.cmpf one, %492, %cst_382 : f32
    %495 = arith.ori %493, %494 : i1
    %496 = arith.extui %495 : i1 to i32
    %cst_383 = arith.constant 1.000000e+00 : f32
    %c0_i32_384 = arith.constant 0 : i32
    %497 = arith.cmpi ne, %496, %c0_i32_384 : i32
    scf.if %497 {
      %c0_666 = arith.constant 0 : index
      %c5 = arith.constant 5 : index
      %829 = vector.load %arg5[%c0_666, %c5] : memref<16x22xf32, #tpu.memory_space<vmem>>, vector<16x16xf32>
      %c0_667 = arith.constant 0 : index
      %c5_668 = arith.constant 5 : index
      %830 = vector.load %arg6[%c0_667, %c5_668] : memref<16x22xf32, #tpu.memory_space<vmem>>, vector<16x16xf32>
      %c0_669 = arith.constant 0 : index
      %c0_670 = arith.constant 0 : index
      %831 = vector.load %arg7[%c0_669, %c0_670] : memref<16x16xf32, #tpu.memory_space<vmem>>, vector<16x16xf32>
      %832 = arith.mulf %cst_383, %492 : f32
      %833 = vector.broadcast %832 : f32 to vector<16x16xf32>
      %834 = arith.mulf %833, %829 : vector<16x16xf32>
      %835 = arith.addf %831, %834 : vector<16x16xf32>
      %c0_671 = arith.constant 0 : index
      %c0_672 = arith.constant 0 : index
      %836 = vector.load %arg7[%c0_671, %c0_672] : memref<16x16xf32, #tpu.memory_space<vmem>>, vector<16x16xf32>
      tpu.vector_store %arg7[%c0_671, %c0_672], %835 {strides = array<i32>} : memref<16x16xf32, #tpu.memory_space<vmem>>, vector<16x16xf32>,
      %c0_673 = arith.constant 0 : index
      %c0_674 = arith.constant 0 : index
      %837 = vector.load %arg8[%c0_673, %c0_674] : memref<16x16xf32, #tpu.memory_space<vmem>>, vector<16x16xf32>
      %838 = arith.mulf %cst_383, %477 : f32
      %839 = vector.broadcast %838 : f32 to vector<16x16xf32>
      %840 = arith.mulf %839, %830 : vector<16x16xf32>
      %841 = arith.addf %837, %840 : vector<16x16xf32>
      %c0_675 = arith.constant 0 : index
      %c0_676 = arith.constant 0 : index
      %842 = vector.load %arg8[%c0_675, %c0_676] : memref<16x16xf32, #tpu.memory_space<vmem>>, vector<16x16xf32>
      tpu.vector_store %arg8[%c0_675, %c0_676], %841 {strides = array<i32>} : memref<16x16xf32, #tpu.memory_space<vmem>>, vector<16x16xf32>,
    } else {
    }
    %c0_i32_385 = arith.constant 0 : i32
    %498 = arith.subi %c0_i32_385, %1 : i32
    %c1_i32_386 = arith.constant 1 : i32
    %499 = arith.subi %498, %c1_i32_386 : i32
    %c3_i32_387 = arith.constant 3 : i32
    %500 = arith.cmpi eq, %499, %c3_i32_387 : i32
    %cst_388 = arith.constant 0.000000e+00 : f32
    %501 = arith.select %500, %4, %cst_388 : f32
    %c0_i32_389 = arith.constant 0 : i32
    %502 = arith.subi %c0_i32_389, %1 : i32
    %c3_i32_390 = arith.constant 3 : i32
    %503 = arith.cmpi eq, %502, %c3_i32_390 : i32
    %cst_391 = arith.constant 0.000000e+00 : f32
    %504 = arith.select %503, %6, %cst_391 : f32
    %505 = arith.addf %501, %504 : f32
    %c3_i32_392 = arith.constant 3 : i32
    %506 = arith.cmpi eq, %1, %c3_i32_392 : i32
    %cst_393 = arith.constant 0.000000e+00 : f32
    %507 = arith.select %506, %6, %cst_393 : f32
    %508 = arith.addf %505, %507 : f32
    %c1_i32_394 = arith.constant 1 : i32
    %509 = arith.addi %1, %c1_i32_394 : i32
    %c3_i32_395 = arith.constant 3 : i32
    %510 = arith.cmpi eq, %509, %c3_i32_395 : i32
    %cst_396 = arith.constant 0.000000e+00 : f32
    %511 = arith.select %510, %4, %cst_396 : f32
    %512 = arith.addf %508, %511 : f32
    %c3_i32_397 = arith.constant 3 : i32
    %513 = arith.cmpi eq, %1, %c3_i32_397 : i32
    %cst_398 = arith.constant 0.000000e+00 : f32
    %514 = arith.select %513, %7, %cst_398 : f32
    %c1_i32_399 = arith.constant 1 : i32
    %515 = arith.addi %1, %c1_i32_399 : i32
    %c3_i32_400 = arith.constant 3 : i32
    %516 = arith.cmpi eq, %515, %c3_i32_400 : i32
    %cst_401 = arith.constant 0.000000e+00 : f32
    %517 = arith.select %516, %3, %cst_401 : f32
    %518 = arith.addf %514, %517 : f32
    %c0_i32_402 = arith.constant 0 : i32
    %519 = arith.subi %c0_i32_402, %1 : i32
    %c3_i32_403 = arith.constant 3 : i32
    %520 = arith.cmpi eq, %519, %c3_i32_403 : i32
    %cst_404 = arith.constant 0.000000e+00 : f32
    %521 = arith.select %520, %7, %cst_404 : f32
    %522 = arith.subf %518, %521 : f32
    %c0_i32_405 = arith.constant 0 : i32
    %523 = arith.subi %c0_i32_405, %1 : i32
    %c1_i32_406 = arith.constant 1 : i32
    %524 = arith.subi %523, %c1_i32_406 : i32
    %c3_i32_407 = arith.constant 3 : i32
    %525 = arith.cmpi eq, %524, %c3_i32_407 : i32
    %cst_408 = arith.constant 0.000000e+00 : f32
    %526 = arith.select %525, %3, %cst_408 : f32
    %527 = arith.subf %522, %526 : f32
    %cst_409 = arith.constant 0.000000e+00 : f32
    %528 = arith.cmpf one, %512, %cst_409 : f32
    %cst_410 = arith.constant 0.000000e+00 : f32
    %529 = arith.cmpf one, %527, %cst_410 : f32
    %530 = arith.ori %528, %529 : i1
    %531 = arith.extui %530 : i1 to i32
    %cst_411 = arith.constant 1.000000e+00 : f32
    %c0_i32_412 = arith.constant 0 : i32
    %532 = arith.cmpi ne, %531, %c0_i32_412 : i32
    scf.if %532 {
      %c0_666 = arith.constant 0 : index
      %c6 = arith.constant 6 : index
      %829 = vector.load %arg5[%c0_666, %c6] : memref<16x22xf32, #tpu.memory_space<vmem>>, vector<16x16xf32>
      %c0_667 = arith.constant 0 : index
      %c6_668 = arith.constant 6 : index
      %830 = vector.load %arg6[%c0_667, %c6_668] : memref<16x22xf32, #tpu.memory_space<vmem>>, vector<16x16xf32>
      %c0_669 = arith.constant 0 : index
      %c0_670 = arith.constant 0 : index
      %831 = vector.load %arg7[%c0_669, %c0_670] : memref<16x16xf32, #tpu.memory_space<vmem>>, vector<16x16xf32>
      %832 = arith.mulf %cst_411, %527 : f32
      %833 = vector.broadcast %832 : f32 to vector<16x16xf32>
      %834 = arith.mulf %833, %829 : vector<16x16xf32>
      %835 = arith.addf %831, %834 : vector<16x16xf32>
      %c0_671 = arith.constant 0 : index
      %c0_672 = arith.constant 0 : index
      %836 = vector.load %arg7[%c0_671, %c0_672] : memref<16x16xf32, #tpu.memory_space<vmem>>, vector<16x16xf32>
      tpu.vector_store %arg7[%c0_671, %c0_672], %835 {strides = array<i32>} : memref<16x16xf32, #tpu.memory_space<vmem>>, vector<16x16xf32>,
      %c0_673 = arith.constant 0 : index
      %c0_674 = arith.constant 0 : index
      %837 = vector.load %arg8[%c0_673, %c0_674] : memref<16x16xf32, #tpu.memory_space<vmem>>, vector<16x16xf32>
      %838 = arith.mulf %cst_411, %512 : f32
      %839 = vector.broadcast %838 : f32 to vector<16x16xf32>
      %840 = arith.mulf %839, %830 : vector<16x16xf32>
      %841 = arith.addf %837, %840 : vector<16x16xf32>
      %c0_675 = arith.constant 0 : index
      %c0_676 = arith.constant 0 : index
      %842 = vector.load %arg8[%c0_675, %c0_676] : memref<16x16xf32, #tpu.memory_space<vmem>>, vector<16x16xf32>
      tpu.vector_store %arg8[%c0_675, %c0_676], %841 {strides = array<i32>} : memref<16x16xf32, #tpu.memory_space<vmem>>, vector<16x16xf32>,
    } else {
    }
    %c0_413 = arith.constant 0 : index
    %c0_414 = arith.constant 0 : index
    %533 = vector.load %arg7[%c0_413, %c0_414] : memref<16x16xf32, #tpu.memory_space<vmem>>, vector<16x16xf32>
    %c0_415 = arith.constant 0 : index
    %c0_416 = arith.constant 0 : index
    %534 = vector.load %arg8[%c0_415, %c0_416] : memref<16x16xf32, #tpu.memory_space<vmem>>, vector<16x16xf32>
    %c0_417 = arith.constant 0 : index
    %c0_418 = arith.constant 0 : index
    %c0_419 = arith.constant 0 : index
    %c0_420 = arith.constant 0 : index
    %535 = vector.load %arg4[%c0_417, %c0_418, %c0_419, %c0_420] : memref<1x3x16x16xf32, #tpu.memory_space<vmem>>, vector<1x1x16x16xf32>
    %536 = vector.shape_cast %535 : vector<1x1x16x16xf32> to vector<16x16xf32>
    %537 = arith.mulf %533, %533 : vector<16x16xf32>
    %538 = arith.addf %536, %537 : vector<16x16xf32>
    %c0_421 = arith.constant 0 : index
    %c0_422 = arith.constant 0 : index
    %c0_423 = arith.constant 0 : index
    %c0_424 = arith.constant 0 : index
    %539 = vector.load %arg4[%c0_421, %c0_422, %c0_423, %c0_424] : memref<1x3x16x16xf32, #tpu.memory_space<vmem>>, vector<1x1x16x16xf32>
    %540 = vector.shape_cast %539 : vector<1x1x16x16xf32> to vector<16x16xf32>
    %541 = vector.shape_cast %538 : vector<16x16xf32> to vector<1x1x16x16xf32>
    tpu.vector_store %arg4[%c0_421, %c0_422, %c0_423, %c0_424], %541 {strides = array<i32>} : memref<1x3x16x16xf32, #tpu.memory_space<vmem>>, vector<1x1x16x16xf32>,
    %c0_425 = arith.constant 0 : index
    %c1_426 = arith.constant 1 : index
    %c0_427 = arith.constant 0 : index
    %c0_428 = arith.constant 0 : index
    %542 = vector.load %arg4[%c0_425, %c1_426, %c0_427, %c0_428] : memref<1x3x16x16xf32, #tpu.memory_space<vmem>>, vector<1x1x16x16xf32>
    %543 = vector.shape_cast %542 : vector<1x1x16x16xf32> to vector<16x16xf32>
    %544 = arith.mulf %534, %534 : vector<16x16xf32>
    %545 = arith.addf %543, %544 : vector<16x16xf32>
    %c0_429 = arith.constant 0 : index
    %c1_430 = arith.constant 1 : index
    %c0_431 = arith.constant 0 : index
    %c0_432 = arith.constant 0 : index
    %546 = vector.load %arg4[%c0_429, %c1_430, %c0_431, %c0_432] : memref<1x3x16x16xf32, #tpu.memory_space<vmem>>, vector<1x1x16x16xf32>
    %547 = vector.shape_cast %546 : vector<1x1x16x16xf32> to vector<16x16xf32>
    %548 = vector.shape_cast %545 : vector<16x16xf32> to vector<1x1x16x16xf32>
    tpu.vector_store %arg4[%c0_429, %c1_430, %c0_431, %c0_432], %548 {strides = array<i32>} : memref<1x3x16x16xf32, #tpu.memory_space<vmem>>, vector<1x1x16x16xf32>,
    %c0_433 = arith.constant 0 : index
    %c2_434 = arith.constant 2 : index
    %c0_435 = arith.constant 0 : index
    %c0_436 = arith.constant 0 : index
    %549 = vector.load %arg4[%c0_433, %c2_434, %c0_435, %c0_436] : memref<1x3x16x16xf32, #tpu.memory_space<vmem>>, vector<1x1x16x16xf32>
    %550 = vector.shape_cast %549 : vector<1x1x16x16xf32> to vector<16x16xf32>
    %551 = arith.mulf %533, %534 : vector<16x16xf32>
    %552 = arith.addf %550, %551 : vector<16x16xf32>
    %c0_437 = arith.constant 0 : index
    %c2_438 = arith.constant 2 : index
    %c0_439 = arith.constant 0 : index
    %c0_440 = arith.constant 0 : index
    %553 = vector.load %arg4[%c0_437, %c2_438, %c0_439, %c0_440] : memref<1x3x16x16xf32, #tpu.memory_space<vmem>>, vector<1x1x16x16xf32>
    %554 = vector.shape_cast %553 : vector<1x1x16x16xf32> to vector<16x16xf32>
    %555 = vector.shape_cast %552 : vector<16x16xf32> to vector<1x1x16x16xf32>
    tpu.vector_store %arg4[%c0_437, %c2_438, %c0_439, %c0_440], %555 {strides = array<i32>} : memref<1x3x16x16xf32, #tpu.memory_space<vmem>>, vector<1x1x16x16xf32>,
    %c0_441 = arith.constant 0 : index
    %c2_442 = arith.constant 2 : index
    %556 = arith.index_cast %9 : i32 to index
    %c0_443 = arith.constant 0 : index
    %557 = vector.load %arg3[%c0_441, %c2_442, %556, %c0_443] : memref<1x3x22x22xf32, #tpu.memory_space<vmem>>, vector<1x1x16x22xf32>
    %558 = vector.shape_cast %557 : vector<1x1x16x22xf32> to vector<16x22xf32>
    %c0_444 = arith.constant 0 : index
    %c2_445 = arith.constant 2 : index
    %559 = arith.index_cast %10 : i32 to index
    %c0_446 = arith.constant 0 : index
    %560 = vector.load %arg3[%c0_444, %c2_445, %559, %c0_446] : memref<1x3x22x22xf32, #tpu.memory_space<vmem>>, vector<1x1x16x22xf32>
    %561 = vector.shape_cast %560 : vector<1x1x16x22xf32> to vector<16x22xf32>
    %c0_447 = arith.constant 0 : index
    %c2_448 = arith.constant 2 : index
    %c3_449 = arith.constant 3 : index
    %c0_450 = arith.constant 0 : index
    %562 = vector.load %arg3[%c0_447, %c2_448, %c3_449, %c0_450] : memref<1x3x22x22xf32, #tpu.memory_space<vmem>>, vector<1x1x16x22xf32>
    %563 = vector.shape_cast %562 : vector<1x1x16x22xf32> to vector<16x22xf32>
    %c0_451 = arith.constant 0 : index
    %c2_452 = arith.constant 2 : index
    %564 = arith.index_cast %11 : i32 to index
    %c0_453 = arith.constant 0 : index
    %565 = vector.load %arg3[%c0_451, %c2_452, %564, %c0_453] : memref<1x3x22x22xf32, #tpu.memory_space<vmem>>, vector<1x1x16x22xf32>
    %566 = vector.shape_cast %565 : vector<1x1x16x22xf32> to vector<16x22xf32>
    %c0_454 = arith.constant 0 : index
    %c2_455 = arith.constant 2 : index
    %567 = arith.index_cast %13 : i32 to index
    %c0_456 = arith.constant 0 : index
    %568 = vector.load %arg3[%c0_454, %c2_455, %567, %c0_456] : memref<1x3x22x22xf32, #tpu.memory_space<vmem>>, vector<1x1x16x22xf32>
    %569 = vector.shape_cast %568 : vector<1x1x16x22xf32> to vector<16x22xf32>
    %570 = arith.addf %558, %569 : vector<16x22xf32>
    %571 = vector.broadcast %4 : f32 to vector<16x22xf32>
    %572 = arith.mulf %571, %570 : vector<16x22xf32>
    %573 = arith.addf %561, %566 : vector<16x22xf32>
    %574 = vector.broadcast %6 : f32 to vector<16x22xf32>
    %575 = arith.mulf %574, %573 : vector<16x22xf32>
    %576 = arith.addf %572, %575 : vector<16x22xf32>
    %cst_457 = arith.constant 5.000000e-01 : f32
    %577 = vector.broadcast %cst_457 : f32 to vector<16x22xf32>
    %578 = arith.mulf %577, %563 : vector<16x22xf32>
    %579 = arith.addf %576, %578 : vector<16x22xf32>
    %c0_458 = arith.constant 0 : index
    %c0_459 = arith.constant 0 : index
    %580 = vector.load %arg5[%c0_458, %c0_459] : memref<16x22xf32, #tpu.memory_space<vmem>>, vector<16x22xf32>
    tpu.vector_store %arg5[%c0_458, %c0_459], %579 {strides = array<i32>} : memref<16x22xf32, #tpu.memory_space<vmem>>, vector<16x22xf32>,
    %581 = arith.subf %569, %558 : vector<16x22xf32>
    %582 = vector.broadcast %3 : f32 to vector<16x22xf32>
    %583 = arith.mulf %582, %581 : vector<16x22xf32>
    %584 = arith.subf %566, %561 : vector<16x22xf32>
    %585 = vector.broadcast %7 : f32 to vector<16x22xf32>
    %586 = arith.mulf %585, %584 : vector<16x22xf32>
    %587 = arith.addf %583, %586 : vector<16x22xf32>
    %c0_460 = arith.constant 0 : index
    %c0_461 = arith.constant 0 : index
    %588 = vector.load %arg6[%c0_460, %c0_461] : memref<16x22xf32, #tpu.memory_space<vmem>>, vector<16x22xf32>
    tpu.vector_store %arg6[%c0_460, %c0_461], %587 {strides = array<i32>} : memref<16x22xf32, #tpu.memory_space<vmem>>, vector<16x22xf32>,
    %cst_462 = arith.constant 0.000000e+00 : f32
    %589 = vector.broadcast %cst_462 : f32 to vector<16x16xf32>
    %c0_463 = arith.constant 0 : index
    %c0_464 = arith.constant 0 : index
    %590 = vector.load %arg7[%c0_463, %c0_464] : memref<16x16xf32, #tpu.memory_space<vmem>>, vector<16x16xf32>
    tpu.vector_store %arg7[%c0_463, %c0_464], %589 {strides = array<i32>} : memref<16x16xf32, #tpu.memory_space<vmem>>, vector<16x16xf32>,
    %cst_465 = arith.constant 1.000000e+00 : f32
    %591 = arith.mulf %cst_465, %18 : f32
    %c0_466 = arith.constant 0 : index
    %c3_467 = arith.constant 3 : index
    %592 = vector.load %arg6[%c0_466, %c3_467] : memref<16x22xf32, #tpu.memory_space<vmem>>, vector<16x16xf32>
    %593 = vector.broadcast %591 : f32 to vector<16x16xf32>
    %594 = arith.mulf %593, %592 : vector<16x16xf32>
    %c0_468 = arith.constant 0 : index
    %c0_469 = arith.constant 0 : index
    %595 = vector.load %arg8[%c0_468, %c0_469] : memref<16x16xf32, #tpu.memory_space<vmem>>, vector<16x16xf32>
    tpu.vector_store %arg8[%c0_468, %c0_469], %594 {strides = array<i32>} : memref<16x16xf32, #tpu.memory_space<vmem>>, vector<16x16xf32>,
    %c0_i32_470 = arith.constant 0 : i32
    %596 = arith.subi %c0_i32_470, %1 : i32
    %c1_i32_471 = arith.constant 1 : i32
    %597 = arith.subi %596, %c1_i32_471 : i32
    %c-3_i32_472 = arith.constant -3 : i32
    %598 = arith.cmpi eq, %597, %c-3_i32_472 : i32
    %cst_473 = arith.constant 0.000000e+00 : f32
    %599 = arith.select %598, %4, %cst_473 : f32
    %c0_i32_474 = arith.constant 0 : i32
    %600 = arith.subi %c0_i32_474, %1 : i32
    %c-3_i32_475 = arith.constant -3 : i32
    %601 = arith.cmpi eq, %600, %c-3_i32_475 : i32
    %cst_476 = arith.constant 0.000000e+00 : f32
    %602 = arith.select %601, %6, %cst_476 : f32
    %603 = arith.addf %599, %602 : f32
    %c-3_i32_477 = arith.constant -3 : i32
    %604 = arith.cmpi eq, %1, %c-3_i32_477 : i32
    %cst_478 = arith.constant 0.000000e+00 : f32
    %605 = arith.select %604, %6, %cst_478 : f32
    %606 = arith.addf %603, %605 : f32
    %c1_i32_479 = arith.constant 1 : i32
    %607 = arith.addi %1, %c1_i32_479 : i32
    %c-3_i32_480 = arith.constant -3 : i32
    %608 = arith.cmpi eq, %607, %c-3_i32_480 : i32
    %cst_481 = arith.constant 0.000000e+00 : f32
    %609 = arith.select %608, %4, %cst_481 : f32
    %610 = arith.addf %606, %609 : f32
    %c-3_i32_482 = arith.constant -3 : i32
    %611 = arith.cmpi eq, %1, %c-3_i32_482 : i32
    %cst_483 = arith.constant 0.000000e+00 : f32
    %612 = arith.select %611, %7, %cst_483 : f32
    %c1_i32_484 = arith.constant 1 : i32
    %613 = arith.addi %1, %c1_i32_484 : i32
    %c-3_i32_485 = arith.constant -3 : i32
    %614 = arith.cmpi eq, %613, %c-3_i32_485 : i32
    %cst_486 = arith.constant 0.000000e+00 : f32
    %615 = arith.select %614, %3, %cst_486 : f32
    %616 = arith.addf %612, %615 : f32
    %c0_i32_487 = arith.constant 0 : i32
    %617 = arith.subi %c0_i32_487, %1 : i32
    %c-3_i32_488 = arith.constant -3 : i32
    %618 = arith.cmpi eq, %617, %c-3_i32_488 : i32
    %cst_489 = arith.constant 0.000000e+00 : f32
    %619 = arith.select %618, %7, %cst_489 : f32
    %620 = arith.subf %616, %619 : f32
    %c0_i32_490 = arith.constant 0 : i32
    %621 = arith.subi %c0_i32_490, %1 : i32
    %c1_i32_491 = arith.constant 1 : i32
    %622 = arith.subi %621, %c1_i32_491 : i32
    %c-3_i32_492 = arith.constant -3 : i32
    %623 = arith.cmpi eq, %622, %c-3_i32_492 : i32
    %cst_493 = arith.constant 0.000000e+00 : f32
    %624 = arith.select %623, %3, %cst_493 : f32
    %625 = arith.subf %620, %624 : f32
    %cst_494 = arith.constant 0.000000e+00 : f32
    %626 = arith.cmpf one, %610, %cst_494 : f32
    %cst_495 = arith.constant 0.000000e+00 : f32
    %627 = arith.cmpf one, %625, %cst_495 : f32
    %628 = arith.ori %626, %627 : i1
    %629 = arith.extui %628 : i1 to i32
    %cst_496 = arith.constant 1.000000e+00 : f32
    %c0_i32_497 = arith.constant 0 : i32
    %630 = arith.cmpi ne, %629, %c0_i32_497 : i32
    scf.if %630 {
      %c0_666 = arith.constant 0 : index
      %c0_667 = arith.constant 0 : index
      %829 = vector.load %arg5[%c0_666, %c0_667] : memref<16x22xf32, #tpu.memory_space<vmem>>, vector<16x16xf32>
      %c0_668 = arith.constant 0 : index
      %c0_669 = arith.constant 0 : index
      %830 = vector.load %arg6[%c0_668, %c0_669] : memref<16x22xf32, #tpu.memory_space<vmem>>, vector<16x16xf32>
      %c0_670 = arith.constant 0 : index
      %c0_671 = arith.constant 0 : index
      %831 = vector.load %arg7[%c0_670, %c0_671] : memref<16x16xf32, #tpu.memory_space<vmem>>, vector<16x16xf32>
      %832 = arith.mulf %cst_496, %625 : f32
      %833 = vector.broadcast %832 : f32 to vector<16x16xf32>
      %834 = arith.mulf %833, %829 : vector<16x16xf32>
      %835 = arith.addf %831, %834 : vector<16x16xf32>
      %c0_672 = arith.constant 0 : index
      %c0_673 = arith.constant 0 : index
      %836 = vector.load %arg7[%c0_672, %c0_673] : memref<16x16xf32, #tpu.memory_space<vmem>>, vector<16x16xf32>
      tpu.vector_store %arg7[%c0_672, %c0_673], %835 {strides = array<i32>} : memref<16x16xf32, #tpu.memory_space<vmem>>, vector<16x16xf32>,
      %c0_674 = arith.constant 0 : index
      %c0_675 = arith.constant 0 : index
      %837 = vector.load %arg8[%c0_674, %c0_675] : memref<16x16xf32, #tpu.memory_space<vmem>>, vector<16x16xf32>
      %838 = arith.mulf %cst_496, %610 : f32
      %839 = vector.broadcast %838 : f32 to vector<16x16xf32>
      %840 = arith.mulf %839, %830 : vector<16x16xf32>
      %841 = arith.addf %837, %840 : vector<16x16xf32>
      %c0_676 = arith.constant 0 : index
      %c0_677 = arith.constant 0 : index
      %842 = vector.load %arg8[%c0_676, %c0_677] : memref<16x16xf32, #tpu.memory_space<vmem>>, vector<16x16xf32>
      tpu.vector_store %arg8[%c0_676, %c0_677], %841 {strides = array<i32>} : memref<16x16xf32, #tpu.memory_space<vmem>>, vector<16x16xf32>,
    } else {
    }
    %c0_i32_498 = arith.constant 0 : i32
    %631 = arith.subi %c0_i32_498, %1 : i32
    %c1_i32_499 = arith.constant 1 : i32
    %632 = arith.subi %631, %c1_i32_499 : i32
    %c-2_i32_500 = arith.constant -2 : i32
    %633 = arith.cmpi eq, %632, %c-2_i32_500 : i32
    %cst_501 = arith.constant 0.000000e+00 : f32
    %634 = arith.select %633, %4, %cst_501 : f32
    %c0_i32_502 = arith.constant 0 : i32
    %635 = arith.subi %c0_i32_502, %1 : i32
    %c-2_i32_503 = arith.constant -2 : i32
    %636 = arith.cmpi eq, %635, %c-2_i32_503 : i32
    %cst_504 = arith.constant 0.000000e+00 : f32
    %637 = arith.select %636, %6, %cst_504 : f32
    %638 = arith.addf %634, %637 : f32
    %c-2_i32_505 = arith.constant -2 : i32
    %639 = arith.cmpi eq, %1, %c-2_i32_505 : i32
    %cst_506 = arith.constant 0.000000e+00 : f32
    %640 = arith.select %639, %6, %cst_506 : f32
    %641 = arith.addf %638, %640 : f32
    %c1_i32_507 = arith.constant 1 : i32
    %642 = arith.addi %1, %c1_i32_507 : i32
    %c-2_i32_508 = arith.constant -2 : i32
    %643 = arith.cmpi eq, %642, %c-2_i32_508 : i32
    %cst_509 = arith.constant 0.000000e+00 : f32
    %644 = arith.select %643, %4, %cst_509 : f32
    %645 = arith.addf %641, %644 : f32
    %c-2_i32_510 = arith.constant -2 : i32
    %646 = arith.cmpi eq, %1, %c-2_i32_510 : i32
    %cst_511 = arith.constant 0.000000e+00 : f32
    %647 = arith.select %646, %7, %cst_511 : f32
    %c1_i32_512 = arith.constant 1 : i32
    %648 = arith.addi %1, %c1_i32_512 : i32
    %c-2_i32_513 = arith.constant -2 : i32
    %649 = arith.cmpi eq, %648, %c-2_i32_513 : i32
    %cst_514 = arith.constant 0.000000e+00 : f32
    %650 = arith.select %649, %3, %cst_514 : f32
    %651 = arith.addf %647, %650 : f32
    %c0_i32_515 = arith.constant 0 : i32
    %652 = arith.subi %c0_i32_515, %1 : i32
    %c-2_i32_516 = arith.constant -2 : i32
    %653 = arith.cmpi eq, %652, %c-2_i32_516 : i32
    %cst_517 = arith.constant 0.000000e+00 : f32
    %654 = arith.select %653, %7, %cst_517 : f32
    %655 = arith.subf %651, %654 : f32
    %c0_i32_518 = arith.constant 0 : i32
    %656 = arith.subi %c0_i32_518, %1 : i32
    %c1_i32_519 = arith.constant 1 : i32
    %657 = arith.subi %656, %c1_i32_519 : i32
    %c-2_i32_520 = arith.constant -2 : i32
    %658 = arith.cmpi eq, %657, %c-2_i32_520 : i32
    %cst_521 = arith.constant 0.000000e+00 : f32
    %659 = arith.select %658, %3, %cst_521 : f32
    %660 = arith.subf %655, %659 : f32
    %cst_522 = arith.constant 0.000000e+00 : f32
    %661 = arith.cmpf one, %645, %cst_522 : f32
    %cst_523 = arith.constant 0.000000e+00 : f32
    %662 = arith.cmpf one, %660, %cst_523 : f32
    %663 = arith.ori %661, %662 : i1
    %664 = arith.extui %663 : i1 to i32
    %cst_524 = arith.constant 1.000000e+00 : f32
    %c0_i32_525 = arith.constant 0 : i32
    %665 = arith.cmpi ne, %664, %c0_i32_525 : i32
    scf.if %665 {
      %c0_666 = arith.constant 0 : index
      %c1_667 = arith.constant 1 : index
      %829 = vector.load %arg5[%c0_666, %c1_667] : memref<16x22xf32, #tpu.memory_space<vmem>>, vector<16x16xf32>
      %c0_668 = arith.constant 0 : index
      %c1_669 = arith.constant 1 : index
      %830 = vector.load %arg6[%c0_668, %c1_669] : memref<16x22xf32, #tpu.memory_space<vmem>>, vector<16x16xf32>
      %c0_670 = arith.constant 0 : index
      %c0_671 = arith.constant 0 : index
      %831 = vector.load %arg7[%c0_670, %c0_671] : memref<16x16xf32, #tpu.memory_space<vmem>>, vector<16x16xf32>
      %832 = arith.mulf %cst_524, %660 : f32
      %833 = vector.broadcast %832 : f32 to vector<16x16xf32>
      %834 = arith.mulf %833, %829 : vector<16x16xf32>
      %835 = arith.addf %831, %834 : vector<16x16xf32>
      %c0_672 = arith.constant 0 : index
      %c0_673 = arith.constant 0 : index
      %836 = vector.load %arg7[%c0_672, %c0_673] : memref<16x16xf32, #tpu.memory_space<vmem>>, vector<16x16xf32>
      tpu.vector_store %arg7[%c0_672, %c0_673], %835 {strides = array<i32>} : memref<16x16xf32, #tpu.memory_space<vmem>>, vector<16x16xf32>,
      %c0_674 = arith.constant 0 : index
      %c0_675 = arith.constant 0 : index
      %837 = vector.load %arg8[%c0_674, %c0_675] : memref<16x16xf32, #tpu.memory_space<vmem>>, vector<16x16xf32>
      %838 = arith.mulf %cst_524, %645 : f32
      %839 = vector.broadcast %838 : f32 to vector<16x16xf32>
      %840 = arith.mulf %839, %830 : vector<16x16xf32>
      %841 = arith.addf %837, %840 : vector<16x16xf32>
      %c0_676 = arith.constant 0 : index
      %c0_677 = arith.constant 0 : index
      %842 = vector.load %arg8[%c0_676, %c0_677] : memref<16x16xf32, #tpu.memory_space<vmem>>, vector<16x16xf32>
      tpu.vector_store %arg8[%c0_676, %c0_677], %841 {strides = array<i32>} : memref<16x16xf32, #tpu.memory_space<vmem>>, vector<16x16xf32>,
    } else {
    }
    %c0_i32_526 = arith.constant 0 : i32
    %666 = arith.subi %c0_i32_526, %1 : i32
    %c1_i32_527 = arith.constant 1 : i32
    %667 = arith.subi %666, %c1_i32_527 : i32
    %c-1_i32_528 = arith.constant -1 : i32
    %668 = arith.cmpi eq, %667, %c-1_i32_528 : i32
    %cst_529 = arith.constant 0.000000e+00 : f32
    %669 = arith.select %668, %4, %cst_529 : f32
    %c0_i32_530 = arith.constant 0 : i32
    %670 = arith.subi %c0_i32_530, %1 : i32
    %c-1_i32_531 = arith.constant -1 : i32
    %671 = arith.cmpi eq, %670, %c-1_i32_531 : i32
    %cst_532 = arith.constant 0.000000e+00 : f32
    %672 = arith.select %671, %6, %cst_532 : f32
    %673 = arith.addf %669, %672 : f32
    %c-1_i32_533 = arith.constant -1 : i32
    %674 = arith.cmpi eq, %1, %c-1_i32_533 : i32
    %cst_534 = arith.constant 0.000000e+00 : f32
    %675 = arith.select %674, %6, %cst_534 : f32
    %676 = arith.addf %673, %675 : f32
    %c1_i32_535 = arith.constant 1 : i32
    %677 = arith.addi %1, %c1_i32_535 : i32
    %c-1_i32_536 = arith.constant -1 : i32
    %678 = arith.cmpi eq, %677, %c-1_i32_536 : i32
    %cst_537 = arith.constant 0.000000e+00 : f32
    %679 = arith.select %678, %4, %cst_537 : f32
    %680 = arith.addf %676, %679 : f32
    %c-1_i32_538 = arith.constant -1 : i32
    %681 = arith.cmpi eq, %1, %c-1_i32_538 : i32
    %cst_539 = arith.constant 0.000000e+00 : f32
    %682 = arith.select %681, %7, %cst_539 : f32
    %c1_i32_540 = arith.constant 1 : i32
    %683 = arith.addi %1, %c1_i32_540 : i32
    %c-1_i32_541 = arith.constant -1 : i32
    %684 = arith.cmpi eq, %683, %c-1_i32_541 : i32
    %cst_542 = arith.constant 0.000000e+00 : f32
    %685 = arith.select %684, %3, %cst_542 : f32
    %686 = arith.addf %682, %685 : f32
    %c0_i32_543 = arith.constant 0 : i32
    %687 = arith.subi %c0_i32_543, %1 : i32
    %c-1_i32_544 = arith.constant -1 : i32
    %688 = arith.cmpi eq, %687, %c-1_i32_544 : i32
    %cst_545 = arith.constant 0.000000e+00 : f32
    %689 = arith.select %688, %7, %cst_545 : f32
    %690 = arith.subf %686, %689 : f32
    %c0_i32_546 = arith.constant 0 : i32
    %691 = arith.subi %c0_i32_546, %1 : i32
    %c1_i32_547 = arith.constant 1 : i32
    %692 = arith.subi %691, %c1_i32_547 : i32
    %c-1_i32_548 = arith.constant -1 : i32
    %693 = arith.cmpi eq, %692, %c-1_i32_548 : i32
    %cst_549 = arith.constant 0.000000e+00 : f32
    %694 = arith.select %693, %3, %cst_549 : f32
    %695 = arith.subf %690, %694 : f32
    %cst_550 = arith.constant 0.000000e+00 : f32
    %696 = arith.cmpf one, %680, %cst_550 : f32
    %cst_551 = arith.constant 0.000000e+00 : f32
    %697 = arith.cmpf one, %695, %cst_551 : f32
    %698 = arith.ori %696, %697 : i1
    %699 = arith.extui %698 : i1 to i32
    %cst_552 = arith.constant 1.000000e+00 : f32
    %c0_i32_553 = arith.constant 0 : i32
    %700 = arith.cmpi ne, %699, %c0_i32_553 : i32
    scf.if %700 {
      %c0_666 = arith.constant 0 : index
      %c2_667 = arith.constant 2 : index
      %829 = vector.load %arg5[%c0_666, %c2_667] : memref<16x22xf32, #tpu.memory_space<vmem>>, vector<16x16xf32>
      %c0_668 = arith.constant 0 : index
      %c2_669 = arith.constant 2 : index
      %830 = vector.load %arg6[%c0_668, %c2_669] : memref<16x22xf32, #tpu.memory_space<vmem>>, vector<16x16xf32>
      %c0_670 = arith.constant 0 : index
      %c0_671 = arith.constant 0 : index
      %831 = vector.load %arg7[%c0_670, %c0_671] : memref<16x16xf32, #tpu.memory_space<vmem>>, vector<16x16xf32>
      %832 = arith.mulf %cst_552, %695 : f32
      %833 = vector.broadcast %832 : f32 to vector<16x16xf32>
      %834 = arith.mulf %833, %829 : vector<16x16xf32>
      %835 = arith.addf %831, %834 : vector<16x16xf32>
      %c0_672 = arith.constant 0 : index
      %c0_673 = arith.constant 0 : index
      %836 = vector.load %arg7[%c0_672, %c0_673] : memref<16x16xf32, #tpu.memory_space<vmem>>, vector<16x16xf32>
      tpu.vector_store %arg7[%c0_672, %c0_673], %835 {strides = array<i32>} : memref<16x16xf32, #tpu.memory_space<vmem>>, vector<16x16xf32>,
      %c0_674 = arith.constant 0 : index
      %c0_675 = arith.constant 0 : index
      %837 = vector.load %arg8[%c0_674, %c0_675] : memref<16x16xf32, #tpu.memory_space<vmem>>, vector<16x16xf32>
      %838 = arith.mulf %cst_552, %680 : f32
      %839 = vector.broadcast %838 : f32 to vector<16x16xf32>
      %840 = arith.mulf %839, %830 : vector<16x16xf32>
      %841 = arith.addf %837, %840 : vector<16x16xf32>
      %c0_676 = arith.constant 0 : index
      %c0_677 = arith.constant 0 : index
      %842 = vector.load %arg8[%c0_676, %c0_677] : memref<16x16xf32, #tpu.memory_space<vmem>>, vector<16x16xf32>
      tpu.vector_store %arg8[%c0_676, %c0_677], %841 {strides = array<i32>} : memref<16x16xf32, #tpu.memory_space<vmem>>, vector<16x16xf32>,
    } else {
    }
    %c0_i32_554 = arith.constant 0 : i32
    %701 = arith.subi %c0_i32_554, %1 : i32
    %c1_i32_555 = arith.constant 1 : i32
    %702 = arith.subi %701, %c1_i32_555 : i32
    %c1_i32_556 = arith.constant 1 : i32
    %703 = arith.cmpi eq, %702, %c1_i32_556 : i32
    %cst_557 = arith.constant 0.000000e+00 : f32
    %704 = arith.select %703, %4, %cst_557 : f32
    %c0_i32_558 = arith.constant 0 : i32
    %705 = arith.subi %c0_i32_558, %1 : i32
    %c1_i32_559 = arith.constant 1 : i32
    %706 = arith.cmpi eq, %705, %c1_i32_559 : i32
    %cst_560 = arith.constant 0.000000e+00 : f32
    %707 = arith.select %706, %6, %cst_560 : f32
    %708 = arith.addf %704, %707 : f32
    %c1_i32_561 = arith.constant 1 : i32
    %709 = arith.cmpi eq, %1, %c1_i32_561 : i32
    %cst_562 = arith.constant 0.000000e+00 : f32
    %710 = arith.select %709, %6, %cst_562 : f32
    %711 = arith.addf %708, %710 : f32
    %c1_i32_563 = arith.constant 1 : i32
    %712 = arith.addi %1, %c1_i32_563 : i32
    %c1_i32_564 = arith.constant 1 : i32
    %713 = arith.cmpi eq, %712, %c1_i32_564 : i32
    %cst_565 = arith.constant 0.000000e+00 : f32
    %714 = arith.select %713, %4, %cst_565 : f32
    %715 = arith.addf %711, %714 : f32
    %c1_i32_566 = arith.constant 1 : i32
    %716 = arith.cmpi eq, %1, %c1_i32_566 : i32
    %cst_567 = arith.constant 0.000000e+00 : f32
    %717 = arith.select %716, %7, %cst_567 : f32
    %c1_i32_568 = arith.constant 1 : i32
    %718 = arith.addi %1, %c1_i32_568 : i32
    %c1_i32_569 = arith.constant 1 : i32
    %719 = arith.cmpi eq, %718, %c1_i32_569 : i32
    %cst_570 = arith.constant 0.000000e+00 : f32
    %720 = arith.select %719, %3, %cst_570 : f32
    %721 = arith.addf %717, %720 : f32
    %c0_i32_571 = arith.constant 0 : i32
    %722 = arith.subi %c0_i32_571, %1 : i32
    %c1_i32_572 = arith.constant 1 : i32
    %723 = arith.cmpi eq, %722, %c1_i32_572 : i32
    %cst_573 = arith.constant 0.000000e+00 : f32
    %724 = arith.select %723, %7, %cst_573 : f32
    %725 = arith.subf %721, %724 : f32
    %c0_i32_574 = arith.constant 0 : i32
    %726 = arith.subi %c0_i32_574, %1 : i32
    %c1_i32_575 = arith.constant 1 : i32
    %727 = arith.subi %726, %c1_i32_575 : i32
    %c1_i32_576 = arith.constant 1 : i32
    %728 = arith.cmpi eq, %727, %c1_i32_576 : i32
    %cst_577 = arith.constant 0.000000e+00 : f32
    %729 = arith.select %728, %3, %cst_577 : f32
    %730 = arith.subf %725, %729 : f32
    %cst_578 = arith.constant 0.000000e+00 : f32
    %731 = arith.cmpf one, %715, %cst_578 : f32
    %cst_579 = arith.constant 0.000000e+00 : f32
    %732 = arith.cmpf one, %730, %cst_579 : f32
    %733 = arith.ori %731, %732 : i1
    %734 = arith.extui %733 : i1 to i32
    %cst_580 = arith.constant 1.000000e+00 : f32
    %c0_i32_581 = arith.constant 0 : i32
    %735 = arith.cmpi ne, %734, %c0_i32_581 : i32
    scf.if %735 {
      %c0_666 = arith.constant 0 : index
      %c4 = arith.constant 4 : index
      %829 = vector.load %arg5[%c0_666, %c4] : memref<16x22xf32, #tpu.memory_space<vmem>>, vector<16x16xf32>
      %c0_667 = arith.constant 0 : index
      %c4_668 = arith.constant 4 : index
      %830 = vector.load %arg6[%c0_667, %c4_668] : memref<16x22xf32, #tpu.memory_space<vmem>>, vector<16x16xf32>
      %c0_669 = arith.constant 0 : index
      %c0_670 = arith.constant 0 : index
      %831 = vector.load %arg7[%c0_669, %c0_670] : memref<16x16xf32, #tpu.memory_space<vmem>>, vector<16x16xf32>
      %832 = arith.mulf %cst_580, %730 : f32
      %833 = vector.broadcast %832 : f32 to vector<16x16xf32>
      %834 = arith.mulf %833, %829 : vector<16x16xf32>
      %835 = arith.addf %831, %834 : vector<16x16xf32>
      %c0_671 = arith.constant 0 : index
      %c0_672 = arith.constant 0 : index
      %836 = vector.load %arg7[%c0_671, %c0_672] : memref<16x16xf32, #tpu.memory_space<vmem>>, vector<16x16xf32>
      tpu.vector_store %arg7[%c0_671, %c0_672], %835 {strides = array<i32>} : memref<16x16xf32, #tpu.memory_space<vmem>>, vector<16x16xf32>,
      %c0_673 = arith.constant 0 : index
      %c0_674 = arith.constant 0 : index
      %837 = vector.load %arg8[%c0_673, %c0_674] : memref<16x16xf32, #tpu.memory_space<vmem>>, vector<16x16xf32>
      %838 = arith.mulf %cst_580, %715 : f32
      %839 = vector.broadcast %838 : f32 to vector<16x16xf32>
      %840 = arith.mulf %839, %830 : vector<16x16xf32>
      %841 = arith.addf %837, %840 : vector<16x16xf32>
      %c0_675 = arith.constant 0 : index
      %c0_676 = arith.constant 0 : index
      %842 = vector.load %arg8[%c0_675, %c0_676] : memref<16x16xf32, #tpu.memory_space<vmem>>, vector<16x16xf32>
      tpu.vector_store %arg8[%c0_675, %c0_676], %841 {strides = array<i32>} : memref<16x16xf32, #tpu.memory_space<vmem>>, vector<16x16xf32>,
    } else {
    }
    %c0_i32_582 = arith.constant 0 : i32
    %736 = arith.subi %c0_i32_582, %1 : i32
    %c1_i32_583 = arith.constant 1 : i32
    %737 = arith.subi %736, %c1_i32_583 : i32
    %c2_i32_584 = arith.constant 2 : i32
    %738 = arith.cmpi eq, %737, %c2_i32_584 : i32
    %cst_585 = arith.constant 0.000000e+00 : f32
    %739 = arith.select %738, %4, %cst_585 : f32
    %c0_i32_586 = arith.constant 0 : i32
    %740 = arith.subi %c0_i32_586, %1 : i32
    %c2_i32_587 = arith.constant 2 : i32
    %741 = arith.cmpi eq, %740, %c2_i32_587 : i32
    %cst_588 = arith.constant 0.000000e+00 : f32
    %742 = arith.select %741, %6, %cst_588 : f32
    %743 = arith.addf %739, %742 : f32
    %c2_i32_589 = arith.constant 2 : i32
    %744 = arith.cmpi eq, %1, %c2_i32_589 : i32
    %cst_590 = arith.constant 0.000000e+00 : f32
    %745 = arith.select %744, %6, %cst_590 : f32
    %746 = arith.addf %743, %745 : f32
    %c1_i32_591 = arith.constant 1 : i32
    %747 = arith.addi %1, %c1_i32_591 : i32
    %c2_i32_592 = arith.constant 2 : i32
    %748 = arith.cmpi eq, %747, %c2_i32_592 : i32
    %cst_593 = arith.constant 0.000000e+00 : f32
    %749 = arith.select %748, %4, %cst_593 : f32
    %750 = arith.addf %746, %749 : f32
    %c2_i32_594 = arith.constant 2 : i32
    %751 = arith.cmpi eq, %1, %c2_i32_594 : i32
    %cst_595 = arith.constant 0.000000e+00 : f32
    %752 = arith.select %751, %7, %cst_595 : f32
    %c1_i32_596 = arith.constant 1 : i32
    %753 = arith.addi %1, %c1_i32_596 : i32
    %c2_i32_597 = arith.constant 2 : i32
    %754 = arith.cmpi eq, %753, %c2_i32_597 : i32
    %cst_598 = arith.constant 0.000000e+00 : f32
    %755 = arith.select %754, %3, %cst_598 : f32
    %756 = arith.addf %752, %755 : f32
    %c0_i32_599 = arith.constant 0 : i32
    %757 = arith.subi %c0_i32_599, %1 : i32
    %c2_i32_600 = arith.constant 2 : i32
    %758 = arith.cmpi eq, %757, %c2_i32_600 : i32
    %cst_601 = arith.constant 0.000000e+00 : f32
    %759 = arith.select %758, %7, %cst_601 : f32
    %760 = arith.subf %756, %759 : f32
    %c0_i32_602 = arith.constant 0 : i32
    %761 = arith.subi %c0_i32_602, %1 : i32
    %c1_i32_603 = arith.constant 1 : i32
    %762 = arith.subi %761, %c1_i32_603 : i32
    %c2_i32_604 = arith.constant 2 : i32
    %763 = arith.cmpi eq, %762, %c2_i32_604 : i32
    %cst_605 = arith.constant 0.000000e+00 : f32
    %764 = arith.select %763, %3, %cst_605 : f32
    %765 = arith.subf %760, %764 : f32
    %cst_606 = arith.constant 0.000000e+00 : f32
    %766 = arith.cmpf one, %750, %cst_606 : f32
    %cst_607 = arith.constant 0.000000e+00 : f32
    %767 = arith.cmpf one, %765, %cst_607 : f32
    %768 = arith.ori %766, %767 : i1
    %769 = arith.extui %768 : i1 to i32
    %cst_608 = arith.constant 1.000000e+00 : f32
    %c0_i32_609 = arith.constant 0 : i32
    %770 = arith.cmpi ne, %769, %c0_i32_609 : i32
    scf.if %770 {
      %c0_666 = arith.constant 0 : index
      %c5 = arith.constant 5 : index
      %829 = vector.load %arg5[%c0_666, %c5] : memref<16x22xf32, #tpu.memory_space<vmem>>, vector<16x16xf32>
      %c0_667 = arith.constant 0 : index
      %c5_668 = arith.constant 5 : index
      %830 = vector.load %arg6[%c0_667, %c5_668] : memref<16x22xf32, #tpu.memory_space<vmem>>, vector<16x16xf32>
      %c0_669 = arith.constant 0 : index
      %c0_670 = arith.constant 0 : index
      %831 = vector.load %arg7[%c0_669, %c0_670] : memref<16x16xf32, #tpu.memory_space<vmem>>, vector<16x16xf32>
      %832 = arith.mulf %cst_608, %765 : f32
      %833 = vector.broadcast %832 : f32 to vector<16x16xf32>
      %834 = arith.mulf %833, %829 : vector<16x16xf32>
      %835 = arith.addf %831, %834 : vector<16x16xf32>
      %c0_671 = arith.constant 0 : index
      %c0_672 = arith.constant 0 : index
      %836 = vector.load %arg7[%c0_671, %c0_672] : memref<16x16xf32, #tpu.memory_space<vmem>>, vector<16x16xf32>
      tpu.vector_store %arg7[%c0_671, %c0_672], %835 {strides = array<i32>} : memref<16x16xf32, #tpu.memory_space<vmem>>, vector<16x16xf32>,
      %c0_673 = arith.constant 0 : index
      %c0_674 = arith.constant 0 : index
      %837 = vector.load %arg8[%c0_673, %c0_674] : memref<16x16xf32, #tpu.memory_space<vmem>>, vector<16x16xf32>
      %838 = arith.mulf %cst_608, %750 : f32
      %839 = vector.broadcast %838 : f32 to vector<16x16xf32>
      %840 = arith.mulf %839, %830 : vector<16x16xf32>
      %841 = arith.addf %837, %840 : vector<16x16xf32>
      %c0_675 = arith.constant 0 : index
      %c0_676 = arith.constant 0 : index
      %842 = vector.load %arg8[%c0_675, %c0_676] : memref<16x16xf32, #tpu.memory_space<vmem>>, vector<16x16xf32>
      tpu.vector_store %arg8[%c0_675, %c0_676], %841 {strides = array<i32>} : memref<16x16xf32, #tpu.memory_space<vmem>>, vector<16x16xf32>,
    } else {
    }
    %c0_i32_610 = arith.constant 0 : i32
    %771 = arith.subi %c0_i32_610, %1 : i32
    %c1_i32_611 = arith.constant 1 : i32
    %772 = arith.subi %771, %c1_i32_611 : i32
    %c3_i32_612 = arith.constant 3 : i32
    %773 = arith.cmpi eq, %772, %c3_i32_612 : i32
    %cst_613 = arith.constant 0.000000e+00 : f32
    %774 = arith.select %773, %4, %cst_613 : f32
    %c0_i32_614 = arith.constant 0 : i32
    %775 = arith.subi %c0_i32_614, %1 : i32
    %c3_i32_615 = arith.constant 3 : i32
    %776 = arith.cmpi eq, %775, %c3_i32_615 : i32
    %cst_616 = arith.constant 0.000000e+00 : f32
    %777 = arith.select %776, %6, %cst_616 : f32
    %778 = arith.addf %774, %777 : f32
    %c3_i32_617 = arith.constant 3 : i32
    %779 = arith.cmpi eq, %1, %c3_i32_617 : i32
    %cst_618 = arith.constant 0.000000e+00 : f32
    %780 = arith.select %779, %6, %cst_618 : f32
    %781 = arith.addf %778, %780 : f32
    %c1_i32_619 = arith.constant 1 : i32
    %782 = arith.addi %1, %c1_i32_619 : i32
    %c3_i32_620 = arith.constant 3 : i32
    %783 = arith.cmpi eq, %782, %c3_i32_620 : i32
    %cst_621 = arith.constant 0.000000e+00 : f32
    %784 = arith.select %783, %4, %cst_621 : f32
    %785 = arith.addf %781, %784 : f32
    %c3_i32_622 = arith.constant 3 : i32
    %786 = arith.cmpi eq, %1, %c3_i32_622 : i32
    %cst_623 = arith.constant 0.000000e+00 : f32
    %787 = arith.select %786, %7, %cst_623 : f32
    %c1_i32_624 = arith.constant 1 : i32
    %788 = arith.addi %1, %c1_i32_624 : i32
    %c3_i32_625 = arith.constant 3 : i32
    %789 = arith.cmpi eq, %788, %c3_i32_625 : i32
    %cst_626 = arith.constant 0.000000e+00 : f32
    %790 = arith.select %789, %3, %cst_626 : f32
    %791 = arith.addf %787, %790 : f32
    %c0_i32_627 = arith.constant 0 : i32
    %792 = arith.subi %c0_i32_627, %1 : i32
    %c3_i32_628 = arith.constant 3 : i32
    %793 = arith.cmpi eq, %792, %c3_i32_628 : i32
    %cst_629 = arith.constant 0.000000e+00 : f32
    %794 = arith.select %793, %7, %cst_629 : f32
    %795 = arith.subf %791, %794 : f32
    %c0_i32_630 = arith.constant 0 : i32
    %796 = arith.subi %c0_i32_630, %1 : i32
    %c1_i32_631 = arith.constant 1 : i32
    %797 = arith.subi %796, %c1_i32_631 : i32
    %c3_i32_632 = arith.constant 3 : i32
    %798 = arith.cmpi eq, %797, %c3_i32_632 : i32
    %cst_633 = arith.constant 0.000000e+00 : f32
    %799 = arith.select %798, %3, %cst_633 : f32
    %800 = arith.subf %795, %799 : f32
    %cst_634 = arith.constant 0.000000e+00 : f32
    %801 = arith.cmpf one, %785, %cst_634 : f32
    %cst_635 = arith.constant 0.000000e+00 : f32
    %802 = arith.cmpf one, %800, %cst_635 : f32
    %803 = arith.ori %801, %802 : i1
    %804 = arith.extui %803 : i1 to i32
    %cst_636 = arith.constant 1.000000e+00 : f32
    %c0_i32_637 = arith.constant 0 : i32
    %805 = arith.cmpi ne, %804, %c0_i32_637 : i32
    scf.if %805 {
      %c0_666 = arith.constant 0 : index
      %c6 = arith.constant 6 : index
      %829 = vector.load %arg5[%c0_666, %c6] : memref<16x22xf32, #tpu.memory_space<vmem>>, vector<16x16xf32>
      %c0_667 = arith.constant 0 : index
      %c6_668 = arith.constant 6 : index
      %830 = vector.load %arg6[%c0_667, %c6_668] : memref<16x22xf32, #tpu.memory_space<vmem>>, vector<16x16xf32>
      %c0_669 = arith.constant 0 : index
      %c0_670 = arith.constant 0 : index
      %831 = vector.load %arg7[%c0_669, %c0_670] : memref<16x16xf32, #tpu.memory_space<vmem>>, vector<16x16xf32>
      %832 = arith.mulf %cst_636, %800 : f32
      %833 = vector.broadcast %832 : f32 to vector<16x16xf32>
      %834 = arith.mulf %833, %829 : vector<16x16xf32>
      %835 = arith.addf %831, %834 : vector<16x16xf32>
      %c0_671 = arith.constant 0 : index
      %c0_672 = arith.constant 0 : index
      %836 = vector.load %arg7[%c0_671, %c0_672] : memref<16x16xf32, #tpu.memory_space<vmem>>, vector<16x16xf32>
      tpu.vector_store %arg7[%c0_671, %c0_672], %835 {strides = array<i32>} : memref<16x16xf32, #tpu.memory_space<vmem>>, vector<16x16xf32>,
      %c0_673 = arith.constant 0 : index
      %c0_674 = arith.constant 0 : index
      %837 = vector.load %arg8[%c0_673, %c0_674] : memref<16x16xf32, #tpu.memory_space<vmem>>, vector<16x16xf32>
      %838 = arith.mulf %cst_636, %785 : f32
      %839 = vector.broadcast %838 : f32 to vector<16x16xf32>
      %840 = arith.mulf %839, %830 : vector<16x16xf32>
      %841 = arith.addf %837, %840 : vector<16x16xf32>
      %c0_675 = arith.constant 0 : index
      %c0_676 = arith.constant 0 : index
      %842 = vector.load %arg8[%c0_675, %c0_676] : memref<16x16xf32, #tpu.memory_space<vmem>>, vector<16x16xf32>
      tpu.vector_store %arg8[%c0_675, %c0_676], %841 {strides = array<i32>} : memref<16x16xf32, #tpu.memory_space<vmem>>, vector<16x16xf32>,
    } else {
    }
    %c0_638 = arith.constant 0 : index
    %c0_639 = arith.constant 0 : index
    %806 = vector.load %arg7[%c0_638, %c0_639] : memref<16x16xf32, #tpu.memory_space<vmem>>, vector<16x16xf32>
    %c0_640 = arith.constant 0 : index
    %c0_641 = arith.constant 0 : index
    %807 = vector.load %arg8[%c0_640, %c0_641] : memref<16x16xf32, #tpu.memory_space<vmem>>, vector<16x16xf32>
    %c0_642 = arith.constant 0 : index
    %c0_643 = arith.constant 0 : index
    %c0_644 = arith.constant 0 : index
    %c0_645 = arith.constant 0 : index
    %808 = vector.load %arg4[%c0_642, %c0_643, %c0_644, %c0_645] : memref<1x3x16x16xf32, #tpu.memory_space<vmem>>, vector<1x1x16x16xf32>
    %809 = vector.shape_cast %808 : vector<1x1x16x16xf32> to vector<16x16xf32>
    %810 = arith.mulf %806, %806 : vector<16x16xf32>
    %811 = arith.addf %809, %810 : vector<16x16xf32>
    %c0_646 = arith.constant 0 : index
    %c0_647 = arith.constant 0 : index
    %c0_648 = arith.constant 0 : index
    %c0_649 = arith.constant 0 : index
    %812 = vector.load %arg4[%c0_646, %c0_647, %c0_648, %c0_649] : memref<1x3x16x16xf32, #tpu.memory_space<vmem>>, vector<1x1x16x16xf32>
    %813 = vector.shape_cast %812 : vector<1x1x16x16xf32> to vector<16x16xf32>
    %814 = vector.shape_cast %811 : vector<16x16xf32> to vector<1x1x16x16xf32>
    tpu.vector_store %arg4[%c0_646, %c0_647, %c0_648, %c0_649], %814 {strides = array<i32>} : memref<1x3x16x16xf32, #tpu.memory_space<vmem>>, vector<1x1x16x16xf32>,
    %c0_650 = arith.constant 0 : index
    %c1_651 = arith.constant 1 : index
    %c0_652 = arith.constant 0 : index
    %c0_653 = arith.constant 0 : index
    %815 = vector.load %arg4[%c0_650, %c1_651, %c0_652, %c0_653] : memref<1x3x16x16xf32, #tpu.memory_space<vmem>>, vector<1x1x16x16xf32>
    %816 = vector.shape_cast %815 : vector<1x1x16x16xf32> to vector<16x16xf32>
    %817 = arith.mulf %807, %807 : vector<16x16xf32>
    %818 = arith.addf %816, %817 : vector<16x16xf32>
    %c0_654 = arith.constant 0 : index
    %c1_655 = arith.constant 1 : index
    %c0_656 = arith.constant 0 : index
    %c0_657 = arith.constant 0 : index
    %819 = vector.load %arg4[%c0_654, %c1_655, %c0_656, %c0_657] : memref<1x3x16x16xf32, #tpu.memory_space<vmem>>, vector<1x1x16x16xf32>
    %820 = vector.shape_cast %819 : vector<1x1x16x16xf32> to vector<16x16xf32>
    %821 = vector.shape_cast %818 : vector<16x16xf32> to vector<1x1x16x16xf32>
    tpu.vector_store %arg4[%c0_654, %c1_655, %c0_656, %c0_657], %821 {strides = array<i32>} : memref<1x3x16x16xf32, #tpu.memory_space<vmem>>, vector<1x1x16x16xf32>,
    %c0_658 = arith.constant 0 : index
    %c2_659 = arith.constant 2 : index
    %c0_660 = arith.constant 0 : index
    %c0_661 = arith.constant 0 : index
    %822 = vector.load %arg4[%c0_658, %c2_659, %c0_660, %c0_661] : memref<1x3x16x16xf32, #tpu.memory_space<vmem>>, vector<1x1x16x16xf32>
    %823 = vector.shape_cast %822 : vector<1x1x16x16xf32> to vector<16x16xf32>
    %824 = arith.mulf %806, %807 : vector<16x16xf32>
    %825 = arith.addf %823, %824 : vector<16x16xf32>
    %c0_662 = arith.constant 0 : index
    %c2_663 = arith.constant 2 : index
    %c0_664 = arith.constant 0 : index
    %c0_665 = arith.constant 0 : index
    %826 = vector.load %arg4[%c0_662, %c2_663, %c0_664, %c0_665] : memref<1x3x16x16xf32, #tpu.memory_space<vmem>>, vector<1x1x16x16xf32>
    %827 = vector.shape_cast %826 : vector<1x1x16x16xf32> to vector<16x16xf32>
    %828 = vector.shape_cast %825 : vector<16x16xf32> to vector<1x1x16x16xf32>
    tpu.vector_store %arg4[%c0_662, %c2_663, %c0_664, %c0_665], %828 {strides = array<i32>} : memref<1x3x16x16xf32, #tpu.memory_space<vmem>>, vector<1x1x16x16xf32>,
    return
  }
  func.func @transform_0(%arg0: i32, %arg1: memref<2xi32, #tpu.memory_space<smem>>, %arg2: memref<2xf32, #tpu.memory_space<smem>>) -> (i32, i32, i32, i32) {
    %c0_i32 = arith.constant 0 : i32
    %c0_i32_0 = arith.constant 0 : i32
    %c0_i32_1 = arith.constant 0 : i32
    %c0_i32_2 = arith.constant 0 : i32
    return %arg0, %c0_i32, %c0_i32_0, %c0_i32_1 : i32, i32, i32, i32
  }
  func.func @transform_1(%arg0: i32, %arg1: memref<2xi32, #tpu.memory_space<smem>>, %arg2: memref<2xf32, #tpu.memory_space<smem>>) -> (i32, i32, i32, i32) {
    %c0_i32 = arith.constant 0 : i32
    %c0_i32_0 = arith.constant 0 : i32
    %c0_i32_1 = arith.constant 0 : i32
    %c0_i32_2 = arith.constant 0 : i32
    return %arg0, %c0_i32, %c0_i32_0, %c0_i32_1 : i32, i32, i32, i32
  }
}

</mosaic_0001>

<llo_original>
// kernel: tpu_custom_call.1
$region0: #{tpu_custom_call.1}
  #allocation0 [shape = 'u32[]', space=smem, size = 0x4, offset = 0x4, fixed_abs, tag = 'smem constant byte address 0x4 - core index']
  #allocation1 [shape = 'u32[144,128]{1,0:T(1,128)}', space=vmem, size = 0x12000, scoped, tag = 'internal scratch']
  #allocation2 [shape = 'f32[16,22]{1,0:T(8,128)}', space=vmem, size = 0x2000, scoped, tag = 'scratch operand']
  #allocation3 [shape = 'f32[16,22]{1,0:T(8,128)}', space=vmem, size = 0x2000, scoped, tag = 'scratch operand']
  #allocation4 [shape = 'f32[16,16]{1,0:T(8,128)}', space=vmem, size = 0x2000, scoped, tag = 'scratch operand']
  #allocation5 [shape = 'f32[16,16]{1,0:T(8,128)}', space=vmem, size = 0x2000, scoped, tag = 'scratch operand']
  #allocation6 [shape = 's32[1]{0}', space=sflag, size = 0x4, scoped, tag = 'scoped memory for tpu_custom_call.1']
  #allocation7 [shape = 'u8[512]{0}', space=smem, size = 0x200, scoped, tag = 'prefetched SMEM operand 0']
  #allocation8 [shape = 'u8[512]{0}', space=smem, size = 0x200, scoped, tag = 'prefetched SMEM operand 1']
  %s0 = inlined_call_operand.hbm [shape: s32[2], index: 0, kind: input, shape index: {}]
  %s1 = inlined_call_operand.hbm [shape: f32[2], index: 1, kind: input, shape index: {}]
  %s2 = inlined_call_operand.hbm [shape: f32[2,3,22,22], index: 2, kind: input, shape index: {}]
  %s3 = inlined_call_operand.hbm [shape: f32[2,3,16,16], index: 3, kind: output, shape index: {}]
  %s4 = sld [smem:[#allocation0]]
  $region113: #{tpu_custom_call.1} parent=0
    _
  %s6 = ssub.s32 1, %s4
  %s7 = scalar_select 0, %s6, %s4
  %9 = dma.hbm_to_smem %s0, 16, [#allocation7], [#allocation6]
  %11 = dma.hbm_to_smem %s1, 16, [#allocation8], [#allocation6]
  %12 = dma.done [#allocation6], 32
  %13 = sfence
  $region1: #{tpu_custom_call.1} parent=0
    #allocation9 [shape = 'u8[73728]{0}', space=vmem, size = 0x12000, scoped, tag = 'input window, operand 2']
    #allocation10 [shape = 's32[2]{0}', space=sflag, size = 0x8, scoped, tag = 'scoped memory for tpu_custom_call.1']
    #allocation11 [shape = 's32[2]{0}', space=sflag, size = 0x8, scoped, tag = 'scoped memory for tpu_custom_call.1']
    #allocation12 [shape = 'u8[49152]{0}', space=vmem, size = 0xc000, scoped, tag = 'output window, operand 0']
    %14 = vsyncpa [#allocation10], 0
    %s15 = scalar_lea.sflag [#allocation10], 1
    %16 = vsyncpa %s15, 0
    %17 = vsyncpa [#allocation11], 0
    %s18 = scalar_lea.sflag [#allocation11], 1
    %19 = vsyncpa %s18, 0
    loop: start=0, step=1, limit=4
    $region2: #{tpu_custom_call.1} parent=1 // loop_pre_header
      _
    $region3: #{tpu_custom_call.1} parent=1 // loop_header
      %s21 = sphi 0, %s25
      %p22 = scmp.ge.s32.totalorder %s21, 4
      %s31 = sphi 0, %s33
      %s34 = sphi 0, %s31
      %s35 = sphi 0, %s34
      %s51 = sphi 0, %s35
      %s57 = sphi 0, %s59
      %s60 = sphi 0, %s57
      %s61 = sphi 0, %s60
      %s77 = sphi 0, %s61
    $region4: #{tpu_custom_call.1} parent=1 // loop_header_branch
      %24 = sbr.rel (%p22) target = $region8
    $region5: #{tpu_custom_call.1} parent=1 // loop_body
      %s26 = ssub.s32 %s21, 1
      %s27 = ssub.s32 %s21, 2
      %s28 = sadd.s32 %s21, 1
      %s29 = ssub.s32 %s21, %s28
      %p30 = scmp.eq.s32.totalorder %s29, 0
      %s32 = sadd.s32 %s31, 1
      %s33 = scalar_select %p30, %s31, %s32
      %p36 = pneg %p30
      %p37 = scmp.eq.s32.totalorder %s21, 1
      %p38 = por %p36, %p37
      %p39 = scmp.ne.s32.totalorder %s31, %s34
      %p40 = scmp.eq.s32.totalorder %s21, 0
      %p41 = por %p39, %p40
      %p42 = scmp.ne.s32.totalorder %s31, %s34
      %p43 = scmp.eq.s32.totalorder %s26, 1
      %p44 = por %p42, %p43
      %p45 = scmp.ne.s32.totalorder %s34, %s35
      %p46 = scmp.eq.s32.totalorder %s26, 0
      %p47 = por %p45, %p46
      %p48 = scmp.ne.s32.totalorder %s34, %s35
      %p49 = scmp.eq.s32.totalorder %s27, 1
      %p50 = por %p48, %p49
      %p52 = scmp.ne.s32.totalorder %s35, %s51
      %p53 = scmp.eq.s32.totalorder %s27, 0
      %p54 = por %p52, %p53
      %s55 = ssub.s32 %s21, %s28
      %p56 = scmp.eq.s32.totalorder %s55, 0
      %s58 = sadd.s32 %s57, 1
      %s59 = scalar_select %p56, %s57, %s58
      %p62 = pneg %p56
      %p63 = scmp.eq.s32.totalorder %s21, 1
      %p64 = por %p62, %p63
      %p65 = scmp.ne.s32.totalorder %s57, %s60
      %p66 = scmp.eq.s32.totalorder %s21, 0
      %p67 = por %p65, %p66
      %p68 = scmp.ne.s32.totalorder %s57, %s60
      %p69 = scmp.eq.s32.totalorder %s26, 1
      %p70 = por %p68, %p69
      %p71 = scmp.ne.s32.totalorder %s60, %s61
      %p72 = scmp.eq.s32.totalorder %s26, 0
      %p73 = por %p71, %p72
      %p74 = scmp.ne.s32.totalorder %s60, %s61
      %p75 = scmp.eq.s32.totalorder %s27, 1
      %p76 = por %p74, %p75
      %p78 = scmp.ne.s32.totalorder %s61, %s77
      %p79 = scmp.eq.s32.totalorder %s27, 0
      %p80 = por %p78, %p79
      %p81 = scmp.le.s32.totalorder 1, %s21
      %p82 = scmp.lt.s32.totalorder %s21, 3
      %p83 = pnand %p81, %p82
      %p84 = pneg %p83
      // Predicated region
      $region9: #{tpu_custom_call.1} parent=5 // pred_check
        _
      $region10: #{tpu_custom_call.1} parent=5 // pred_check_branch
        %86 = sbr.rel (%p83) target = $region12
      $region11: #{tpu_custom_call.1} parent=5 // pred_region
        %s87 = ssub.s32 %s21, 1
      $region12: #{tpu_custom_call.1} parent=5 // pred_fallthru
        _
      %p88 = scmp.lt.s32.totalorder %s21, 2
      // Predicated region
      $region13: #{tpu_custom_call.1} parent=5 // pred_check
        %p89 = pneg %p88
      $region14: #{tpu_custom_call.1} parent=5 // pred_check_branch
        %91 = sbr.rel (%p89) target = $region16
      $region15: #{tpu_custom_call.1} parent=5 // pred_region
        // Predicated region
        $region17: #{tpu_custom_call.1} parent=15 // pred_check
          %p92 = pneg %p41
        $region18: #{tpu_custom_call.1} parent=15 // pred_check_branch
          %94 = sbr.rel (%p92) target = $region20
        $region19: #{tpu_custom_call.1} parent=15 // pred_region
          %s95 = sand.u32 %s31, 1
          %s96 = scalar_lea.sflag [#allocation10], %s95
          %s97 = sand.u32 %s31, 1
          %s98 = smul.addr %s97, 72
          %s99 = scalar_lea.vmem [#allocation9], %s98
          %s101 = ssub.s32 1152, 1152
          %102 = vsyncadd %s96, %s101
          %s103 = smul.addr %s21, 9
          %s104 = smul.addr %s103, 128
          %s105 = scalar_lea.hbm %s2, %s104
          %s106 = sshll.u32 %s99, 4
          %s107 = int_to_ptr.vmem [resolvable:$true] %s106
          %112 = dma.hbm_to_vmem [thread:$0]  %s105, 1152, %s107, %s96, 128, 128, 8
        $region20: #{tpu_custom_call.1} parent=15 // pred_fallthru
          _
      $region16: #{tpu_custom_call.1} parent=5 // pred_fallthru
        _
      %p113 = scmp.le.s32.totalorder 1, %s21
      %p114 = scmp.lt.s32.totalorder %s21, 3
      %p115 = pnand %p113, %p114
      %p116 = pneg %p115
      // Predicated region
      $region21: #{tpu_custom_call.1} parent=5 // pred_check
        _
      $region22: #{tpu_custom_call.1} parent=5 // pred_check_branch
        %118 = sbr.rel (%p115) target = $region24
      $region23: #{tpu_custom_call.1} parent=5 // pred_region
        %s119 = ssub.s32 %s21, 1
        %s120 = sand.u32 %s34, 1
        %s121 = scalar_lea.sflag [#allocation10], %s120
        %s122 = sand.u32 %s34, 1
        %s123 = smul.addr %s122, 72
        %s124 = scalar_lea.vmem [#allocation9], %s123
        // Predicated region
        $region25: #{tpu_custom_call.1} parent=23 // pred_check
          %p125 = pneg %p47
        $region26: #{tpu_custom_call.1} parent=23 // pred_check_branch
          %127 = sbr.rel (%p125) target = $region28
        $region27: #{tpu_custom_call.1} parent=23 // pred_region
          %128 = dma.done %s121, 1152
        $region28: #{tpu_custom_call.1} parent=23 // pred_fallthru
          _
        %s129 = sand.u32 %s34, 1
        %s130 = scalar_lea.sflag [#allocation10], %s129
        %s131 = sand.u32 %s34, 1
        %s132 = smul.addr %s131, 72
        %s133 = scalar_lea.vmem [#allocation9], %s132
        %p134 = pneg %p47
        %p135 = pneg %p44
        %p136 = pneg %p73
        %p137 = pneg %p70
        %s138 = sand.u32 %s60, 1
        %s139 = scalar_lea.sflag [#allocation11], %s138
        %s140 = sand.u32 %s60, 1
        %s141 = smul.addr %s140, 48
        %s142 = scalar_lea.vmem [#allocation12], %s141
        %s143 = sld [smem:[#allocation7 + %s26]]
        %s144 = sld [smem:[#allocation8 + %s26]]
        %s145 = smul.f32 %s144, 0.25
        %s146 = ssub.f32 1.0, %s144
        %s147 = smul.f32 %s146, 0.25
        %s148 = ssub.s32 2, %s143
        %s149 = ssub.s32 3, %s143
        %s150 = sadd.s32 %s143, 3
        %s151 = sadd.s32 %s143, 4
        %p152 = scmp.eq.s32.totalorder %s143, 0
        %s153 = smul.f32 %s146, 0.5
        %s154 = scalar_select %p152, %s153, 0.0
        %s155 = sadd.f32 %s154, 0.5
        %s156 = scalar_lea.vmem %s124, %s148 [#allocation9]
        %v157 = vld [vmem:[%s156] sm:$0xff]
        %v158 = vld [vmem:[%s156 + $0x8] sm:$0xff]
        %s159 = scalar_lea.vmem %s124, %s149 [#allocation9]
        %v160 = vld [vmem:[%s159] sm:$0xff]
        %v161 = vld [vmem:[%s159 + $0x8] sm:$0xff]
        %v162 = vld [vmem:[%s124 + $0x3] sm:$0xff]
        %v163 = vld [vmem:[%s124 + $0xb] sm:$0xff]
        %s164 = scalar_lea.vmem %s124, %s150 [#allocation9]
        %v165 = vld [vmem:[%s164] sm:$0xff]
        %v166 = vld [vmem:[%s164 + $0x8] sm:$0xff]
        %s167 = scalar_lea.vmem %s124, %s151 [#allocation9]
        %v168 = vld [vmem:[%s167] sm:$0xff]
        %v169 = vld [vmem:[%s167 + $0x8] sm:$0xff]
        %v170 = vadd.f32 %v157, %v168
        %v171 = vadd.f32 %v158, %v169
        %v172 = vstv %s145
        %v173 = vmul.f32 %v172, %v170
        %v174 = vmul.f32 %v172, %v171
        %v175 = vadd.f32 %v160, %v165
        %v176 = vadd.f32 %v161, %v166
        %v177 = vstv %s147
        %v178 = vmul.f32 %v177, %v175
        %v179 = vmul.f32 %v177, %v176
        %v180 = vadd.f32 %v173, %v178
        %v181 = vadd.f32 %v174, %v179
        %v182 = vmul.f32 %v162, 0.5
        %v183 = vmul.f32 %v163, 0.5
        %v184 = vadd.f32 %v180, %v182
        %v185 = vadd.f32 %v181, %v183
        %vm186 = vcmask 179200
        %187 = vst.msk [vmem:[#allocation2] sm:$0xff] %vm186, %v184
        %188 = vst.msk [vmem:[#allocation2 + $0x8] sm:$0xff] %vm186, %v185
        %v189 = vsub.f32 %v168, %v157
        %v190 = vsub.f32 %v169, %v158
        %v191 = vstv %s144
        %v192 = vmul.f32 %v191, %v189
        %v193 = vmul.f32 %v191, %v190
        %v194 = vsub.f32 %v165, %v160
        %v195 = vsub.f32 %v166, %v161
        %v196 = vstv %s146
        %v197 = vmul.f32 %v196, %v194
        %v198 = vmul.f32 %v196, %v195
        %v199 = vadd.f32 %v192, %v197
        %v200 = vadd.f32 %v193, %v198
        %201 = vst.msk [vmem:[#allocation3] sm:$0xff] %vm186, %v199
        %202 = vst.msk [vmem:[#allocation3 + $0x8] sm:$0xff] %vm186, %v200
        %vm203 = vcmask 130048
        %204 = vst.msk [vmem:[#allocation4] sm:$0xff] %vm203, 0.0
        %205 = vst.msk [vmem:[#allocation4 + $0x8] sm:$0xff] %vm203, 0.0
        %s206 = smul.f32 %s155, 100.0
        %v207 = vld [vmem:[#allocation3] sm:$0xff]
        %v208 = vld [vmem:[#allocation3 + $0x8] sm:$0xff]
        %v209 = vstv %s206
        %v210 = vmul.f32 %v209, %v207
        %v211 = vmul.f32 %v209, %v208
        %214 = vrot.lane.b32.xlu0 %v210, 125
        %v215 = vpop.permute.xlu0 %214
        %216 = vrot.lane.b32.xlu0 %v211, 125
        %v217 = vpop.permute.xlu0 %216
        %220 = vst.msk [vmem:[#allocation5] sm:$0xff] %vm203, %v215
        %221 = vst.msk [vmem:[#allocation5 + $0x8] sm:$0xff] %vm203, %v217
        %s222 = ssub.s32 4294967295, %s143
        %p223 = scmp.eq.s32.totalorder %s222, 4294967293
        %s224 = scalar_select %p223, %s145, 0.0
        %s225 = ssub.s32 0, %s143
        %p226 = scmp.eq.s32.totalorder %s225, 4294967293
        %s227 = scalar_select %p226, %s147, 0.0
        %s228 = sadd.f32 %s224, %s227
        %p229 = scmp.eq.s32.totalorder %s143, 4294967293
        %s230 = scalar_select %p229, %s147, 0.0
        %s231 = sadd.f32 %s228, %s230
        %s232 = sadd.s32 %s143, 1
        %p233 = scmp.eq.s32.totalorder %s232, 4294967293
        %s234 = scalar_select %p233, %s145, 0.0
        %s235 = sadd.f32 %s231, %s234
        %s236 = scalar_select %p229, %s146, 0.0
        %s237 = scalar_select %p233, %s144, 0.0
        %s238 = sadd.f32 %s236, %s237
        %s239 = scalar_select %p226, %s146, 0.0
        %s240 = ssub.f32 %s238, %s239
        %s241 = scalar_select %p223, %s144, 0.0
        %s242 = ssub.f32 %s240, %s241
        %p243 = scmp.ne.f32.partialorder %s235, 0.0
        %p244 = scmp.ne.f32.partialorder %s242, 0.0
        %p245 = por %p243, %p244
        // Predicated region
        $region29: #{tpu_custom_call.1} parent=23 // pred_check
          %p246 = pneg %p245
        $region30: #{tpu_custom_call.1} parent=23 // pred_check_branch
          %248 = sbr.rel (%p246) target = $region32
        $region31: #{tpu_custom_call.1} parent=23 // pred_region
          %v249 = vld [vmem:[#allocation2] sm:$0xff]
          %v250 = vld [vmem:[#allocation2 + $0x8] sm:$0xff]
          %v251 = vld [vmem:[#allocation3] sm:$0xff]
          %v252 = vld [vmem:[#allocation3 + $0x8] sm:$0xff]
          %v253 = vld [vmem:[#allocation4] sm:$0xff]
          %v254 = vld [vmem:[#allocation4 + $0x8] sm:$0xff]
          %s255 = smul.f32 %s242, 100.0
          %v256 = vstv %s255
          %v257 = vmul.f32 %v256, %v249
          %v258 = vmul.f32 %v256, %v250
          %v259 = vadd.f32 %v253, %v257
          %v260 = vadd.f32 %v254, %v258
          %261 = vst.msk [vmem:[#allocation4] sm:$0xff] %vm203, %v259
          %262 = vst.msk [vmem:[#allocation4 + $0x8] sm:$0xff] %vm203, %v260
          %v263 = vld [vmem:[#allocation5] sm:$0xff]
          %v264 = vld [vmem:[#allocation5 + $0x8] sm:$0xff]
          %s265 = smul.f32 %s235, 100.0
          %v266 = vstv %s265
          %v267 = vmul.f32 %v266, %v251
          %v268 = vmul.f32 %v266, %v252
          %v269 = vadd.f32 %v263, %v267
          %v270 = vadd.f32 %v264, %v268
          %271 = vst.msk [vmem:[#allocation5] sm:$0xff] %vm203, %v269
          %272 = vst.msk [vmem:[#allocation5 + $0x8] sm:$0xff] %vm203, %v270
        $region32: #{tpu_custom_call.1} parent=23 // pred_fallthru
          _
        %p273 = scmp.eq.s32.totalorder %s222, 4294967294
        %s274 = scalar_select %p273, %s145, 0.0
        %p275 = scmp.eq.s32.totalorder %s225, 4294967294
        %s276 = scalar_select %p275, %s147, 0.0
        %s277 = sadd.f32 %s274, %s276
        %p278 = scmp.eq.s32.totalorder %s143, 4294967294
        %s279 = scalar_select %p278, %s147, 0.0
        %s280 = sadd.f32 %s277, %s279
        %p281 = scmp.eq.s32.totalorder %s232, 4294967294
        %s282 = scalar_select %p281, %s145, 0.0
        %s283 = sadd.f32 %s280, %s282
        %s284 = scalar_select %p278, %s146, 0.0
        %s285 = scalar_select %p281, %s144, 0.0
        %s286 = sadd.f32 %s284, %s285
        %s287 = scalar_select %p275, %s146, 0.0
        %s288 = ssub.f32 %s286, %s287
        %s289 = scalar_select %p273, %s144, 0.0
        %s290 = ssub.f32 %s288, %s289
        %p291 = scmp.ne.f32.partialorder %s283, 0.0
        %p292 = scmp.ne.f32.partialorder %s290, 0.0
        %p293 = por %p291, %p292
        // Predicated region
        $region33: #{tpu_custom_call.1} parent=23 // pred_check
          %p294 = pneg %p293
        $region34: #{tpu_custom_call.1} parent=23 // pred_check_branch
          %296 = sbr.rel (%p294) target = $region36
        $region35: #{tpu_custom_call.1} parent=23 // pred_region
          %v297 = vld [vmem:[#allocation2] sm:$0xff]
          %v298 = vld [vmem:[#allocation2 + $0x8] sm:$0xff]
          %v299 = vld [vmem:[#allocation3] sm:$0xff]
          %v300 = vld [vmem:[#allocation3 + $0x8] sm:$0xff]
          %v301 = vld [vmem:[#allocation4] sm:$0xff]
          %v302 = vld [vmem:[#allocation4 + $0x8] sm:$0xff]
          %s303 = smul.f32 %s290, 100.0
          %v304 = vstv %s303
          %v305 = vmul.f32 %v304, %v297
          %v306 = vmul.f32 %v304, %v298
          %309 = vrot.lane.b32.xlu0 %v305, 127
          %v310 = vpop.permute.xlu0 %309
          %311 = vrot.lane.b32.xlu0 %v306, 127
          %v312 = vpop.permute.xlu0 %311
          %v315 = vadd.f32 %v301, %v310
          %v316 = vadd.f32 %v302, %v312
          %317 = vst.msk [vmem:[#allocation4] sm:$0xff] %vm203, %v315
          %318 = vst.msk [vmem:[#allocation4 + $0x8] sm:$0xff] %vm203, %v316
          %v319 = vld [vmem:[#allocation5] sm:$0xff]
          %v320 = vld [vmem:[#allocation5 + $0x8] sm:$0xff]
          %s321 = smul.f32 %s283, 100.0
          %v322 = vstv %s321
          %v323 = vmul.f32 %v322, %v299
          %v324 = vmul.f32 %v322, %v300
          %327 = vrot.lane.b32.xlu0 %v323, 127
          %v328 = vpop.permute.xlu0 %327
          %329 = vrot.lane.b32.xlu0 %v324, 127
          %v330 = vpop.permute.xlu0 %329
          %v333 = vadd.f32 %v319, %v328
          %v334 = vadd.f32 %v320, %v330
          %335 = vst.msk [vmem:[#allocation5] sm:$0xff] %vm203, %v333
          %336 = vst.msk [vmem:[#allocation5 + $0x8] sm:$0xff] %vm203, %v334
        $region36: #{tpu_custom_call.1} parent=23 // pred_fallthru
          _
        %p337 = scmp.eq.s32.totalorder %s222, 4294967295
        %s338 = scalar_select %p337, %s145, 0.0
        %p339 = scmp.eq.s32.totalorder %s225, 4294967295
        %s340 = scalar_select %p339, %s147, 0.0
        %s341 = sadd.f32 %s338, %s340
        %p342 = scmp.eq.s32.totalorder %s143, 4294967295
        %s343 = scalar_select %p342, %s147, 0.0
        %s344 = sadd.f32 %s341, %s343
        %p345 = scmp.eq.s32.totalorder %s232, 4294967295
        %s346 = scalar_select %p345, %s145, 0.0
        %s347 = sadd.f32 %s344, %s346
        %s348 = scalar_select %p342, %s146, 0.0
        %s349 = scalar_select %p345, %s144, 0.0
        %s350 = sadd.f32 %s348, %s349
        %s351 = scalar_select %p339, %s146, 0.0
        %s352 = ssub.f32 %s350, %s351
        %s353 = scalar_select %p337, %s144, 0.0
        %s354 = ssub.f32 %s352, %s353
        %p355 = scmp.ne.f32.partialorder %s347, 0.0
        %p356 = scmp.ne.f32.partialorder %s354, 0.0
        %p357 = por %p355, %p356
        // Predicated region
        $region37: #{tpu_custom_call.1} parent=23 // pred_check
          %p358 = pneg %p357
        $region38: #{tpu_custom_call.1} parent=23 // pred_check_branch
          %360 = sbr.rel (%p358) target = $region40
        $region39: #{tpu_custom_call.1} parent=23 // pred_region
          %v361 = vld [vmem:[#allocation2] sm:$0xff]
          %v362 = vld [vmem:[#allocation2 + $0x8] sm:$0xff]
          %v363 = vld [vmem:[#allocation3] sm:$0xff]
          %v364 = vld [vmem:[#allocation3 + $0x8] sm:$0xff]
          %v365 = vld [vmem:[#allocation4] sm:$0xff]
          %v366 = vld [vmem:[#allocation4 + $0x8] sm:$0xff]
          %s367 = smul.f32 %s354, 100.0
          %v368 = vstv %s367
          %v369 = vmul.f32 %v368, %v361
          %v370 = vmul.f32 %v368, %v362
          %373 = vrot.lane.b32.xlu0 %v369, 126
          %v374 = vpop.permute.xlu0 %373
          %375 = vrot.lane.b32.xlu0 %v370, 126
          %v376 = vpop.permute.xlu0 %375
          %v379 = vadd.f32 %v365, %v374
          %v380 = vadd.f32 %v366, %v376
          %381 = vst.msk [vmem:[#allocation4] sm:$0xff] %vm203, %v379
          %382 = vst.msk [vmem:[#allocation4 + $0x8] sm:$0xff] %vm203, %v380
          %v383 = vld [vmem:[#allocation5] sm:$0xff]
          %v384 = vld [vmem:[#allocation5 + $0x8] sm:$0xff]
          %s385 = smul.f32 %s347, 100.0
          %v386 = vstv %s385
          %v387 = vmul.f32 %v386, %v363
          %v388 = vmul.f32 %v386, %v364
          %391 = vrot.lane.b32.xlu0 %v387, 126
          %v392 = vpop.permute.xlu0 %391
          %393 = vrot.lane.b32.xlu0 %v388, 126
          %v394 = vpop.permute.xlu0 %393
          %v397 = vadd.f32 %v383, %v392
          %v398 = vadd.f32 %v384, %v394
          %399 = vst.msk [vmem:[#allocation5] sm:$0xff] %vm203, %v397
          %400 = vst.msk [vmem:[#allocation5 + $0x8] sm:$0xff] %vm203, %v398
        $region40: #{tpu_custom_call.1} parent=23 // pred_fallthru
          _
        %p401 = scmp.eq.s32.totalorder %s222, 1
        %s402 = scalar_select %p401, %s145, 0.0
        %p403 = scmp.eq.s32.totalorder %s225, 1
        %s404 = scalar_select %p403, %s147, 0.0
        %s405 = sadd.f32 %s402, %s404
        %p406 = scmp.eq.s32.totalorder %s143, 1
        %s407 = scalar_select %p406, %s147, 0.0
        %s408 = sadd.f32 %s405, %s407
        %p409 = scmp.eq.s32.totalorder %s232, 1
        %s410 = scalar_select %p409, %s145, 0.0
        %s411 = sadd.f32 %s408, %s410
        %s412 = scalar_select %p406, %s146, 0.0
        %s413 = scalar_select %p409, %s144, 0.0
        %s414 = sadd.f32 %s412, %s413
        %s415 = scalar_select %p403, %s146, 0.0
        %s416 = ssub.f32 %s414, %s415
        %s417 = scalar_select %p401, %s144, 0.0
        %s418 = ssub.f32 %s416, %s417
        %p419 = scmp.ne.f32.partialorder %s411, 0.0
        %p420 = scmp.ne.f32.partialorder %s418, 0.0
        %p421 = por %p419, %p420
        // Predicated region
        $region41: #{tpu_custom_call.1} parent=23 // pred_check
          %p422 = pneg %p421
        $region42: #{tpu_custom_call.1} parent=23 // pred_check_branch
          %424 = sbr.rel (%p422) target = $region44
        $region43: #{tpu_custom_call.1} parent=23 // pred_region
          %v425 = vld [vmem:[#allocation2] sm:$0xff]
          %v426 = vld [vmem:[#allocation2 + $0x8] sm:$0xff]
          %v427 = vld [vmem:[#allocation3] sm:$0xff]
          %v428 = vld [vmem:[#allocation3 + $0x8] sm:$0xff]
          %v429 = vld [vmem:[#allocation4] sm:$0xff]
          %v430 = vld [vmem:[#allocation4 + $0x8] sm:$0xff]
          %s431 = smul.f32 %s418, 100.0
          %v432 = vstv %s431
          %v433 = vmul.f32 %v432, %v425
          %v434 = vmul.f32 %v432, %v426
          %437 = vrot.lane.b32.xlu0 %v433, 124
          %v438 = vpop.permute.xlu0 %437
          %439 = vrot.lane.b32.xlu0 %v434, 124
          %v440 = vpop.permute.xlu0 %439
          %v443 = vadd.f32 %v429, %v438
          %v444 = vadd.f32 %v430, %v440
          %445 = vst.msk [vmem:[#allocation4] sm:$0xff] %vm203, %v443
          %446 = vst.msk [vmem:[#allocation4 + $0x8] sm:$0xff] %vm203, %v444
          %v447 = vld [vmem:[#allocation5] sm:$0xff]
          %v448 = vld [vmem:[#allocation5 + $0x8] sm:$0xff]
          %s449 = smul.f32 %s411, 100.0
          %v450 = vstv %s449
          %v451 = vmul.f32 %v450, %v427
          %v452 = vmul.f32 %v450, %v428
          %455 = vrot.lane.b32.xlu0 %v451, 124
          %v456 = vpop.permute.xlu0 %455
          %457 = vrot.lane.b32.xlu0 %v452, 124
          %v458 = vpop.permute.xlu0 %457
          %v461 = vadd.f32 %v447, %v456
          %v462 = vadd.f32 %v448, %v458
          %463 = vst.msk [vmem:[#allocation5] sm:$0xff] %vm203, %v461
          %464 = vst.msk [vmem:[#allocation5 + $0x8] sm:$0xff] %vm203, %v462
        $region44: #{tpu_custom_call.1} parent=23 // pred_fallthru
          _
        %p465 = scmp.eq.s32.totalorder %s222, 2
        %s466 = scalar_select %p465, %s145, 0.0
        %p467 = scmp.eq.s32.totalorder %s225, 2
        %s468 = scalar_select %p467, %s147, 0.0
        %s469 = sadd.f32 %s466, %s468
        %p470 = scmp.eq.s32.totalorder %s143, 2
        %s471 = scalar_select %p470, %s147, 0.0
        %s472 = sadd.f32 %s469, %s471
        %p473 = scmp.eq.s32.totalorder %s232, 2
        %s474 = scalar_select %p473, %s145, 0.0
        %s475 = sadd.f32 %s472, %s474
        %s476 = scalar_select %p470, %s146, 0.0
        %s477 = scalar_select %p473, %s144, 0.0
        %s478 = sadd.f32 %s476, %s477
        %s479 = scalar_select %p467, %s146, 0.0
        %s480 = ssub.f32 %s478, %s479
        %s481 = scalar_select %p465, %s144, 0.0
        %s482 = ssub.f32 %s480, %s481
        %p483 = scmp.ne.f32.partialorder %s475, 0.0
        %p484 = scmp.ne.f32.partialorder %s482, 0.0
        %p485 = por %p483, %p484
        // Predicated region
        $region45: #{tpu_custom_call.1} parent=23 // pred_check
          %p486 = pneg %p485
        $region46: #{tpu_custom_call.1} parent=23 // pred_check_branch
          %488 = sbr.rel (%p486) target = $region48
        $region47: #{tpu_custom_call.1} parent=23 // pred_region
          %v489 = vld [vmem:[#allocation2] sm:$0xff]
          %v490 = vld [vmem:[#allocation2 + $0x8] sm:$0xff]
          %v491 = vld [vmem:[#allocation3] sm:$0xff]
          %v492 = vld [vmem:[#allocation3 + $0x8] sm:$0xff]
          %v493 = vld [vmem:[#allocation4] sm:$0xff]
          %v494 = vld [vmem:[#allocation4 + $0x8] sm:$0xff]
          %s495 = smul.f32 %s482, 100.0
          %v496 = vstv %s495
          %v497 = vmul.f32 %v496, %v489
          %v498 = vmul.f32 %v496, %v490
          %501 = vrot.lane.b32.xlu0 %v497, 123
          %v502 = vpop.permute.xlu0 %501
          %503 = vrot.lane.b32.xlu0 %v498, 123
          %v504 = vpop.permute.xlu0 %503
          %v507 = vadd.f32 %v493, %v502
          %v508 = vadd.f32 %v494, %v504
          %509 = vst.msk [vmem:[#allocation4] sm:$0xff] %vm203, %v507
          %510 = vst.msk [vmem:[#allocation4 + $0x8] sm:$0xff] %vm203, %v508
          %v511 = vld [vmem:[#allocation5] sm:$0xff]
          %v512 = vld [vmem:[#allocation5 + $0x8] sm:$0xff]
          %s513 = smul.f32 %s475, 100.0
          %v514 = vstv %s513
          %v515 = vmul.f32 %v514, %v491
          %v516 = vmul.f32 %v514, %v492
          %519 = vrot.lane.b32.xlu0 %v515, 123
          %v520 = vpop.permute.xlu0 %519
          %521 = vrot.lane.b32.xlu0 %v516, 123
          %v522 = vpop.permute.xlu0 %521
          %v525 = vadd.f32 %v511, %v520
          %v526 = vadd.f32 %v512, %v522
          %527 = vst.msk [vmem:[#allocation5] sm:$0xff] %vm203, %v525
          %528 = vst.msk [vmem:[#allocation5 + $0x8] sm:$0xff] %vm203, %v526
        $region48: #{tpu_custom_call.1} parent=23 // pred_fallthru
          _
        %p529 = scmp.eq.s32.totalorder %s222, 3
        %s530 = scalar_select %p529, %s145, 0.0
        %p531 = scmp.eq.s32.totalorder %s225, 3
        %s532 = scalar_select %p531, %s147, 0.0
        %s533 = sadd.f32 %s530, %s532
        %p534 = scmp.eq.s32.totalorder %s143, 3
        %s535 = scalar_select %p534, %s147, 0.0
        %s536 = sadd.f32 %s533, %s535
        %p537 = scmp.eq.s32.totalorder %s232, 3
        %s538 = scalar_select %p537, %s145, 0.0
        %s539 = sadd.f32 %s536, %s538
        %s540 = scalar_select %p534, %s146, 0.0
        %s541 = scalar_select %p537, %s144, 0.0
        %s542 = sadd.f32 %s540, %s541
        %s543 = scalar_select %p531, %s146, 0.0
        %s544 = ssub.f32 %s542, %s543
        %s545 = scalar_select %p529, %s144, 0.0
        %s546 = ssub.f32 %s544, %s545
        %p547 = scmp.ne.f32.partialorder %s539, 0.0
        %p548 = scmp.ne.f32.partialorder %s546, 0.0
        %p549 = por %p547, %p548
        // Predicated region
        $region49: #{tpu_custom_call.1} parent=23 // pred_check
          %p550 = pneg %p549
        $region50: #{tpu_custom_call.1} parent=23 // pred_check_branch
          %552 = sbr.rel (%p550) target = $region52
        $region51: #{tpu_custom_call.1} parent=23 // pred_region
          %v553 = vld [vmem:[#allocation2] sm:$0xff]
          %v554 = vld [vmem:[#allocation2 + $0x8] sm:$0xff]
          %v555 = vld [vmem:[#allocation3] sm:$0xff]
          %v556 = vld [vmem:[#allocation3 + $0x8] sm:$0xff]
          %v557 = vld [vmem:[#allocation4] sm:$0xff]
          %v558 = vld [vmem:[#allocation4 + $0x8] sm:$0xff]
          %s559 = smul.f32 %s546, 100.0
          %v560 = vstv %s559
          %v561 = vmul.f32 %v560, %v553
          %v562 = vmul.f32 %v560, %v554
          %565 = vrot.lane.b32.xlu0 %v561, 122
          %v566 = vpop.permute.xlu0 %565
          %567 = vrot.lane.b32.xlu0 %v562, 122
          %v568 = vpop.permute.xlu0 %567
          %v571 = vadd.f32 %v557, %v566
          %v572 = vadd.f32 %v558, %v568
          %573 = vst.msk [vmem:[#allocation4] sm:$0xff] %vm203, %v571
          %574 = vst.msk [vmem:[#allocation4 + $0x8] sm:$0xff] %vm203, %v572
          %v575 = vld [vmem:[#allocation5] sm:$0xff]
          %v576 = vld [vmem:[#allocation5 + $0x8] sm:$0xff]
          %s577 = smul.f32 %s539, 100.0
          %v578 = vstv %s577
          %v579 = vmul.f32 %v578, %v555
          %v580 = vmul.f32 %v578, %v556
          %583 = vrot.lane.b32.xlu0 %v579, 122
          %v584 = vpop.permute.xlu0 %583
          %585 = vrot.lane.b32.xlu0 %v580, 122
          %v586 = vpop.permute.xlu0 %585
          %v589 = vadd.f32 %v575, %v584
          %v590 = vadd.f32 %v576, %v586
          %591 = vst.msk [vmem:[#allocation5] sm:$0xff] %vm203, %v589
          %592 = vst.msk [vmem:[#allocation5 + $0x8] sm:$0xff] %vm203, %v590
        $region52: #{tpu_custom_call.1} parent=23 // pred_fallthru
          _
        %v593 = vld [vmem:[#allocation4] sm:$0xff]
        %v594 = vld [vmem:[#allocation4 + $0x8] sm:$0xff]
        %v595 = vld [vmem:[#allocation5] sm:$0xff]
        %v596 = vld [vmem:[#allocation5 + $0x8] sm:$0xff]
        %v597 = vmul.f32 %v593, %v593
        %v598 = vmul.f32 %v594, %v594
        %599 = vst.msk [vmem:[%s142] sm:$0xff] %vm203, %v597
        %600 = vst.msk [vmem:[%s142 + $0x8] sm:$0xff] %vm203, %v598
        %v601 = vmul.f32 %v595, %v595
        %v602 = vmul.f32 %v596, %v596
        %s603 = scalar_lea.vmem %s142, 16 [#allocation12]
        %604 = vst.msk [vmem:[%s603] sm:$0xff] %vm203, %v601
        %605 = vst.msk [vmem:[%s603 + $0x8] sm:$0xff] %vm203, %v602
        %v606 = vmul.f32 %v593, %v595
        %v607 = vmul.f32 %v594, %v596
        %s608 = scalar_lea.vmem %s142, 32 [#allocation12]
        %609 = vst.msk [vmem:[%s608] sm:$0xff] %vm203, %v606
        %610 = vst.msk [vmem:[%s608 + $0x8] sm:$0xff] %vm203, %v607
        %s611 = sadd.s32 %s148, 24
        %s612 = scalar_lea.vmem %s124, %s611 [#allocation9]
        %v613 = vld [vmem:[%s612] sm:$0xff]
        %v614 = vld [vmem:[%s612 + $0x8] sm:$0xff]
        %s615 = sadd.s32 %s149, 24
        %s616 = scalar_lea.vmem %s124, %s615 [#allocation9]
        %v617 = vld [vmem:[%s616] sm:$0xff]
        %v618 = vld [vmem:[%s616 + $0x8] sm:$0xff]
        %s619 = scalar_lea.vmem %s124, 24 [#allocation9]
        %v620 = vld [vmem:[%s619 + $0x3] sm:$0xff]
        %v621 = vld [vmem:[%s619 + $0xb] sm:$0xff]
        %s622 = sadd.s32 %s150, 24
        %s623 = scalar_lea.vmem %s124, %s622 [#allocation9]
        %v624 = vld [vmem:[%s623] sm:$0xff]
        %v625 = vld [vmem:[%s623 + $0x8] sm:$0xff]
        %s626 = sadd.s32 %s151, 24
        %s627 = scalar_lea.vmem %s124, %s626 [#allocation9]
        %v628 = vld [vmem:[%s627] sm:$0xff]
        %v629 = vld [vmem:[%s627 + $0x8] sm:$0xff]
        %v630 = vadd.f32 %v613, %v628
        %v631 = vadd.f32 %v614, %v629
        %v632 = vmul.f32 %v172, %v630
        %v633 = vmul.f32 %v172, %v631
        %v634 = vadd.f32 %v617, %v624
        %v635 = vadd.f32 %v618, %v625
        %v636 = vmul.f32 %v177, %v634
        %v637 = vmul.f32 %v177, %v635
        %v638 = vadd.f32 %v632, %v636
        %v639 = vadd.f32 %v633, %v637
        %v640 = vmul.f32 %v620, 0.5
        %v641 = vmul.f32 %v621, 0.5
        %v642 = vadd.f32 %v638, %v640
        %v643 = vadd.f32 %v639, %v641
        %644 = vst.msk [vmem:[#allocation2] sm:$0xff] %vm186, %v642
        %645 = vst.msk [vmem:[#allocation2 + $0x8] sm:$0xff] %vm186, %v643
        %v646 = vsub.f32 %v628, %v613
        %v647 = vsub.f32 %v629, %v614
        %v648 = vmul.f32 %v191, %v646
        %v649 = vmul.f32 %v191, %v647
        %v650 = vsub.f32 %v624, %v617
        %v651 = vsub.f32 %v625, %v618
        %v652 = vmul.f32 %v196, %v650
        %v653 = vmul.f32 %v196, %v651
        %v654 = vadd.f32 %v648, %v652
        %v655 = vadd.f32 %v649, %v653
        %656 = vst.msk [vmem:[#allocation3] sm:$0xff] %vm186, %v654
        %657 = vst.msk [vmem:[#allocation3 + $0x8] sm:$0xff] %vm186, %v655
        %658 = vst.msk [vmem:[#allocation4] sm:$0xff] %vm203, 0.0
        %659 = vst.msk [vmem:[#allocation4 + $0x8] sm:$0xff] %vm203, 0.0
        %v660 = vld [vmem:[#allocation3] sm:$0xff]
        %v661 = vld [vmem:[#allocation3 + $0x8] sm:$0xff]
        %v662 = vstv %s155
        %v663 = vmul.f32 %v662, %v660
        %v664 = vmul.f32 %v662, %v661
        %667 = vrot.lane.b32.xlu0 %v663, 125
        %v668 = vpop.permute.xlu0 %667
        %669 = vrot.lane.b32.xlu0 %v664, 125
        %v670 = vpop.permute.xlu0 %669
        %673 = vst.msk [vmem:[#allocation5] sm:$0xff] %vm203, %v668
        %674 = vst.msk [vmem:[#allocation5 + $0x8] sm:$0xff] %vm203, %v670
        // Predicated region
        $region53: #{tpu_custom_call.1} parent=23 // pred_check
          %p675 = pneg %p245
        $region54: #{tpu_custom_call.1} parent=23 // pred_check_branch
          %677 = sbr.rel (%p675) target = $region56
        $region55: #{tpu_custom_call.1} parent=23 // pred_region
          %v678 = vld [vmem:[#allocation2] sm:$0xff]
          %v679 = vld [vmem:[#allocation2 + $0x8] sm:$0xff]
          %v680 = vld [vmem:[#allocation3] sm:$0xff]
          %v681 = vld [vmem:[#allocation3 + $0x8] sm:$0xff]
          %v682 = vld [vmem:[#allocation4] sm:$0xff]
          %v683 = vld [vmem:[#allocation4 + $0x8] sm:$0xff]
          %v684 = vstv %s242
          %v685 = vmul.f32 %v684, %v678
          %v686 = vmul.f32 %v684, %v679
          %v687 = vadd.f32 %v682, %v685
          %v688 = vadd.f32 %v683, %v686
          %689 = vst.msk [vmem:[#allocation4] sm:$0xff] %vm203, %v687
          %690 = vst.msk [vmem:[#allocation4 + $0x8] sm:$0xff] %vm203, %v688
          %v691 = vld [vmem:[#allocation5] sm:$0xff]
          %v692 = vld [vmem:[#allocation5 + $0x8] sm:$0xff]
          %v693 = vstv %s235
          %v694 = vmul.f32 %v693, %v680
          %v695 = vmul.f32 %v693, %v681
          %v696 = vadd.f32 %v691, %v694
          %v697 = vadd.f32 %v692, %v695
          %698 = vst.msk [vmem:[#allocation5] sm:$0xff] %vm203, %v696
          %699 = vst.msk [vmem:[#allocation5 + $0x8] sm:$0xff] %vm203, %v697
        $region56: #{tpu_custom_call.1} parent=23 // pred_fallthru
          _
        // Predicated region
        $region57: #{tpu_custom_call.1} parent=23 // pred_check
          %p700 = pneg %p293
        $region58: #{tpu_custom_call.1} parent=23 // pred_check_branch
          %702 = sbr.rel (%p700) target = $region60
        $region59: #{tpu_custom_call.1} parent=23 // pred_region
          %v703 = vld [vmem:[#allocation2] sm:$0xff]
          %v704 = vld [vmem:[#allocation2 + $0x8] sm:$0xff]
          %v705 = vld [vmem:[#allocation3] sm:$0xff]
          %v706 = vld [vmem:[#allocation3 + $0x8] sm:$0xff]
          %v707 = vld [vmem:[#allocation4] sm:$0xff]
          %v708 = vld [vmem:[#allocation4 + $0x8] sm:$0xff]
          %v709 = vstv %s290
          %v710 = vmul.f32 %v709, %v703
          %v711 = vmul.f32 %v709, %v704
          %714 = vrot.lane.b32.xlu0 %v710, 127
          %v715 = vpop.permute.xlu0 %714
          %716 = vrot.lane.b32.xlu0 %v711, 127
          %v717 = vpop.permute.xlu0 %716
          %v720 = vadd.f32 %v707, %v715
          %v721 = vadd.f32 %v708, %v717
          %722 = vst.msk [vmem:[#allocation4] sm:$0xff] %vm203, %v720
          %723 = vst.msk [vmem:[#allocation4 + $0x8] sm:$0xff] %vm203, %v721
          %v724 = vld [vmem:[#allocation5] sm:$0xff]
          %v725 = vld [vmem:[#allocation5 + $0x8] sm:$0xff]
          %v726 = vstv %s283
          %v727 = vmul.f32 %v726, %v705
          %v728 = vmul.f32 %v726, %v706
          %731 = vrot.lane.b32.xlu0 %v727, 127
          %v732 = vpop.permute.xlu0 %731
          %733 = vrot.lane.b32.xlu0 %v728, 127
          %v734 = vpop.permute.xlu0 %733
          %v737 = vadd.f32 %v724, %v732
          %v738 = vadd.f32 %v725, %v734
          %739 = vst.msk [vmem:[#allocation5] sm:$0xff] %vm203, %v737
          %740 = vst.msk [vmem:[#allocation5 + $0x8] sm:$0xff] %vm203, %v738
        $region60: #{tpu_custom_call.1} parent=23 // pred_fallthru
          _
        // Predicated region
        $region61: #{tpu_custom_call.1} parent=23 // pred_check
          %p741 = pneg %p357
        $region62: #{tpu_custom_call.1} parent=23 // pred_check_branch
          %743 = sbr.rel (%p741) target = $region64
        $region63: #{tpu_custom_call.1} parent=23 // pred_region
          %v744 = vld [vmem:[#allocation2] sm:$0xff]
          %v745 = vld [vmem:[#allocation2 + $0x8] sm:$0xff]
          %v746 = vld [vmem:[#allocation3] sm:$0xff]
          %v747 = vld [vmem:[#allocation3 + $0x8] sm:$0xff]
          %v748 = vld [vmem:[#allocation4] sm:$0xff]
          %v749 = vld [vmem:[#allocation4 + $0x8] sm:$0xff]
          %v750 = vstv %s354
          %v751 = vmul.f32 %v750, %v744
          %v752 = vmul.f32 %v750, %v745
          %755 = vrot.lane.b32.xlu0 %v751, 126
          %v756 = vpop.permute.xlu0 %755
          %757 = vrot.lane.b32.xlu0 %v752, 126
          %v758 = vpop.permute.xlu0 %757
          %v761 = vadd.f32 %v748, %v756
          %v762 = vadd.f32 %v749, %v758
          %763 = vst.msk [vmem:[#allocation4] sm:$0xff] %vm203, %v761
          %764 = vst.msk [vmem:[#allocation4 + $0x8] sm:$0xff] %vm203, %v762
          %v765 = vld [vmem:[#allocation5] sm:$0xff]
          %v766 = vld [vmem:[#allocation5 + $0x8] sm:$0xff]
          %v767 = vstv %s347
          %v768 = vmul.f32 %v767, %v746
          %v769 = vmul.f32 %v767, %v747
          %772 = vrot.lane.b32.xlu0 %v768, 126
          %v773 = vpop.permute.xlu0 %772
          %774 = vrot.lane.b32.xlu0 %v769, 126
          %v775 = vpop.permute.xlu0 %774
          %v778 = vadd.f32 %v765, %v773
          %v779 = vadd.f32 %v766, %v775
          %780 = vst.msk [vmem:[#allocation5] sm:$0xff] %vm203, %v778
          %781 = vst.msk [vmem:[#allocation5 + $0x8] sm:$0xff] %vm203, %v779
        $region64: #{tpu_custom_call.1} parent=23 // pred_fallthru
          _
        // Predicated region
        $region65: #{tpu_custom_call.1} parent=23 // pred_check
          %p782 = pneg %p421
        $region66: #{tpu_custom_call.1} parent=23 // pred_check_branch
          %784 = sbr.rel (%p782) target = $region68
        $region67: #{tpu_custom_call.1} parent=23 // pred_region
          %v785 = vld [vmem:[#allocation2] sm:$0xff]
          %v786 = vld [vmem:[#allocation2 + $0x8] sm:$0xff]
          %v787 = vld [vmem:[#allocation3] sm:$0xff]
          %v788 = vld [vmem:[#allocation3 + $0x8] sm:$0xff]
          %v789 = vld [vmem:[#allocation4] sm:$0xff]
          %v790 = vld [vmem:[#allocation4 + $0x8] sm:$0xff]
          %v791 = vstv %s418
          %v792 = vmul.f32 %v791, %v785
          %v793 = vmul.f32 %v791, %v786
          %796 = vrot.lane.b32.xlu0 %v792, 124
          %v797 = vpop.permute.xlu0 %796
          %798 = vrot.lane.b32.xlu0 %v793, 124
          %v799 = vpop.permute.xlu0 %798
          %v802 = vadd.f32 %v789, %v797
          %v803 = vadd.f32 %v790, %v799
          %804 = vst.msk [vmem:[#allocation4] sm:$0xff] %vm203, %v802
          %805 = vst.msk [vmem:[#allocation4 + $0x8] sm:$0xff] %vm203, %v803
          %v806 = vld [vmem:[#allocation5] sm:$0xff]
          %v807 = vld [vmem:[#allocation5 + $0x8] sm:$0xff]
          %v808 = vstv %s411
          %v809 = vmul.f32 %v808, %v787
          %v810 = vmul.f32 %v808, %v788
          %813 = vrot.lane.b32.xlu0 %v809, 124
          %v814 = vpop.permute.xlu0 %813
          %815 = vrot.lane.b32.xlu0 %v810, 124
          %v816 = vpop.permute.xlu0 %815
          %v819 = vadd.f32 %v806, %v814
          %v820 = vadd.f32 %v807, %v816
          %821 = vst.msk [vmem:[#allocation5] sm:$0xff] %vm203, %v819
          %822 = vst.msk [vmem:[#allocation5 + $0x8] sm:$0xff] %vm203, %v820
        $region68: #{tpu_custom_call.1} parent=23 // pred_fallthru
          _
        // Predicated region
        $region69: #{tpu_custom_call.1} parent=23 // pred_check
          %p823 = pneg %p485
        $region70: #{tpu_custom_call.1} parent=23 // pred_check_branch
          %825 = sbr.rel (%p823) target = $region72
        $region71: #{tpu_custom_call.1} parent=23 // pred_region
          %v826 = vld [vmem:[#allocation2] sm:$0xff]
          %v827 = vld [vmem:[#allocation2 + $0x8] sm:$0xff]
          %v828 = vld [vmem:[#allocation3] sm:$0xff]
          %v829 = vld [vmem:[#allocation3 + $0x8] sm:$0xff]
          %v830 = vld [vmem:[#allocation4] sm:$0xff]
          %v831 = vld [vmem:[#allocation4 + $0x8] sm:$0xff]
          %v832 = vstv %s482
          %v833 = vmul.f32 %v832, %v826
          %v834 = vmul.f32 %v832, %v827
          %837 = vrot.lane.b32.xlu0 %v833, 123
          %v838 = vpop.permute.xlu0 %837
          %839 = vrot.lane.b32.xlu0 %v834, 123
          %v840 = vpop.permute.xlu0 %839
          %v843 = vadd.f32 %v830, %v838
          %v844 = vadd.f32 %v831, %v840
          %845 = vst.msk [vmem:[#allocation4] sm:$0xff] %vm203, %v843
          %846 = vst.msk [vmem:[#allocation4 + $0x8] sm:$0xff] %vm203, %v844
          %v847 = vld [vmem:[#allocation5] sm:$0xff]
          %v848 = vld [vmem:[#allocation5 + $0x8] sm:$0xff]
          %v849 = vstv %s475
          %v850 = vmul.f32 %v849, %v828
          %v851 = vmul.f32 %v849, %v829
          %854 = vrot.lane.b32.xlu0 %v850, 123
          %v855 = vpop.permute.xlu0 %854
          %856 = vrot.lane.b32.xlu0 %v851, 123
          %v857 = vpop.permute.xlu0 %856
          %v860 = vadd.f32 %v847, %v855
          %v861 = vadd.f32 %v848, %v857
          %862 = vst.msk [vmem:[#allocation5] sm:$0xff] %vm203, %v860
          %863 = vst.msk [vmem:[#allocation5 + $0x8] sm:$0xff] %vm203, %v861
        $region72: #{tpu_custom_call.1} parent=23 // pred_fallthru
          _
        // Predicated region
        $region73: #{tpu_custom_call.1} parent=23 // pred_check
          %p864 = pneg %p549
        $region74: #{tpu_custom_call.1} parent=23 // pred_check_branch
          %866 = sbr.rel (%p864) target = $region76
        $region75: #{tpu_custom_call.1} parent=23 // pred_region
          %v867 = vld [vmem:[#allocation2] sm:$0xff]
          %v868 = vld [vmem:[#allocation2 + $0x8] sm:$0xff]
          %v869 = vld [vmem:[#allocation3] sm:$0xff]
          %v870 = vld [vmem:[#allocation3 + $0x8] sm:$0xff]
          %v871 = vld [vmem:[#allocation4] sm:$0xff]
          %v872 = vld [vmem:[#allocation4 + $0x8] sm:$0xff]
          %v873 = vstv %s546
          %v874 = vmul.f32 %v873, %v867
          %v875 = vmul.f32 %v873, %v868
          %878 = vrot.lane.b32.xlu0 %v874, 122
          %v879 = vpop.permute.xlu0 %878
          %880 = vrot.lane.b32.xlu0 %v875, 122
          %v881 = vpop.permute.xlu0 %880
          %v884 = vadd.f32 %v871, %v879
          %v885 = vadd.f32 %v872, %v881
          %886 = vst.msk [vmem:[#allocation4] sm:$0xff] %vm203, %v884
          %887 = vst.msk [vmem:[#allocation4 + $0x8] sm:$0xff] %vm203, %v885
          %v888 = vld [vmem:[#allocation5] sm:$0xff]
          %v889 = vld [vmem:[#allocation5 + $0x8] sm:$0xff]
          %v890 = vstv %s539
          %v891 = vmul.f32 %v890, %v869
          %v892 = vmul.f32 %v890, %v870
          %895 = vrot.lane.b32.xlu0 %v891, 122
          %v896 = vpop.permute.xlu0 %895
          %897 = vrot.lane.b32.xlu0 %v892, 122
          %v898 = vpop.permute.xlu0 %897
          %v901 = vadd.f32 %v888, %v896
          %v902 = vadd.f32 %v889, %v898
          %903 = vst.msk [vmem:[#allocation5] sm:$0xff] %vm203, %v901
          %904 = vst.msk [vmem:[#allocation5 + $0x8] sm:$0xff] %vm203, %v902
        $region76: #{tpu_custom_call.1} parent=23 // pred_fallthru
          _
        %v905 = vld [vmem:[#allocation4] sm:$0xff]
        %v906 = vld [vmem:[#allocation4 + $0x8] sm:$0xff]
        %v907 = vld [vmem:[#allocation5] sm:$0xff]
        %v908 = vld [vmem:[#allocation5 + $0x8] sm:$0xff]
        %v909 = vld [vmem:[%s142] sm:$0xff]
        %v910 = vld [vmem:[%s142 + $0x8] sm:$0xff]
        %v911 = vmul.f32 %v905, %v905
        %v912 = vmul.f32 %v906, %v906
        %v913 = vadd.f32 %v909, %v911
        %v914 = vadd.f32 %v910, %v912
        %915 = vst.msk [vmem:[%s142] sm:$0xff] %vm203, %v913
        %916 = vst.msk [vmem:[%s142 + $0x8] sm:$0xff] %vm203, %v914
        %v917 = vld [vmem:[%s603] sm:$0xff]
        %v918 = vld [vmem:[%s603 + $0x8] sm:$0xff]
        %v919 = vmul.f32 %v907, %v907
        %v920 = vmul.f32 %v908, %v908
        %v921 = vadd.f32 %v917, %v919
        %v922 = vadd.f32 %v918, %v920
        %923 = vst.msk [vmem:[%s603] sm:$0xff] %vm203, %v921
        %924 = vst.msk [vmem:[%s603 + $0x8] sm:$0xff] %vm203, %v922
        %v925 = vld [vmem:[%s608] sm:$0xff]
        %v926 = vld [vmem:[%s608 + $0x8] sm:$0xff]
        %v927 = vmul.f32 %v905, %v907
        %v928 = vmul.f32 %v906, %v908
        %v929 = vadd.f32 %v925, %v927
        %v930 = vadd.f32 %v926, %v928
        %931 = vst.msk [vmem:[%s608] sm:$0xff] %vm203, %v929
        %932 = vst.msk [vmem:[%s608 + $0x8] sm:$0xff] %vm203, %v930
        %s933 = sadd.s32 %s148, 48
        %s934 = scalar_lea.vmem %s124, %s933 [#allocation9]
        %v935 = vld [vmem:[%s934] sm:$0xff]
        %v936 = vld [vmem:[%s934 + $0x8] sm:$0xff]
        %s937 = sadd.s32 %s149, 48
        %s938 = scalar_lea.vmem %s124, %s937 [#allocation9]
        %v939 = vld [vmem:[%s938] sm:$0xff]
        %v940 = vld [vmem:[%s938 + $0x8] sm:$0xff]
        %s941 = scalar_lea.vmem %s124, 48 [#allocation9]
        %v942 = vld [vmem:[%s941 + $0x3] sm:$0xff]
        %v943 = vld [vmem:[%s941 + $0xb] sm:$0xff]
        %s944 = sadd.s32 %s150, 48
        %s945 = scalar_lea.vmem %s124, %s944 [#allocation9]
        %v946 = vld [vmem:[%s945] sm:$0xff]
        %v947 = vld [vmem:[%s945 + $0x8] sm:$0xff]
        %s948 = sadd.s32 %s151, 48
        %s949 = scalar_lea.vmem %s124, %s948 [#allocation9]
        %v950 = vld [vmem:[%s949] sm:$0xff]
        %v951 = vld [vmem:[%s949 + $0x8] sm:$0xff]
        %v952 = vadd.f32 %v935, %v950
        %v953 = vadd.f32 %v936, %v951
        %v954 = vmul.f32 %v172, %v952
        %v955 = vmul.f32 %v172, %v953
        %v956 = vadd.f32 %v939, %v946
        %v957 = vadd.f32 %v940, %v947
        %v958 = vmul.f32 %v177, %v956
        %v959 = vmul.f32 %v177, %v957
        %v960 = vadd.f32 %v954, %v958
        %v961 = vadd.f32 %v955, %v959
        %v962 = vmul.f32 %v942, 0.5
        %v963 = vmul.f32 %v943, 0.5
        %v964 = vadd.f32 %v960, %v962
        %v965 = vadd.f32 %v961, %v963
        %966 = vst.msk [vmem:[#allocation2] sm:$0xff] %vm186, %v964
        %967 = vst.msk [vmem:[#allocation2 + $0x8] sm:$0xff] %vm186, %v965
        %v968 = vsub.f32 %v950, %v935
        %v969 = vsub.f32 %v951, %v936
        %v970 = vmul.f32 %v191, %v968
        %v971 = vmul.f32 %v191, %v969
        %v972 = vsub.f32 %v946, %v939
        %v973 = vsub.f32 %v947, %v940
        %v974 = vmul.f32 %v196, %v972
        %v975 = vmul.f32 %v196, %v973
        %v976 = vadd.f32 %v970, %v974
        %v977 = vadd.f32 %v971, %v975
        %978 = vst.msk [vmem:[#allocation3] sm:$0xff] %vm186, %v976
        %979 = vst.msk [vmem:[#allocation3 + $0x8] sm:$0xff] %vm186, %v977
        %980 = vst.msk [vmem:[#allocation4] sm:$0xff] %vm203, 0.0
        %981 = vst.msk [vmem:[#allocation4 + $0x8] sm:$0xff] %vm203, 0.0
        %v982 = vld [vmem:[#allocation3] sm:$0xff]
        %v983 = vld [vmem:[#allocation3 + $0x8] sm:$0xff]
        %v984 = vmul.f32 %v662, %v982
        %v985 = vmul.f32 %v662, %v983
        %988 = vrot.lane.b32.xlu0 %v984, 125
        %v989 = vpop.permute.xlu0 %988
        %990 = vrot.lane.b32.xlu0 %v985, 125
        %v991 = vpop.permute.xlu0 %990
        %994 = vst.msk [vmem:[#allocation5] sm:$0xff] %vm203, %v989
        %995 = vst.msk [vmem:[#allocation5 + $0x8] sm:$0xff] %vm203, %v991
        // Predicated region
        $region77: #{tpu_custom_call.1} parent=23 // pred_check
          %p996 = pneg %p245
        $region78: #{tpu_custom_call.1} parent=23 // pred_check_branch
          %998 = sbr.rel (%p996) target = $region80
        $region79: #{tpu_custom_call.1} parent=23 // pred_region
          %v999 = vld [vmem:[#allocation2] sm:$0xff]
          %v1000 = vld [vmem:[#allocation2 + $0x8] sm:$0xff]
          %v1001 = vld [vmem:[#allocation3] sm:$0xff]
          %v1002 = vld [vmem:[#allocation3 + $0x8] sm:$0xff]
          %v1003 = vld [vmem:[#allocation4] sm:$0xff]
          %v1004 = vld [vmem:[#allocation4 + $0x8] sm:$0xff]
          %v1005 = vstv %s242
          %v1006 = vmul.f32 %v1005, %v999
          %v1007 = vmul.f32 %v1005, %v1000
          %v1008 = vadd.f32 %v1003, %v1006
          %v1009 = vadd.f32 %v1004, %v1007
          %1010 = vst.msk [vmem:[#allocation4] sm:$0xff] %vm203, %v1008
          %1011 = vst.msk [vmem:[#allocation4 + $0x8] sm:$0xff] %vm203, %v1009
          %v1012 = vld [vmem:[#allocation5] sm:$0xff]
          %v1013 = vld [vmem:[#allocation5 + $0x8] sm:$0xff]
          %v1014 = vstv %s235
          %v1015 = vmul.f32 %v1014, %v1001
          %v1016 = vmul.f32 %v1014, %v1002
          %v1017 = vadd.f32 %v1012, %v1015
          %v1018 = vadd.f32 %v1013, %v1016
          %1019 = vst.msk [vmem:[#allocation5] sm:$0xff] %vm203, %v1017
          %1020 = vst.msk [vmem:[#allocation5 + $0x8] sm:$0xff] %vm203, %v1018
        $region80: #{tpu_custom_call.1} parent=23 // pred_fallthru
          _
        // Predicated region
        $region81: #{tpu_custom_call.1} parent=23 // pred_check
          %p1021 = pneg %p293
        $region82: #{tpu_custom_call.1} parent=23 // pred_check_branch
          %1023 = sbr.rel (%p1021) target = $region84
        $region83: #{tpu_custom_call.1} parent=23 // pred_region
          %v1024 = vld [vmem:[#allocation2] sm:$0xff]
          %v1025 = vld [vmem:[#allocation2 + $0x8] sm:$0xff]
          %v1026 = vld [vmem:[#allocation3] sm:$0xff]
          %v1027 = vld [vmem:[#allocation3 + $0x8] sm:$0xff]
          %v1028 = vld [vmem:[#allocation4] sm:$0xff]
          %v1029 = vld [vmem:[#allocation4 + $0x8] sm:$0xff]
          %v1030 = vstv %s290
          %v1031 = vmul.f32 %v1030, %v1024
          %v1032 = vmul.f32 %v1030, %v1025
          %1035 = vrot.lane.b32.xlu0 %v1031, 127
          %v1036 = vpop.permute.xlu0 %1035
          %1037 = vrot.lane.b32.xlu0 %v1032, 127
          %v1038 = vpop.permute.xlu0 %1037
          %v1041 = vadd.f32 %v1028, %v1036
          %v1042 = vadd.f32 %v1029, %v1038
          %1043 = vst.msk [vmem:[#allocation4] sm:$0xff] %vm203, %v1041
          %1044 = vst.msk [vmem:[#allocation4 + $0x8] sm:$0xff] %vm203, %v1042
          %v1045 = vld [vmem:[#allocation5] sm:$0xff]
          %v1046 = vld [vmem:[#allocation5 + $0x8] sm:$0xff]
          %v1047 = vstv %s283
          %v1048 = vmul.f32 %v1047, %v1026
          %v1049 = vmul.f32 %v1047, %v1027
          %1052 = vrot.lane.b32.xlu0 %v1048, 127
          %v1053 = vpop.permute.xlu0 %1052
          %1054 = vrot.lane.b32.xlu0 %v1049, 127
          %v1055 = vpop.permute.xlu0 %1054
          %v1058 = vadd.f32 %v1045, %v1053
          %v1059 = vadd.f32 %v1046, %v1055
          %1060 = vst.msk [vmem:[#allocation5] sm:$0xff] %vm203, %v1058
          %1061 = vst.msk [vmem:[#allocation5 + $0x8] sm:$0xff] %vm203, %v1059
        $region84: #{tpu_custom_call.1} parent=23 // pred_fallthru
          _
        // Predicated region
        $region85: #{tpu_custom_call.1} parent=23 // pred_check
          %p1062 = pneg %p357
        $region86: #{tpu_custom_call.1} parent=23 // pred_check_branch
          %1064 = sbr.rel (%p1062) target = $region88
        $region87: #{tpu_custom_call.1} parent=23 // pred_region
          %v1065 = vld [vmem:[#allocation2] sm:$0xff]
          %v1066 = vld [vmem:[#allocation2 + $0x8] sm:$0xff]
          %v1067 = vld [vmem:[#allocation3] sm:$0xff]
          %v1068 = vld [vmem:[#allocation3 + $0x8] sm:$0xff]
          %v1069 = vld [vmem:[#allocation4] sm:$0xff]
          %v1070 = vld [vmem:[#allocation4 + $0x8] sm:$0xff]
          %v1071 = vstv %s354
          %v1072 = vmul.f32 %v1071, %v1065
          %v1073 = vmul.f32 %v1071, %v1066
          %1076 = vrot.lane.b32.xlu0 %v1072, 126
          %v1077 = vpop.permute.xlu0 %1076
          %1078 = vrot.lane.b32.xlu0 %v1073, 126
          %v1079 = vpop.permute.xlu0 %1078
          %v1082 = vadd.f32 %v1069, %v1077
          %v1083 = vadd.f32 %v1070, %v1079
          %1084 = vst.msk [vmem:[#allocation4] sm:$0xff] %vm203, %v1082
          %1085 = vst.msk [vmem:[#allocation4 + $0x8] sm:$0xff] %vm203, %v1083
          %v1086 = vld [vmem:[#allocation5] sm:$0xff]
          %v1087 = vld [vmem:[#allocation5 + $0x8] sm:$0xff]
          %v1088 = vstv %s347
          %v1089 = vmul.f32 %v1088, %v1067
          %v1090 = vmul.f32 %v1088, %v1068
          %1093 = vrot.lane.b32.xlu0 %v1089, 126
          %v1094 = vpop.permute.xlu0 %1093
          %1095 = vrot.lane.b32.xlu0 %v1090, 126
          %v1096 = vpop.permute.xlu0 %1095
          %v1099 = vadd.f32 %v1086, %v1094
          %v1100 = vadd.f32 %v1087, %v1096
          %1101 = vst.msk [vmem:[#allocation5] sm:$0xff] %vm203, %v1099
          %1102 = vst.msk [vmem:[#allocation5 + $0x8] sm:$0xff] %vm203, %v1100
        $region88: #{tpu_custom_call.1} parent=23 // pred_fallthru
          _
        // Predicated region
        $region89: #{tpu_custom_call.1} parent=23 // pred_check
          %p1103 = pneg %p421
        $region90: #{tpu_custom_call.1} parent=23 // pred_check_branch
          %1105 = sbr.rel (%p1103) target = $region92
        $region91: #{tpu_custom_call.1} parent=23 // pred_region
          %v1106 = vld [vmem:[#allocation2] sm:$0xff]
          %v1107 = vld [vmem:[#allocation2 + $0x8] sm:$0xff]
          %v1108 = vld [vmem:[#allocation3] sm:$0xff]
          %v1109 = vld [vmem:[#allocation3 + $0x8] sm:$0xff]
          %v1110 = vld [vmem:[#allocation4] sm:$0xff]
          %v1111 = vld [vmem:[#allocation4 + $0x8] sm:$0xff]
          %v1112 = vstv %s418
          %v1113 = vmul.f32 %v1112, %v1106
          %v1114 = vmul.f32 %v1112, %v1107
          %1117 = vrot.lane.b32.xlu0 %v1113, 124
          %v1118 = vpop.permute.xlu0 %1117
          %1119 = vrot.lane.b32.xlu0 %v1114, 124
          %v1120 = vpop.permute.xlu0 %1119
          %v1123 = vadd.f32 %v1110, %v1118
          %v1124 = vadd.f32 %v1111, %v1120
          %1125 = vst.msk [vmem:[#allocation4] sm:$0xff] %vm203, %v1123
          %1126 = vst.msk [vmem:[#allocation4 + $0x8] sm:$0xff] %vm203, %v1124
          %v1127 = vld [vmem:[#allocation5] sm:$0xff]
          %v1128 = vld [vmem:[#allocation5 + $0x8] sm:$0xff]
          %v1129 = vstv %s411
          %v1130 = vmul.f32 %v1129, %v1108
          %v1131 = vmul.f32 %v1129, %v1109
          %1134 = vrot.lane.b32.xlu0 %v1130, 124
          %v1135 = vpop.permute.xlu0 %1134
          %1136 = vrot.lane.b32.xlu0 %v1131, 124
          %v1137 = vpop.permute.xlu0 %1136
          %v1140 = vadd.f32 %v1127, %v1135
          %v1141 = vadd.f32 %v1128, %v1137
          %1142 = vst.msk [vmem:[#allocation5] sm:$0xff] %vm203, %v1140
          %1143 = vst.msk [vmem:[#allocation5 + $0x8] sm:$0xff] %vm203, %v1141
        $region92: #{tpu_custom_call.1} parent=23 // pred_fallthru
          _
        // Predicated region
        $region93: #{tpu_custom_call.1} parent=23 // pred_check
          %p1144 = pneg %p485
        $region94: #{tpu_custom_call.1} parent=23 // pred_check_branch
          %1146 = sbr.rel (%p1144) target = $region96
        $region95: #{tpu_custom_call.1} parent=23 // pred_region
          %v1147 = vld [vmem:[#allocation2] sm:$0xff]
          %v1148 = vld [vmem:[#allocation2 + $0x8] sm:$0xff]
          %v1149 = vld [vmem:[#allocation3] sm:$0xff]
          %v1150 = vld [vmem:[#allocation3 + $0x8] sm:$0xff]
          %v1151 = vld [vmem:[#allocation4] sm:$0xff]
          %v1152 = vld [vmem:[#allocation4 + $0x8] sm:$0xff]
          %v1153 = vstv %s482
          %v1154 = vmul.f32 %v1153, %v1147
          %v1155 = vmul.f32 %v1153, %v1148
          %1158 = vrot.lane.b32.xlu0 %v1154, 123
          %v1159 = vpop.permute.xlu0 %1158
          %1160 = vrot.lane.b32.xlu0 %v1155, 123
          %v1161 = vpop.permute.xlu0 %1160
          %v1164 = vadd.f32 %v1151, %v1159
          %v1165 = vadd.f32 %v1152, %v1161
          %1166 = vst.msk [vmem:[#allocation4] sm:$0xff] %vm203, %v1164
          %1167 = vst.msk [vmem:[#allocation4 + $0x8] sm:$0xff] %vm203, %v1165
          %v1168 = vld [vmem:[#allocation5] sm:$0xff]
          %v1169 = vld [vmem:[#allocation5 + $0x8] sm:$0xff]
          %v1170 = vstv %s475
          %v1171 = vmul.f32 %v1170, %v1149
          %v1172 = vmul.f32 %v1170, %v1150
          %1175 = vrot.lane.b32.xlu0 %v1171, 123
          %v1176 = vpop.permute.xlu0 %1175
          %1177 = vrot.lane.b32.xlu0 %v1172, 123
          %v1178 = vpop.permute.xlu0 %1177
          %v1181 = vadd.f32 %v1168, %v1176
          %v1182 = vadd.f32 %v1169, %v1178
          %1183 = vst.msk [vmem:[#allocation5] sm:$0xff] %vm203, %v1181
          %1184 = vst.msk [vmem:[#allocation5 + $0x8] sm:$0xff] %vm203, %v1182
        $region96: #{tpu_custom_call.1} parent=23 // pred_fallthru
          _
        // Predicated region
        $region97: #{tpu_custom_call.1} parent=23 // pred_check
          %p1185 = pneg %p549
        $region98: #{tpu_custom_call.1} parent=23 // pred_check_branch
          %1187 = sbr.rel (%p1185) target = $region100
        $region99: #{tpu_custom_call.1} parent=23 // pred_region
          %v1188 = vld [vmem:[#allocation2] sm:$0xff]
          %v1189 = vld [vmem:[#allocation2 + $0x8] sm:$0xff]
          %v1190 = vld [vmem:[#allocation3] sm:$0xff]
          %v1191 = vld [vmem:[#allocation3 + $0x8] sm:$0xff]
          %v1192 = vld [vmem:[#allocation4] sm:$0xff]
          %v1193 = vld [vmem:[#allocation4 + $0x8] sm:$0xff]
          %v1194 = vstv %s546
          %v1195 = vmul.f32 %v1194, %v1188
          %v1196 = vmul.f32 %v1194, %v1189
          %1199 = vrot.lane.b32.xlu0 %v1195, 122
          %v1200 = vpop.permute.xlu0 %1199
          %1201 = vrot.lane.b32.xlu0 %v1196, 122
          %v1202 = vpop.permute.xlu0 %1201
          %v1205 = vadd.f32 %v1192, %v1200
          %v1206 = vadd.f32 %v1193, %v1202
          %1207 = vst.msk [vmem:[#allocation4] sm:$0xff] %vm203, %v1205
          %1208 = vst.msk [vmem:[#allocation4 + $0x8] sm:$0xff] %vm203, %v1206
          %v1209 = vld [vmem:[#allocation5] sm:$0xff]
          %v1210 = vld [vmem:[#allocation5 + $0x8] sm:$0xff]
          %v1211 = vstv %s539
          %v1212 = vmul.f32 %v1211, %v1190
          %v1213 = vmul.f32 %v1211, %v1191
          %1216 = vrot.lane.b32.xlu0 %v1212, 122
          %v1217 = vpop.permute.xlu0 %1216
          %1218 = vrot.lane.b32.xlu0 %v1213, 122
          %v1219 = vpop.permute.xlu0 %1218
          %v1222 = vadd.f32 %v1209, %v1217
          %v1223 = vadd.f32 %v1210, %v1219
          %1224 = vst.msk [vmem:[#allocation5] sm:$0xff] %vm203, %v1222
          %1225 = vst.msk [vmem:[#allocation5 + $0x8] sm:$0xff] %vm203, %v1223
        $region100: #{tpu_custom_call.1} parent=23 // pred_fallthru
          _
        %v1226 = vld [vmem:[#allocation4] sm:$0xff]
        %v1227 = vld [vmem:[#allocation4 + $0x8] sm:$0xff]
        %v1228 = vld [vmem:[#allocation5] sm:$0xff]
        %v1229 = vld [vmem:[#allocation5 + $0x8] sm:$0xff]
        %v1230 = vld [vmem:[%s142] sm:$0xff]
        %v1231 = vld [vmem:[%s142 + $0x8] sm:$0xff]
        %v1232 = vmul.f32 %v1226, %v1226
        %v1233 = vmul.f32 %v1227, %v1227
        %v1234 = vadd.f32 %v1230, %v1232
        %v1235 = vadd.f32 %v1231, %v1233
        %1236 = vst.msk [vmem:[%s142] sm:$0xff] %vm203, %v1234
        %1237 = vst.msk [vmem:[%s142 + $0x8] sm:$0xff] %vm203, %v1235
        %v1238 = vld [vmem:[%s603] sm:$0xff]
        %v1239 = vld [vmem:[%s603 + $0x8] sm:$0xff]
        %v1240 = vmul.f32 %v1228, %v1228
        %v1241 = vmul.f32 %v1229, %v1229
        %v1242 = vadd.f32 %v1238, %v1240
        %v1243 = vadd.f32 %v1239, %v1241
        %1244 = vst.msk [vmem:[%s603] sm:$0xff] %vm203, %v1242
        %1245 = vst.msk [vmem:[%s603 + $0x8] sm:$0xff] %vm203, %v1243
        %v1246 = vld [vmem:[%s608] sm:$0xff]
        %v1247 = vld [vmem:[%s608 + $0x8] sm:$0xff]
        %v1248 = vmul.f32 %v1226, %v1228
        %v1249 = vmul.f32 %v1227, %v1229
        %v1250 = vadd.f32 %v1246, %v1248
        %v1251 = vadd.f32 %v1247, %v1249
        %1252 = vst.msk [vmem:[%s608] sm:$0xff] %vm203, %v1250
        %1253 = vst.msk [vmem:[%s608 + $0x8] sm:$0xff] %vm203, %v1251
        %s1254 = sand.u32 %s60, 1
        %s1255 = scalar_lea.sflag [#allocation11], %s1254
        %s1256 = sand.u32 %s60, 1
        %s1257 = smul.addr %s1256, 48
        %s1258 = scalar_lea.vmem [#allocation12], %s1257
        // Predicated region
        $region101: #{tpu_custom_call.1} parent=23 // pred_check
          %p1259 = pneg %p70
        $region102: #{tpu_custom_call.1} parent=23 // pred_check_branch
          %1261 = sbr.rel (%p1259) target = $region104
        $region103: #{tpu_custom_call.1} parent=23 // pred_region
          %s1263 = ssub.s32 768, 768
          %1264 = vsyncadd %s1255, %s1263
          %s1265 = smul.addr %s26, 6
          %s1266 = smul.addr %s1265, 128
          %s1267 = scalar_lea.hbm %s3, %s1266
          %s1268 = sshll.u32 %s1258, 4
          %s1269 = int_to_ptr.vmem [resolvable:$true] %s1268
          %1274 = dma.vmem_to_hbm [thread:$0]  %s1269, 768, %s1267, %s1255, 128, 128, 8
        $region104: #{tpu_custom_call.1} parent=23 // pred_fallthru
          _
      $region24: #{tpu_custom_call.1} parent=5 // pred_fallthru
        _
      %p1275 = scmp.le.s32.totalorder 2, %s21
      // Predicated region
      $region105: #{tpu_custom_call.1} parent=5 // pred_check
        %p1276 = pneg %p1275
      $region106: #{tpu_custom_call.1} parent=5 // pred_check_branch
        %1278 = sbr.rel (%p1276) target = $region108
      $region107: #{tpu_custom_call.1} parent=5 // pred_region
        %s1279 = ssub.s32 %s21, 2
        // Predicated region
        $region109: #{tpu_custom_call.1} parent=107 // pred_check
          %p1280 = pneg %p76
        $region110: #{tpu_custom_call.1} parent=107 // pred_check_branch
          %1282 = sbr.rel (%p1280) target = $region112
        $region111: #{tpu_custom_call.1} parent=107 // pred_region
          %s1283 = sand.u32 %s61, 1
          %s1284 = scalar_lea.sflag [#allocation11], %s1283
          %s1285 = sand.u32 %s61, 1
          %s1286 = smul.addr %s1285, 48
          %s1287 = scalar_lea.vmem [#allocation12], %s1286
          %1288 = dma.done %s1284, 768
        $region112: #{tpu_custom_call.1} parent=107 // pred_fallthru
          _
      $region108: #{tpu_custom_call.1} parent=5 // pred_fallthru
        _
    $region6: #{tpu_custom_call.1} parent=1 // loop_footer
      %s25 = sadd.s32 1, %s21
    $region7: #{tpu_custom_call.1} parent=1 // loop_footer_branch
      %20 = sbr.rel target = $region3
    $region8: #{tpu_custom_call.1} parent=1 // loop_exit
      _
    %1289 = vsyncpa [#allocation10], 1
    %s1290 = scalar_lea.sflag [#allocation10], 1
    %1291 = vsyncpa %s1290, 1
    %1292 = vsyncpa [#allocation11], 1
    %s1293 = scalar_lea.sflag [#allocation11], 1
    %1294 = vsyncpa %s1293, 1

</llo_original>
